<compile_context>
chip_gen: v7x
topology: tpu7x:2x2x1
jax: 0.10.0
libtpu: 0.0.40
codegen_flags: <defaults>
</compile_context>

<pallas_src>
import functools
import math

import jax
import jax.numpy as jnp
from jax.experimental import pallas as pl
from jax.experimental.pallas import tpu as pltpu


def _resblock_kernel(x_ref, w1_ref, b1_ref, w2_ref, b2_ref, o_ref,
                     pad_ref, patch_ref, *, H, W, C):
    # x_ref:     (H, W, C)   f32   unpadded input block (also the residual)
    # w*_ref:    (9*C, C)    bf16  im2col weights, rows ordered (dy, dx, ci)
    # b*_ref:    (1, C)      f32   biases
    # o_ref:     (H, W, C)         output block
    # pad_ref:   (H+2, W+2, C) f32 shared zero-halo scratch (input, then relu act.)
    # patch_ref: (H*W, 9*C)  bf16  im2col staging buffer
    f32 = jnp.float32

    # --- zero only the 1-wide halo frame; the interior is fully overwritten below.
    zrow = jnp.zeros((1, W + 2, C), f32)
    zcol = jnp.zeros((H + 2, 1, C), f32)
    pad_ref[0:1, :, :] = zrow
    pad_ref[H + 1:H + 2, :, :] = zrow
    pad_ref[:, 0:1, :] = zcol
    pad_ref[:, W + 1:W + 2, :] = zcol

    # --- stage the input inside the halo
    pad_ref[1:H + 1, 1:W + 1, :] = x_ref[...]

    def conv3x3(w_ref, b_ref):
        # Build the (H*W, 9C) im2col patch once, then a single MXU matmul (K = 9C).
        for dy in range(3):
            for dx in range(3):
                t = dy * 3 + dx
                patch_ref[:, t * C:(t + 1) * C] = (
                    pad_ref[dy:dy + H, dx:dx + W, :]
                    .reshape(H * W, C).astype(jnp.bfloat16))
        acc = jnp.dot(patch_ref[...], w_ref[...],
                      preferred_element_type=f32)          # (H*W, C) f32
        return acc + b_ref[...]

    # --- conv1 + bias + relu (f32)
    h = jnp.maximum(conv3x3(w1_ref, b1_ref), 0.0)

    # --- reuse the same halo'd scratch as conv2's input (border stays zero)
    pad_ref[1:H + 1, 1:W + 1, :] = h.reshape(H, W, C)

    # --- conv2 + bias + residual add (f32)
    out = conv3x3(w2_ref, b2_ref).reshape(H, W, C) + x_ref[...]
    o_ref[...] = out.astype(o_ref.dtype)


def residual_block_nobn(x_nchw, w1, b1, w2, b2):
    """x_nchw: (N, C, H, W) float32. w*: (3, 3, C, C) HWIO. b*: (C,)."""
    x = jnp.transpose(x_nchw, (0, 2, 3, 1))               # NCHW -> NHWC
    N, H, W, C = x.shape

    # im2col weight layout: rows ordered (dy, dx, ci) -> matches patch column order.
    w1r = w1.reshape(9 * C, C).astype(jnp.bfloat16)
    w2r = w2.reshape(9 * C, C).astype(jnp.bfloat16)
    b1r = b1.reshape(1, C).astype(jnp.float32)
    b2r = b2.reshape(1, C).astype(jnp.float32)

    kernel = functools.partial(_resblock_kernel, H=H, W=W, C=C)

    out = pl.pallas_call(
        kernel,
        out_shape=jax.ShapeDtypeStruct((N, H, W, C), x.dtype),
        grid_spec=pltpu.PrefetchScalarGridSpec(
            num_scalar_prefetch=0,
            grid=(N,),
            in_specs=[
                pl.BlockSpec((None, H, W, C), lambda n: (n, 0, 0, 0)),
                pl.BlockSpec((9 * C, C), lambda n: (0, 0)),
                pl.BlockSpec((1, C), lambda n: (0, 0)),
                pl.BlockSpec((9 * C, C), lambda n: (0, 0)),
                pl.BlockSpec((1, C), lambda n: (0, 0)),
            ],
            out_specs=pl.BlockSpec((None, H, W, C), lambda n: (n, 0, 0, 0)),
            scratch_shapes=[
                pltpu.VMEM((H + 2, W + 2, C), jnp.float32),   # shared halo'd plane
                pltpu.VMEM((H * W, 9 * C), jnp.bfloat16),     # im2col patch buffer
            ],
        ),
        compiler_params=pltpu.CompilerParams(
            dimension_semantics=("parallel",),
            vmem_limit_bytes=32 * 1024 * 1024,
        ),
    )(x, w1r, b1r, w2r, b2r)

    return jnp.transpose(out, (0, 3, 1, 2))                # NHWC -> NCHW


def _reference(x_nchw, w1, b1, w2, b2):
    """Pure-JAX (f32) reference matching the PyTorch forward."""
    x = jnp.transpose(x_nchw, (0, 2, 3, 1))
    dn = ('NHWC', 'HWIO', 'NHWC')

    def conv(inp, w, b):
        y = jax.lax.conv_general_dilated(inp, w, (1, 1), 'SAME',
                                         dimension_numbers=dn)
        return y + b

    h = jnp.maximum(conv(x, w1, b1), 0.0)
    out = x + conv(h, w2, b2)
    return jnp.transpose(out, (0, 3, 1, 2))


if __name__ == "__main__":
    # nf=64 is the module default; small spatial size keeps the test cheap.
    N, C, H, W = 4, 64, 16, 16

    key = jax.random.PRNGKey(0)
    k1, k2, kx = jax.random.split(key, 3)

    # kaiming_normal_(a=0, mode='fan_in') then * 0.1, bias zeroed (initialize_weights)
    fan_in = C * 3 * 3
    std = math.sqrt(2.0 / fan_in)
    w1 = jax.random.normal(k1, (3, 3, C, C), jnp.float32) * std * 0.1
    w2 = jax.random.normal(k2, (3, 3, C, C), jnp.float32) * std * 0.1
    b1 = jnp.zeros((C,), jnp.float32)
    b2 = jnp.zeros((C,), jnp.float32)

    x = jax.random.normal(kx, (N, C, H, W), jnp.float32)

    out = residual_block_nobn(x, w1, b1, w2, b2)
    out = jax.block_until_ready(out)

    ref = _reference(x, w1, b1, w2, b2)
    assert out.shape == (N, C, H, W)
    # bf16 MXU operands with f32 accumulation -> slightly relaxed tolerance
    assert jnp.allclose(out, ref, atol=2e-2, rtol=2e-2), "mismatch vs JAX reference"

    print("KERNEL_OK")
</pallas_src>

<mosaic_0001>
module attributes {stable_mosaic.version = 11 : i64} {
  func.func @_resblock_kernel(%arg0: i32, %arg1: memref<1x16x16x64xf32, #tpu.memory_space<vmem>>, %arg2: memref<576x64xbf16, #tpu.memory_space<vmem>>, %arg3: memref<1x64xf32, #tpu.memory_space<vmem>>, %arg4: memref<576x64xbf16, #tpu.memory_space<vmem>>, %arg5: memref<1x64xf32, #tpu.memory_space<vmem>>, %arg6: memref<1x16x16x64xf32, #tpu.memory_space<vmem>>, %arg7: memref<18x18x64xf32, #tpu.memory_space<vmem>>, %arg8: memref<256x576xbf16, #tpu.memory_space<vmem>>) attributes {dimension_semantics = [#tpu.dimension_semantics<parallel>], iteration_bounds = array<i64: 4>, scalar_prefetch = 0 : i64, scratch_operands = 2 : i64, tpu.core_type = #tpu.core_type<tc>, window_params = [{transform_indices = @transform_0, window_bounds = array<i64: 1, 16, 16, 64>}, {pipeline_mode = #tpu.pipeline_mode<synchronous>, transform_indices = @transform_1, window_bounds = array<i64: 576, 64>}, {pipeline_mode = #tpu.pipeline_mode<synchronous>, transform_indices = @transform_2, window_bounds = array<i64: 1, 64>}, {pipeline_mode = #tpu.pipeline_mode<synchronous>, transform_indices = @transform_3, window_bounds = array<i64: 576, 64>}, {pipeline_mode = #tpu.pipeline_mode<synchronous>, transform_indices = @transform_4, window_bounds = array<i64: 1, 64>}, {transform_indices = @transform_5, window_bounds = array<i64: 1, 16, 16, 64>}]} {
    %cst = arith.constant 0.000000e+00 : f32
    %0 = vector.broadcast %cst : f32 to vector<1x18x64xf32>
    %cst_0 = arith.constant 0.000000e+00 : f32
    %1 = vector.broadcast %cst_0 : f32 to vector<18x1x64xf32>
    %c0 = arith.constant 0 : index
    %c0_1 = arith.constant 0 : index
    %c0_2 = arith.constant 0 : index
    %2 = vector.load %arg7[%c0, %c0_1, %c0_2] : memref<18x18x64xf32, #tpu.memory_space<vmem>>, vector<1x18x64xf32>
    tpu.vector_store %arg7[%c0, %c0_1, %c0_2], %0 {strides = array<i32>} : memref<18x18x64xf32, #tpu.memory_space<vmem>>, vector<1x18x64xf32>,
    %c17 = arith.constant 17 : index
    %c0_3 = arith.constant 0 : index
    %c0_4 = arith.constant 0 : index
    %3 = vector.load %arg7[%c17, %c0_3, %c0_4] : memref<18x18x64xf32, #tpu.memory_space<vmem>>, vector<1x18x64xf32>
    tpu.vector_store %arg7[%c17, %c0_3, %c0_4], %0 {strides = array<i32>} : memref<18x18x64xf32, #tpu.memory_space<vmem>>, vector<1x18x64xf32>,
    %c0_5 = arith.constant 0 : index
    %c0_6 = arith.constant 0 : index
    %c0_7 = arith.constant 0 : index
    %4 = vector.load %arg7[%c0_5, %c0_6, %c0_7] : memref<18x18x64xf32, #tpu.memory_space<vmem>>, vector<18x1x64xf32>
    tpu.vector_store %arg7[%c0_5, %c0_6, %c0_7], %1 {strides = array<i32>} : memref<18x18x64xf32, #tpu.memory_space<vmem>>, vector<18x1x64xf32>,
    %c0_8 = arith.constant 0 : index
    %c17_9 = arith.constant 17 : index
    %c0_10 = arith.constant 0 : index
    %5 = vector.load %arg7[%c0_8, %c17_9, %c0_10] : memref<18x18x64xf32, #tpu.memory_space<vmem>>, vector<18x1x64xf32>
    tpu.vector_store %arg7[%c0_8, %c17_9, %c0_10], %1 {strides = array<i32>} : memref<18x18x64xf32, #tpu.memory_space<vmem>>, vector<18x1x64xf32>,
    %c0_11 = arith.constant 0 : index
    %c0_12 = arith.constant 0 : index
    %c0_13 = arith.constant 0 : index
    %c0_14 = arith.constant 0 : index
    %6 = vector.load %arg1[%c0_11, %c0_12, %c0_13, %c0_14] : memref<1x16x16x64xf32, #tpu.memory_space<vmem>>, vector<1x16x16x64xf32>
    %7 = vector.shape_cast %6 : vector<1x16x16x64xf32> to vector<16x16x64xf32>
    %c1 = arith.constant 1 : index
    %c1_15 = arith.constant 1 : index
    %c0_16 = arith.constant 0 : index
    %8 = vector.load %arg7[%c1, %c1_15, %c0_16] : memref<18x18x64xf32, #tpu.memory_space<vmem>>, vector<16x16x64xf32>
    tpu.vector_store %arg7[%c1, %c1_15, %c0_16], %7 {strides = array<i32>} : memref<18x18x64xf32, #tpu.memory_space<vmem>>, vector<16x16x64xf32>,
    %c0_17 = arith.constant 0 : index
    %c0_18 = arith.constant 0 : index
    %c0_19 = arith.constant 0 : index
    %9 = vector.load %arg7[%c0_17, %c0_18, %c0_19] : memref<18x18x64xf32, #tpu.memory_space<vmem>>, vector<16x16x64xf32>
    %10 = vector.shape_cast %9 : vector<16x16x64xf32> to vector<256x64xf32>
    %11 = arith.truncf %10 : vector<256x64xf32> to vector<256x64xbf16>
    %c0_20 = arith.constant 0 : index
    %c0_21 = arith.constant 0 : index
    %12 = vector.load %arg8[%c0_20, %c0_21] : memref<256x576xbf16, #tpu.memory_space<vmem>>, vector<256x64xbf16>
    tpu.vector_store %arg8[%c0_20, %c0_21], %11 {strides = array<i32>} : memref<256x576xbf16, #tpu.memory_space<vmem>>, vector<256x64xbf16>,
    %c0_22 = arith.constant 0 : index
    %c1_23 = arith.constant 1 : index
    %c0_24 = arith.constant 0 : index
    %13 = vector.load %arg7[%c0_22, %c1_23, %c0_24] : memref<18x18x64xf32, #tpu.memory_space<vmem>>, vector<16x16x64xf32>
    %14 = vector.shape_cast %13 : vector<16x16x64xf32> to vector<256x64xf32>
    %15 = arith.truncf %14 : vector<256x64xf32> to vector<256x64xbf16>
    %c0_25 = arith.constant 0 : index
    %c64 = arith.constant 64 : index
    %16 = vector.load %arg8[%c0_25, %c64] : memref<256x576xbf16, #tpu.memory_space<vmem>>, vector<256x64xbf16>
    tpu.vector_store %arg8[%c0_25, %c64], %15 {strides = array<i32>} : memref<256x576xbf16, #tpu.memory_space<vmem>>, vector<256x64xbf16>,
    %c0_26 = arith.constant 0 : index
    %c2 = arith.constant 2 : index
    %c0_27 = arith.constant 0 : index
    %17 = vector.load %arg7[%c0_26, %c2, %c0_27] : memref<18x18x64xf32, #tpu.memory_space<vmem>>, vector<16x16x64xf32>
    %18 = vector.shape_cast %17 : vector<16x16x64xf32> to vector<256x64xf32>
    %19 = arith.truncf %18 : vector<256x64xf32> to vector<256x64xbf16>
    %c0_28 = arith.constant 0 : index
    %c128 = arith.constant 128 : index
    %20 = vector.load %arg8[%c0_28, %c128] : memref<256x576xbf16, #tpu.memory_space<vmem>>, vector<256x64xbf16>
    tpu.vector_store %arg8[%c0_28, %c128], %19 {strides = array<i32>} : memref<256x576xbf16, #tpu.memory_space<vmem>>, vector<256x64xbf16>,
    %c1_29 = arith.constant 1 : index
    %c0_30 = arith.constant 0 : index
    %c0_31 = arith.constant 0 : index
    %21 = vector.load %arg7[%c1_29, %c0_30, %c0_31] : memref<18x18x64xf32, #tpu.memory_space<vmem>>, vector<16x16x64xf32>
    %22 = vector.shape_cast %21 : vector<16x16x64xf32> to vector<256x64xf32>
    %23 = arith.truncf %22 : vector<256x64xf32> to vector<256x64xbf16>
    %c0_32 = arith.constant 0 : index
    %c192 = arith.constant 192 : index
    %24 = vector.load %arg8[%c0_32, %c192] : memref<256x576xbf16, #tpu.memory_space<vmem>>, vector<256x64xbf16>
    tpu.vector_store %arg8[%c0_32, %c192], %23 {strides = array<i32>} : memref<256x576xbf16, #tpu.memory_space<vmem>>, vector<256x64xbf16>,
    %c1_33 = arith.constant 1 : index
    %c1_34 = arith.constant 1 : index
    %c0_35 = arith.constant 0 : index
    %25 = vector.load %arg7[%c1_33, %c1_34, %c0_35] : memref<18x18x64xf32, #tpu.memory_space<vmem>>, vector<16x16x64xf32>
    %26 = vector.shape_cast %25 : vector<16x16x64xf32> to vector<256x64xf32>
    %27 = arith.truncf %26 : vector<256x64xf32> to vector<256x64xbf16>
    %c0_36 = arith.constant 0 : index
    %c256 = arith.constant 256 : index
    %28 = vector.load %arg8[%c0_36, %c256] : memref<256x576xbf16, #tpu.memory_space<vmem>>, vector<256x64xbf16>
    tpu.vector_store %arg8[%c0_36, %c256], %27 {strides = array<i32>} : memref<256x576xbf16, #tpu.memory_space<vmem>>, vector<256x64xbf16>,
    %c1_37 = arith.constant 1 : index
    %c2_38 = arith.constant 2 : index
    %c0_39 = arith.constant 0 : index
    %29 = vector.load %arg7[%c1_37, %c2_38, %c0_39] : memref<18x18x64xf32, #tpu.memory_space<vmem>>, vector<16x16x64xf32>
    %30 = vector.shape_cast %29 : vector<16x16x64xf32> to vector<256x64xf32>
    %31 = arith.truncf %30 : vector<256x64xf32> to vector<256x64xbf16>
    %c0_40 = arith.constant 0 : index
    %c320 = arith.constant 320 : index
    %32 = vector.load %arg8[%c0_40, %c320] : memref<256x576xbf16, #tpu.memory_space<vmem>>, vector<256x64xbf16>
    tpu.vector_store %arg8[%c0_40, %c320], %31 {strides = array<i32>} : memref<256x576xbf16, #tpu.memory_space<vmem>>, vector<256x64xbf16>,
    %c2_41 = arith.constant 2 : index
    %c0_42 = arith.constant 0 : index
    %c0_43 = arith.constant 0 : index
    %33 = vector.load %arg7[%c2_41, %c0_42, %c0_43] : memref<18x18x64xf32, #tpu.memory_space<vmem>>, vector<16x16x64xf32>
    %34 = vector.shape_cast %33 : vector<16x16x64xf32> to vector<256x64xf32>
    %35 = arith.truncf %34 : vector<256x64xf32> to vector<256x64xbf16>
    %c0_44 = arith.constant 0 : index
    %c384 = arith.constant 384 : index
    %36 = vector.load %arg8[%c0_44, %c384] : memref<256x576xbf16, #tpu.memory_space<vmem>>, vector<256x64xbf16>
    tpu.vector_store %arg8[%c0_44, %c384], %35 {strides = array<i32>} : memref<256x576xbf16, #tpu.memory_space<vmem>>, vector<256x64xbf16>,
    %c2_45 = arith.constant 2 : index
    %c1_46 = arith.constant 1 : index
    %c0_47 = arith.constant 0 : index
    %37 = vector.load %arg7[%c2_45, %c1_46, %c0_47] : memref<18x18x64xf32, #tpu.memory_space<vmem>>, vector<16x16x64xf32>
    %38 = vector.shape_cast %37 : vector<16x16x64xf32> to vector<256x64xf32>
    %39 = arith.truncf %38 : vector<256x64xf32> to vector<256x64xbf16>
    %c0_48 = arith.constant 0 : index
    %c448 = arith.constant 448 : index
    %40 = vector.load %arg8[%c0_48, %c448] : memref<256x576xbf16, #tpu.memory_space<vmem>>, vector<256x64xbf16>
    tpu.vector_store %arg8[%c0_48, %c448], %39 {strides = array<i32>} : memref<256x576xbf16, #tpu.memory_space<vmem>>, vector<256x64xbf16>,
    %c2_49 = arith.constant 2 : index
    %c2_50 = arith.constant 2 : index
    %c0_51 = arith.constant 0 : index
    %41 = vector.load %arg7[%c2_49, %c2_50, %c0_51] : memref<18x18x64xf32, #tpu.memory_space<vmem>>, vector<16x16x64xf32>
    %42 = vector.shape_cast %41 : vector<16x16x64xf32> to vector<256x64xf32>
    %43 = arith.truncf %42 : vector<256x64xf32> to vector<256x64xbf16>
    %c0_52 = arith.constant 0 : index
    %c512 = arith.constant 512 : index
    %44 = vector.load %arg8[%c0_52, %c512] : memref<256x576xbf16, #tpu.memory_space<vmem>>, vector<256x64xbf16>
    tpu.vector_store %arg8[%c0_52, %c512], %43 {strides = array<i32>} : memref<256x576xbf16, #tpu.memory_space<vmem>>, vector<256x64xbf16>,
    %c0_53 = arith.constant 0 : index
    %c0_54 = arith.constant 0 : index
    %45 = vector.load %arg8[%c0_53, %c0_54] : memref<256x576xbf16, #tpu.memory_space<vmem>>, vector<256x576xbf16>
    %c0_55 = arith.constant 0 : index
    %c0_56 = arith.constant 0 : index
    %46 = vector.load %arg2[%c0_55, %c0_56] : memref<576x64xbf16, #tpu.memory_space<vmem>>, vector<576x64xbf16>
    %cst_57 = arith.constant dense<0.000000e+00> : vector<256x64xf32>
    %47 = tpu.matmul %45, %46, %cst_57 {dimension_numbers = #tpu.dot_dimension_numbers<[1], [0], [0], [1], [0, 0, 1, 1], [], []>} : vector<256x576xbf16>, vector<576x64xbf16>, vector<256x64xf32> -> vector<256x64xf32>
    %c0_58 = arith.constant 0 : index
    %c0_59 = arith.constant 0 : index
    %48 = vector.load %arg3[%c0_58, %c0_59] : memref<1x64xf32, #tpu.memory_space<vmem>>, vector<1x64xf32>
    %49 = vector.broadcast %48 : vector<1x64xf32> to vector<256x64xf32>
    %50 = arith.addf %47, %49 : vector<256x64xf32>
    %cst_60 = arith.constant 0.000000e+00 : f32
    %51 = vector.broadcast %cst_60 : f32 to vector<256x64xf32>
    %52 = arith.maximumf %50, %51 : vector<256x64xf32>
    %53 = vector.shape_cast %52 : vector<256x64xf32> to vector<16x16x64xf32>
    %c1_61 = arith.constant 1 : index
    %c1_62 = arith.constant 1 : index
    %c0_63 = arith.constant 0 : index
    %54 = vector.load %arg7[%c1_61, %c1_62, %c0_63] : memref<18x18x64xf32, #tpu.memory_space<vmem>>, vector<16x16x64xf32>
    tpu.vector_store %arg7[%c1_61, %c1_62, %c0_63], %53 {strides = array<i32>} : memref<18x18x64xf32, #tpu.memory_space<vmem>>, vector<16x16x64xf32>,
    %c0_64 = arith.constant 0 : index
    %c0_65 = arith.constant 0 : index
    %c0_66 = arith.constant 0 : index
    %55 = vector.load %arg7[%c0_64, %c0_65, %c0_66] : memref<18x18x64xf32, #tpu.memory_space<vmem>>, vector<16x16x64xf32>
    %56 = vector.shape_cast %55 : vector<16x16x64xf32> to vector<256x64xf32>
    %57 = arith.truncf %56 : vector<256x64xf32> to vector<256x64xbf16>
    %c0_67 = arith.constant 0 : index
    %c0_68 = arith.constant 0 : index
    %58 = vector.load %arg8[%c0_67, %c0_68] : memref<256x576xbf16, #tpu.memory_space<vmem>>, vector<256x64xbf16>
    tpu.vector_store %arg8[%c0_67, %c0_68], %57 {strides = array<i32>} : memref<256x576xbf16, #tpu.memory_space<vmem>>, vector<256x64xbf16>,
    %c0_69 = arith.constant 0 : index
    %c1_70 = arith.constant 1 : index
    %c0_71 = arith.constant 0 : index
    %59 = vector.load %arg7[%c0_69, %c1_70, %c0_71] : memref<18x18x64xf32, #tpu.memory_space<vmem>>, vector<16x16x64xf32>
    %60 = vector.shape_cast %59 : vector<16x16x64xf32> to vector<256x64xf32>
    %61 = arith.truncf %60 : vector<256x64xf32> to vector<256x64xbf16>
    %c0_72 = arith.constant 0 : index
    %c64_73 = arith.constant 64 : index
    %62 = vector.load %arg8[%c0_72, %c64_73] : memref<256x576xbf16, #tpu.memory_space<vmem>>, vector<256x64xbf16>
    tpu.vector_store %arg8[%c0_72, %c64_73], %61 {strides = array<i32>} : memref<256x576xbf16, #tpu.memory_space<vmem>>, vector<256x64xbf16>,
    %c0_74 = arith.constant 0 : index
    %c2_75 = arith.constant 2 : index
    %c0_76 = arith.constant 0 : index
    %63 = vector.load %arg7[%c0_74, %c2_75, %c0_76] : memref<18x18x64xf32, #tpu.memory_space<vmem>>, vector<16x16x64xf32>
    %64 = vector.shape_cast %63 : vector<16x16x64xf32> to vector<256x64xf32>
    %65 = arith.truncf %64 : vector<256x64xf32> to vector<256x64xbf16>
    %c0_77 = arith.constant 0 : index
    %c128_78 = arith.constant 128 : index
    %66 = vector.load %arg8[%c0_77, %c128_78] : memref<256x576xbf16, #tpu.memory_space<vmem>>, vector<256x64xbf16>
    tpu.vector_store %arg8[%c0_77, %c128_78], %65 {strides = array<i32>} : memref<256x576xbf16, #tpu.memory_space<vmem>>, vector<256x64xbf16>,
    %c1_79 = arith.constant 1 : index
    %c0_80 = arith.constant 0 : index
    %c0_81 = arith.constant 0 : index
    %67 = vector.load %arg7[%c1_79, %c0_80, %c0_81] : memref<18x18x64xf32, #tpu.memory_space<vmem>>, vector<16x16x64xf32>
    %68 = vector.shape_cast %67 : vector<16x16x64xf32> to vector<256x64xf32>
    %69 = arith.truncf %68 : vector<256x64xf32> to vector<256x64xbf16>
    %c0_82 = arith.constant 0 : index
    %c192_83 = arith.constant 192 : index
    %70 = vector.load %arg8[%c0_82, %c192_83] : memref<256x576xbf16, #tpu.memory_space<vmem>>, vector<256x64xbf16>
    tpu.vector_store %arg8[%c0_82, %c192_83], %69 {strides = array<i32>} : memref<256x576xbf16, #tpu.memory_space<vmem>>, vector<256x64xbf16>,
    %c1_84 = arith.constant 1 : index
    %c1_85 = arith.constant 1 : index
    %c0_86 = arith.constant 0 : index
    %71 = vector.load %arg7[%c1_84, %c1_85, %c0_86] : memref<18x18x64xf32, #tpu.memory_space<vmem>>, vector<16x16x64xf32>
    %72 = vector.shape_cast %71 : vector<16x16x64xf32> to vector<256x64xf32>
    %73 = arith.truncf %72 : vector<256x64xf32> to vector<256x64xbf16>
    %c0_87 = arith.constant 0 : index
    %c256_88 = arith.constant 256 : index
    %74 = vector.load %arg8[%c0_87, %c256_88] : memref<256x576xbf16, #tpu.memory_space<vmem>>, vector<256x64xbf16>
    tpu.vector_store %arg8[%c0_87, %c256_88], %73 {strides = array<i32>} : memref<256x576xbf16, #tpu.memory_space<vmem>>, vector<256x64xbf16>,
    %c1_89 = arith.constant 1 : index
    %c2_90 = arith.constant 2 : index
    %c0_91 = arith.constant 0 : index
    %75 = vector.load %arg7[%c1_89, %c2_90, %c0_91] : memref<18x18x64xf32, #tpu.memory_space<vmem>>, vector<16x16x64xf32>
    %76 = vector.shape_cast %75 : vector<16x16x64xf32> to vector<256x64xf32>
    %77 = arith.truncf %76 : vector<256x64xf32> to vector<256x64xbf16>
    %c0_92 = arith.constant 0 : index
    %c320_93 = arith.constant 320 : index
    %78 = vector.load %arg8[%c0_92, %c320_93] : memref<256x576xbf16, #tpu.memory_space<vmem>>, vector<256x64xbf16>
    tpu.vector_store %arg8[%c0_92, %c320_93], %77 {strides = array<i32>} : memref<256x576xbf16, #tpu.memory_space<vmem>>, vector<256x64xbf16>,
    %c2_94 = arith.constant 2 : index
    %c0_95 = arith.constant 0 : index
    %c0_96 = arith.constant 0 : index
    %79 = vector.load %arg7[%c2_94, %c0_95, %c0_96] : memref<18x18x64xf32, #tpu.memory_space<vmem>>, vector<16x16x64xf32>
    %80 = vector.shape_cast %79 : vector<16x16x64xf32> to vector<256x64xf32>
    %81 = arith.truncf %80 : vector<256x64xf32> to vector<256x64xbf16>
    %c0_97 = arith.constant 0 : index
    %c384_98 = arith.constant 384 : index
    %82 = vector.load %arg8[%c0_97, %c384_98] : memref<256x576xbf16, #tpu.memory_space<vmem>>, vector<256x64xbf16>
    tpu.vector_store %arg8[%c0_97, %c384_98], %81 {strides = array<i32>} : memref<256x576xbf16, #tpu.memory_space<vmem>>, vector<256x64xbf16>,
    %c2_99 = arith.constant 2 : index
    %c1_100 = arith.constant 1 : index
    %c0_101 = arith.constant 0 : index
    %83 = vector.load %arg7[%c2_99, %c1_100, %c0_101] : memref<18x18x64xf32, #tpu.memory_space<vmem>>, vector<16x16x64xf32>
    %84 = vector.shape_cast %83 : vector<16x16x64xf32> to vector<256x64xf32>
    %85 = arith.truncf %84 : vector<256x64xf32> to vector<256x64xbf16>
    %c0_102 = arith.constant 0 : index
    %c448_103 = arith.constant 448 : index
    %86 = vector.load %arg8[%c0_102, %c448_103] : memref<256x576xbf16, #tpu.memory_space<vmem>>, vector<256x64xbf16>
    tpu.vector_store %arg8[%c0_102, %c448_103], %85 {strides = array<i32>} : memref<256x576xbf16, #tpu.memory_space<vmem>>, vector<256x64xbf16>,
    %c2_104 = arith.constant 2 : index
    %c2_105 = arith.constant 2 : index
    %c0_106 = arith.constant 0 : index
    %87 = vector.load %arg7[%c2_104, %c2_105, %c0_106] : memref<18x18x64xf32, #tpu.memory_space<vmem>>, vector<16x16x64xf32>
    %88 = vector.shape_cast %87 : vector<16x16x64xf32> to vector<256x64xf32>
    %89 = arith.truncf %88 : vector<256x64xf32> to vector<256x64xbf16>
    %c0_107 = arith.constant 0 : index
    %c512_108 = arith.constant 512 : index
    %90 = vector.load %arg8[%c0_107, %c512_108] : memref<256x576xbf16, #tpu.memory_space<vmem>>, vector<256x64xbf16>
    tpu.vector_store %arg8[%c0_107, %c512_108], %89 {strides = array<i32>} : memref<256x576xbf16, #tpu.memory_space<vmem>>, vector<256x64xbf16>,
    %c0_109 = arith.constant 0 : index
    %c0_110 = arith.constant 0 : index
    %91 = vector.load %arg8[%c0_109, %c0_110] : memref<256x576xbf16, #tpu.memory_space<vmem>>, vector<256x576xbf16>
    %c0_111 = arith.constant 0 : index
    %c0_112 = arith.constant 0 : index
    %92 = vector.load %arg4[%c0_111, %c0_112] : memref<576x64xbf16, #tpu.memory_space<vmem>>, vector<576x64xbf16>
    %cst_113 = arith.constant dense<0.000000e+00> : vector<256x64xf32>
    %93 = tpu.matmul %91, %92, %cst_113 {dimension_numbers = #tpu.dot_dimension_numbers<[1], [0], [0], [1], [0, 0, 1, 1], [], []>} : vector<256x576xbf16>, vector<576x64xbf16>, vector<256x64xf32> -> vector<256x64xf32>
    %c0_114 = arith.constant 0 : index
    %c0_115 = arith.constant 0 : index
    %94 = vector.load %arg5[%c0_114, %c0_115] : memref<1x64xf32, #tpu.memory_space<vmem>>, vector<1x64xf32>
    %95 = vector.broadcast %94 : vector<1x64xf32> to vector<256x64xf32>
    %96 = arith.addf %93, %95 : vector<256x64xf32>
    %97 = vector.shape_cast %96 : vector<256x64xf32> to vector<16x16x64xf32>
    %c0_116 = arith.constant 0 : index
    %c0_117 = arith.constant 0 : index
    %c0_118 = arith.constant 0 : index
    %c0_119 = arith.constant 0 : index
    %98 = vector.load %arg1[%c0_116, %c0_117, %c0_118, %c0_119] : memref<1x16x16x64xf32, #tpu.memory_space<vmem>>, vector<1x16x16x64xf32>
    %99 = vector.shape_cast %98 : vector<1x16x16x64xf32> to vector<16x16x64xf32>
    %100 = arith.addf %97, %99 : vector<16x16x64xf32>
    %c0_120 = arith.constant 0 : index
    %c0_121 = arith.constant 0 : index
    %c0_122 = arith.constant 0 : index
    %c0_123 = arith.constant 0 : index
    %101 = vector.load %arg6[%c0_120, %c0_121, %c0_122, %c0_123] : memref<1x16x16x64xf32, #tpu.memory_space<vmem>>, vector<1x16x16x64xf32>
    %102 = vector.shape_cast %101 : vector<1x16x16x64xf32> to vector<16x16x64xf32>
    %103 = vector.shape_cast %100 : vector<16x16x64xf32> to vector<1x16x16x64xf32>
    tpu.vector_store %arg6[%c0_120, %c0_121, %c0_122, %c0_123], %103 {strides = array<i32>} : memref<1x16x16x64xf32, #tpu.memory_space<vmem>>, vector<1x16x16x64xf32>,
    return
  }
  func.func @transform_0(%arg0: i32) -> (i32, i32, i32, i32) {
    %c0_i32 = arith.constant 0 : i32
    %c0_i32_0 = arith.constant 0 : i32
    %c0_i32_1 = arith.constant 0 : i32
    %c0_i32_2 = arith.constant 0 : i32
    return %arg0, %c0_i32, %c0_i32_0, %c0_i32_1 : i32, i32, i32, i32
  }
  func.func @transform_1(%arg0: i32) -> (i32, i32) {
    %c0_i32 = arith.constant 0 : i32
    %c0_i32_0 = arith.constant 0 : i32
    %c0_i32_1 = arith.constant 0 : i32
    return %c0_i32, %c0_i32_0 : i32, i32
  }
  func.func @transform_2(%arg0: i32) -> (i32, i32) {
    %c0_i32 = arith.constant 0 : i32
    %c0_i32_0 = arith.constant 0 : i32
    %c0_i32_1 = arith.constant 0 : i32
    return %c0_i32, %c0_i32_0 : i32, i32
  }
  func.func @transform_3(%arg0: i32) -> (i32, i32) {
    %c0_i32 = arith.constant 0 : i32
    %c0_i32_0 = arith.constant 0 : i32
    %c0_i32_1 = arith.constant 0 : i32
    return %c0_i32, %c0_i32_0 : i32, i32
  }
  func.func @transform_4(%arg0: i32) -> (i32, i32) {
    %c0_i32 = arith.constant 0 : i32
    %c0_i32_0 = arith.constant 0 : i32
    %c0_i32_1 = arith.constant 0 : i32
    return %c0_i32, %c0_i32_0 : i32, i32
  }
  func.func @transform_5(%arg0: i32) -> (i32, i32, i32, i32) {
    %c0_i32 = arith.constant 0 : i32
    %c0_i32_0 = arith.constant 0 : i32
    %c0_i32_1 = arith.constant 0 : i32
    %c0_i32_2 = arith.constant 0 : i32
    return %arg0, %c0_i32, %c0_i32_0, %c0_i32_1 : i32, i32, i32, i32
  }
}

</mosaic_0001>

<llo_original>
// kernel: tpu_custom_call.1
$region0: #{tpu_custom_call.1}
  #allocation0 [shape = 'u32[]', space=smem, size = 0x4, offset = 0x4, fixed_abs, tag = 'smem constant byte address 0x4 - core index']
  #allocation1 [shape = 'u32[144,128]{1,0:T(1,128)}', space=vmem, size = 0x12000, scoped, tag = 'internal scratch']
  #allocation2 [shape = 'f32[18,18,64]{2,1,0:T(8,128)}', space=vmem, size = 0x36000, scoped, tag = 'scratch operand']
  #allocation3 [shape = 'bf16[256,576]{1,0:T(16,128)(2,1)}', space=vmem, size = 0x50000, scoped, tag = 'scratch operand']
  %s0 = inlined_call_operand.hbm [shape: f32[4,16,16,64], index: 0, kind: input, shape index: {}]
  %s1 = inlined_call_operand.vmem [shape: bf16[576,64], index: 1, kind: input, shape index: {}]
  %s2 = inlined_call_operand.vmem [shape: f32[1,64], index: 2, kind: input, shape index: {}]
  %s3 = inlined_call_operand.vmem [shape: bf16[576,64], index: 3, kind: input, shape index: {}]
  %s4 = inlined_call_operand.vmem [shape: f32[1,64], index: 4, kind: input, shape index: {}]
  %s5 = inlined_call_operand.hbm [shape: f32[4,16,16,64], index: 5, kind: output, shape index: {}]
  %s6 = sld [smem:[#allocation0]]
  $region57: #{tpu_custom_call.1} parent=0
    _
  %s8 = ssub.s32 1, %s6
  %s9 = scalar_select 0, %s8, %s6
  $region1: #{tpu_custom_call.1} parent=0
    #allocation4 [shape = 'u8[262144]{0}', space=vmem, size = 0x40000, scoped, tag = 'input window, operand 0']
    #allocation5 [shape = 's32[2]{0}', space=sflag, size = 0x8, scoped, tag = 'scoped memory for tpu_custom_call.1']
    #allocation6 [shape = 's32[2]{0}', space=sflag, size = 0x8, scoped, tag = 'scoped memory for tpu_custom_call.1']
    #allocation7 [shape = 'u8[262144]{0}', space=vmem, size = 0x40000, scoped, tag = 'output window, operand 0']
    %10 = vsyncpa [#allocation5], 0
    %s11 = scalar_lea.sflag [#allocation5], 1
    %12 = vsyncpa %s11, 0
    %13 = vsyncpa [#allocation6], 0
    %s14 = scalar_lea.sflag [#allocation6], 1
    %15 = vsyncpa %s14, 0
    loop: start=0, step=1, limit=6
    $region2: #{tpu_custom_call.1} parent=1 // loop_pre_header
      _
    $region3: #{tpu_custom_call.1} parent=1 // loop_header
      %s17 = sphi 0, %s21
      %p18 = scmp.ge.s32.totalorder %s17, 6
      %s27 = sphi 0, %s29
      %s30 = sphi 0, %s27
      %s31 = sphi 0, %s30
      %s47 = sphi 0, %s31
      %s51 = sphi 0, %s51
      %s53 = sphi 0, %s51
      %s54 = sphi 0, %s53
      %s68 = sphi 0, %s54
      %s72 = sphi 0, %s72
      %s74 = sphi 0, %s72
      %s75 = sphi 0, %s74
      %s89 = sphi 0, %s75
      %s93 = sphi 0, %s93
      %s95 = sphi 0, %s93
      %s96 = sphi 0, %s95
      %s110 = sphi 0, %s96
      %s114 = sphi 0, %s114
      %s116 = sphi 0, %s114
      %s117 = sphi 0, %s116
      %s131 = sphi 0, %s117
      %s137 = sphi 0, %s139
      %s140 = sphi 0, %s137
      %s141 = sphi 0, %s140
      %s157 = sphi 0, %s141
    $region4: #{tpu_custom_call.1} parent=1 // loop_header_branch
      %20 = sbr.rel (%p18) target = $region8
    $region5: #{tpu_custom_call.1} parent=1 // loop_body
      %s22 = ssub.s32 %s17, 1
      %s23 = ssub.s32 %s17, 2
      %s24 = sadd.s32 %s17, 1
      %s25 = ssub.s32 %s17, %s24
      %p26 = scmp.eq.s32.totalorder %s25, 0
      %s28 = sadd.s32 %s27, 1
      %s29 = scalar_select %p26, %s27, %s28
      %p32 = pneg %p26
      %p33 = scmp.eq.s32.totalorder %s17, 3
      %p34 = por %p32, %p33
      %p35 = scmp.ne.s32.totalorder %s27, %s30
      %p36 = scmp.eq.s32.totalorder %s17, 0
      %p37 = por %p35, %p36
      %p38 = scmp.ne.s32.totalorder %s27, %s30
      %p39 = scmp.eq.s32.totalorder %s22, 3
      %p40 = por %p38, %p39
      %p41 = scmp.ne.s32.totalorder %s30, %s31
      %p42 = scmp.eq.s32.totalorder %s22, 0
      %p43 = por %p41, %p42
      %p44 = scmp.ne.s32.totalorder %s30, %s31
      %p45 = scmp.eq.s32.totalorder %s23, 3
      %p46 = por %p44, %p45
      %p48 = scmp.ne.s32.totalorder %s31, %s47
      %p49 = scmp.eq.s32.totalorder %s23, 0
      %p50 = por %p48, %p49
      %s52 = sadd.s32 %s51, 1
      %p55 = scmp.eq.s32.totalorder %s17, 3
      %p56 = scmp.ne.s32.totalorder %s51, %s53
      %p57 = scmp.eq.s32.totalorder %s17, 0
      %p58 = por %p56, %p57
      %p59 = scmp.ne.s32.totalorder %s51, %s53
      %p60 = scmp.eq.s32.totalorder %s22, 3
      %p61 = por %p59, %p60
      %p62 = scmp.ne.s32.totalorder %s53, %s54
      %p63 = scmp.eq.s32.totalorder %s22, 0
      %p64 = por %p62, %p63
      %p65 = scmp.ne.s32.totalorder %s53, %s54
      %p66 = scmp.eq.s32.totalorder %s23, 3
      %p67 = por %p65, %p66
      %p69 = scmp.ne.s32.totalorder %s54, %s68
      %p70 = scmp.eq.s32.totalorder %s23, 0
      %p71 = por %p69, %p70
      %s73 = sadd.s32 %s72, 1
      %p76 = scmp.eq.s32.totalorder %s17, 3
      %p77 = scmp.ne.s32.totalorder %s72, %s74
      %p78 = scmp.eq.s32.totalorder %s17, 0
      %p79 = por %p77, %p78
      %p80 = scmp.ne.s32.totalorder %s72, %s74
      %p81 = scmp.eq.s32.totalorder %s22, 3
      %p82 = por %p80, %p81
      %p83 = scmp.ne.s32.totalorder %s74, %s75
      %p84 = scmp.eq.s32.totalorder %s22, 0
      %p85 = por %p83, %p84
      %p86 = scmp.ne.s32.totalorder %s74, %s75
      %p87 = scmp.eq.s32.totalorder %s23, 3
      %p88 = por %p86, %p87
      %p90 = scmp.ne.s32.totalorder %s75, %s89
      %p91 = scmp.eq.s32.totalorder %s23, 0
      %p92 = por %p90, %p91
      %s94 = sadd.s32 %s93, 1
      %p97 = scmp.eq.s32.totalorder %s17, 3
      %p98 = scmp.ne.s32.totalorder %s93, %s95
      %p99 = scmp.eq.s32.totalorder %s17, 0
      %p100 = por %p98, %p99
      %p101 = scmp.ne.s32.totalorder %s93, %s95
      %p102 = scmp.eq.s32.totalorder %s22, 3
      %p103 = por %p101, %p102
      %p104 = scmp.ne.s32.totalorder %s95, %s96
      %p105 = scmp.eq.s32.totalorder %s22, 0
      %p106 = por %p104, %p105
      %p107 = scmp.ne.s32.totalorder %s95, %s96
      %p108 = scmp.eq.s32.totalorder %s23, 3
      %p109 = por %p107, %p108
      %p111 = scmp.ne.s32.totalorder %s96, %s110
      %p112 = scmp.eq.s32.totalorder %s23, 0
      %p113 = por %p111, %p112
      %s115 = sadd.s32 %s114, 1
      %p118 = scmp.eq.s32.totalorder %s17, 3
      %p119 = scmp.ne.s32.totalorder %s114, %s116
      %p120 = scmp.eq.s32.totalorder %s17, 0
      %p121 = por %p119, %p120
      %p122 = scmp.ne.s32.totalorder %s114, %s116
      %p123 = scmp.eq.s32.totalorder %s22, 3
      %p124 = por %p122, %p123
      %p125 = scmp.ne.s32.totalorder %s116, %s117
      %p126 = scmp.eq.s32.totalorder %s22, 0
      %p127 = por %p125, %p126
      %p128 = scmp.ne.s32.totalorder %s116, %s117
      %p129 = scmp.eq.s32.totalorder %s23, 3
      %p130 = por %p128, %p129
      %p132 = scmp.ne.s32.totalorder %s117, %s131
      %p133 = scmp.eq.s32.totalorder %s23, 0
      %p134 = por %p132, %p133
      %s135 = ssub.s32 %s17, %s24
      %p136 = scmp.eq.s32.totalorder %s135, 0
      %s138 = sadd.s32 %s137, 1
      %s139 = scalar_select %p136, %s137, %s138
      %p142 = pneg %p136
      %p143 = scmp.eq.s32.totalorder %s17, 3
      %p144 = por %p142, %p143
      %p145 = scmp.ne.s32.totalorder %s137, %s140
      %p146 = scmp.eq.s32.totalorder %s17, 0
      %p147 = por %p145, %p146
      %p148 = scmp.ne.s32.totalorder %s137, %s140
      %p149 = scmp.eq.s32.totalorder %s22, 3
      %p150 = por %p148, %p149
      %p151 = scmp.ne.s32.totalorder %s140, %s141
      %p152 = scmp.eq.s32.totalorder %s22, 0
      %p153 = por %p151, %p152
      %p154 = scmp.ne.s32.totalorder %s140, %s141
      %p155 = scmp.eq.s32.totalorder %s23, 3
      %p156 = por %p154, %p155
      %p158 = scmp.ne.s32.totalorder %s141, %s157
      %p159 = scmp.eq.s32.totalorder %s23, 0
      %p160 = por %p158, %p159
      %p161 = scmp.le.s32.totalorder 1, %s17
      %p162 = scmp.lt.s32.totalorder %s17, 5
      %p163 = pnand %p161, %p162
      %p164 = pneg %p163
      // Predicated region
      $region9: #{tpu_custom_call.1} parent=5 // pred_check
        _
      $region10: #{tpu_custom_call.1} parent=5 // pred_check_branch
        %166 = sbr.rel (%p163) target = $region12
      $region11: #{tpu_custom_call.1} parent=5 // pred_region
        %s167 = ssub.s32 %s17, 1
        // Predicated region
        $region13: #{tpu_custom_call.1} parent=11 // pred_check
          %p168 = pneg %p64
        $region14: #{tpu_custom_call.1} parent=11 // pred_check_branch
          %170 = sbr.rel (%p168) target = $region16
        $region15: #{tpu_custom_call.1} parent=11 // pred_region
          _
        $region16: #{tpu_custom_call.1} parent=11 // pred_fallthru
          _
        // Predicated region
        $region17: #{tpu_custom_call.1} parent=11 // pred_check
          %p171 = pneg %p85
        $region18: #{tpu_custom_call.1} parent=11 // pred_check_branch
          %173 = sbr.rel (%p171) target = $region20
        $region19: #{tpu_custom_call.1} parent=11 // pred_region
          _
        $region20: #{tpu_custom_call.1} parent=11 // pred_fallthru
          _
        // Predicated region
        $region21: #{tpu_custom_call.1} parent=11 // pred_check
          %p174 = pneg %p106
        $region22: #{tpu_custom_call.1} parent=11 // pred_check_branch
          %176 = sbr.rel (%p174) target = $region24
        $region23: #{tpu_custom_call.1} parent=11 // pred_region
          _
        $region24: #{tpu_custom_call.1} parent=11 // pred_fallthru
          _
        // Predicated region
        $region25: #{tpu_custom_call.1} parent=11 // pred_check
          %p177 = pneg %p127
        $region26: #{tpu_custom_call.1} parent=11 // pred_check_branch
          %179 = sbr.rel (%p177) target = $region28
        $region27: #{tpu_custom_call.1} parent=11 // pred_region
          _
        $region28: #{tpu_custom_call.1} parent=11 // pred_fallthru
          _
      $region12: #{tpu_custom_call.1} parent=5 // pred_fallthru
        _
      %p180 = scmp.lt.s32.totalorder %s17, 4
      // Predicated region
      $region29: #{tpu_custom_call.1} parent=5 // pred_check
        %p181 = pneg %p180
      $region30: #{tpu_custom_call.1} parent=5 // pred_check_branch
        %183 = sbr.rel (%p181) target = $region32
      $region31: #{tpu_custom_call.1} parent=5 // pred_region
        // Predicated region
        $region33: #{tpu_custom_call.1} parent=31 // pred_check
          %p184 = pneg %p37
        $region34: #{tpu_custom_call.1} parent=31 // pred_check_branch
          %186 = sbr.rel (%p184) target = $region36
        $region35: #{tpu_custom_call.1} parent=31 // pred_region
          %s187 = sand.u32 %s27, 1
          %s188 = scalar_lea.sflag [#allocation5], %s187
          %s189 = sand.u32 %s27, 1
          %s190 = smul.addr %s189, 256
          %s191 = scalar_lea.vmem [#allocation4], %s190
          %s193 = ssub.s32 4096, 4096
          %194 = vsyncadd %s188, %s193
          %s195 = smul.addr %s17, 32
          %s196 = smul.addr %s195, 128
          %s197 = scalar_lea.hbm %s0, %s196
          %s198 = sshll.u32 %s191, 4
          %s199 = int_to_ptr.vmem [resolvable:$true] %s198
          %204 = dma.hbm_to_vmem [thread:$0]  %s197, 4096, %s199, %s188, 128, 128, 8
        $region36: #{tpu_custom_call.1} parent=31 // pred_fallthru
          _
      $region32: #{tpu_custom_call.1} parent=5 // pred_fallthru
        _
      %p205 = scmp.le.s32.totalorder 1, %s17
      %p206 = scmp.lt.s32.totalorder %s17, 5
      %p207 = pnand %p205, %p206
      %p208 = pneg %p207
      // Predicated region
      $region37: #{tpu_custom_call.1} parent=5 // pred_check
        _
      $region38: #{tpu_custom_call.1} parent=5 // pred_check_branch
        %210 = sbr.rel (%p207) target = $region40
      $region39: #{tpu_custom_call.1} parent=5 // pred_region
        %s211 = ssub.s32 %s17, 1
        %s212 = sand.u32 %s30, 1
        %s213 = scalar_lea.sflag [#allocation5], %s212
        %s214 = sand.u32 %s30, 1
        %s215 = smul.addr %s214, 256
        %s216 = scalar_lea.vmem [#allocation4], %s215
        // Predicated region
        $region41: #{tpu_custom_call.1} parent=39 // pred_check
          %p217 = pneg %p43
        $region42: #{tpu_custom_call.1} parent=39 // pred_check_branch
          %219 = sbr.rel (%p217) target = $region44
        $region43: #{tpu_custom_call.1} parent=39 // pred_region
          %220 = dma.done %s213, 4096
        $region44: #{tpu_custom_call.1} parent=39 // pred_fallthru
          _
        %s221 = sand.u32 %s30, 1
        %s222 = scalar_lea.sflag [#allocation5], %s221
        %s223 = sand.u32 %s30, 1
        %s224 = smul.addr %s223, 256
        %s225 = scalar_lea.vmem [#allocation4], %s224
        %p226 = pneg %p43
        %p227 = pneg %p40
        %p228 = pneg %p64
        %p229 = pneg %p61
        %p230 = pneg %p85
        %p231 = pneg %p82
        %p232 = pneg %p106
        %p233 = pneg %p103
        %p234 = pneg %p127
        %p235 = pneg %p124
        %p236 = pneg %p153
        %p237 = pneg %p150
        %s238 = sand.u32 %s140, 1
        %s239 = scalar_lea.sflag [#allocation6], %s238
        %s240 = sand.u32 %s140, 1
        %s241 = smul.addr %s240, 256
        %s242 = scalar_lea.vmem [#allocation7], %s241
        %vm244 = vcmask 523264
        %245 = vst.msk [vmem:[#allocation2] sm:$0xff] %vm244, 0.0
        %246 = vst.msk [vmem:[#allocation2 + $0x8] sm:$0xff] %vm244, 0.0
        %vm247 = vcmask 517120
        %248 = vst.msk [vmem:[#allocation2 + $0x10] sm:$0x3] %vm247, 0.0
        %s249 = scalar_lea.vmem [#allocation2], 408
        %250 = vst.msk [vmem:[%s249] sm:$0xff] %vm244, 0.0
        %251 = vst.msk [vmem:[%s249 + $0x8] sm:$0xff] %vm244, 0.0
        %252 = vst.msk [vmem:[%s249 + $0x10] sm:$0x3] %vm247, 0.0
        %vm253 = vcmask 516096
        %254 = vst.msk [vmem:[#allocation2] sm:$0x1] %vm253, 0.0
        %255 = vst.msk [vmem:[#allocation2 + $0x18] sm:$0x1] %vm253, 0.0
        %256 = vst.msk [vmem:[#allocation2 + $0x30] sm:$0x1] %vm253, 0.0
        %257 = vst.msk [vmem:[#allocation2 + $0x48] sm:$0x1] %vm253, 0.0
        %258 = vst.msk [vmem:[#allocation2 + $0x60] sm:$0x1] %vm253, 0.0
        %259 = vst.msk [vmem:[#allocation2 + $0x78] sm:$0x1] %vm253, 0.0
        %260 = vst.msk [vmem:[#allocation2 + $0x90] sm:$0x1] %vm253, 0.0
        %261 = vst.msk [vmem:[#allocation2 + $0xa8] sm:$0x1] %vm253, 0.0
        %262 = vst.msk [vmem:[#allocation2 + $0xc0] sm:$0x1] %vm253, 0.0
        %263 = vst.msk [vmem:[#allocation2 + $0xd8] sm:$0x1] %vm253, 0.0
        %264 = vst.msk [vmem:[#allocation2 + $0xf0] sm:$0x1] %vm253, 0.0
        %265 = vst.msk [vmem:[#allocation2 + $0x108] sm:$0x1] %vm253, 0.0
        %266 = vst.msk [vmem:[#allocation2 + $0x120] sm:$0x1] %vm253, 0.0
        %267 = vst.msk [vmem:[#allocation2 + $0x138] sm:$0x1] %vm253, 0.0
        %268 = vst.msk [vmem:[#allocation2 + $0x150] sm:$0x1] %vm253, 0.0
        %269 = vst.msk [vmem:[#allocation2 + $0x168] sm:$0x1] %vm253, 0.0
        %270 = vst.msk [vmem:[#allocation2 + $0x180] sm:$0x1] %vm253, 0.0
        %271 = vst.msk [vmem:[#allocation2 + $0x198] sm:$0x1] %vm253, 0.0
        %272 = vst.msk [vmem:[#allocation2 + $0x11] sm:$0x1] %vm253, 0.0
        %273 = vst.msk [vmem:[#allocation2 + $0x29] sm:$0x1] %vm253, 0.0
        %274 = vst.msk [vmem:[#allocation2 + $0x41] sm:$0x1] %vm253, 0.0
        %275 = vst.msk [vmem:[#allocation2 + $0x59] sm:$0x1] %vm253, 0.0
        %276 = vst.msk [vmem:[#allocation2 + $0x71] sm:$0x1] %vm253, 0.0
        %277 = vst.msk [vmem:[#allocation2 + $0x89] sm:$0x1] %vm253, 0.0
        %278 = vst.msk [vmem:[#allocation2 + $0xa1] sm:$0x1] %vm253, 0.0
        %279 = vst.msk [vmem:[#allocation2 + $0xb9] sm:$0x1] %vm253, 0.0
        %280 = vst.msk [vmem:[#allocation2 + $0xd1] sm:$0x1] %vm253, 0.0
        %281 = vst.msk [vmem:[#allocation2 + $0xe9] sm:$0x1] %vm253, 0.0
        %282 = vst.msk [vmem:[#allocation2 + $0x101] sm:$0x1] %vm253, 0.0
        %283 = vst.msk [vmem:[#allocation2 + $0x119] sm:$0x1] %vm253, 0.0
        %284 = vst.msk [vmem:[#allocation2 + $0x131] sm:$0x1] %vm253, 0.0
        %285 = vst.msk [vmem:[#allocation2 + $0x149] sm:$0x1] %vm253, 0.0
        %286 = vst.msk [vmem:[#allocation2 + $0x161] sm:$0x1] %vm253, 0.0
        %287 = vst.msk [vmem:[#allocation2 + $0x179] sm:$0x1] %vm253, 0.0
        %288 = vst.msk [vmem:[#allocation2 + $0x191] sm:$0x1] %vm253, 0.0
        %289 = vst.msk [vmem:[#allocation2 + $0x1a9] sm:$0x1] %vm253, 0.0
        %v290 = vld [vmem:[%s216] sm:$0xff]
        %v291 = vld [vmem:[%s216 + $0x8] sm:$0xff]
        %v292 = vld [vmem:[%s216 + $0x10] sm:$0xff]
        %v293 = vld [vmem:[%s216 + $0x18] sm:$0xff]
        %v294 = vld [vmem:[%s216 + $0x20] sm:$0xff]
        %v295 = vld [vmem:[%s216 + $0x28] sm:$0xff]
        %v296 = vld [vmem:[%s216 + $0x30] sm:$0xff]
        %v297 = vld [vmem:[%s216 + $0x38] sm:$0xff]
        %v298 = vld [vmem:[%s216 + $0x40] sm:$0xff]
        %v299 = vld [vmem:[%s216 + $0x48] sm:$0xff]
        %v300 = vld [vmem:[%s216 + $0x50] sm:$0xff]
        %v301 = vld [vmem:[%s216 + $0x58] sm:$0xff]
        %v302 = vld [vmem:[%s216 + $0x60] sm:$0xff]
        %v303 = vld [vmem:[%s216 + $0x68] sm:$0xff]
        %v304 = vld [vmem:[%s216 + $0x70] sm:$0xff]
        %v305 = vld [vmem:[%s216 + $0x78] sm:$0xff]
        %v306 = vld [vmem:[%s216 + $0x80] sm:$0xff]
        %v307 = vld [vmem:[%s216 + $0x88] sm:$0xff]
        %v308 = vld [vmem:[%s216 + $0x90] sm:$0xff]
        %v309 = vld [vmem:[%s216 + $0x98] sm:$0xff]
        %v310 = vld [vmem:[%s216 + $0xa0] sm:$0xff]
        %v311 = vld [vmem:[%s216 + $0xa8] sm:$0xff]
        %v312 = vld [vmem:[%s216 + $0xb0] sm:$0xff]
        %v313 = vld [vmem:[%s216 + $0xb8] sm:$0xff]
        %v314 = vld [vmem:[%s216 + $0xc0] sm:$0xff]
        %v315 = vld [vmem:[%s216 + $0xc8] sm:$0xff]
        %v316 = vld [vmem:[%s216 + $0xd0] sm:$0xff]
        %v317 = vld [vmem:[%s216 + $0xd8] sm:$0xff]
        %v318 = vld [vmem:[%s216 + $0xe0] sm:$0xff]
        %v319 = vld [vmem:[%s216 + $0xe8] sm:$0xff]
        %v320 = vld [vmem:[%s216 + $0xf0] sm:$0xff]
        %v321 = vld [vmem:[%s216 + $0xf8] sm:$0xff]
        %s322 = scalar_lea.vmem [#allocation2], 24
        %323 = vst.msk [vmem:[%s322 + $0x1] sm:$0xff] %vm244, %v290
        %324 = vst.msk [vmem:[%s322 + $0x9] sm:$0xff] %vm244, %v291
        %325 = vst.msk [vmem:[%s322 + $0x19] sm:$0xff] %vm244, %v292
        %326 = vst.msk [vmem:[%s322 + $0x21] sm:$0xff] %vm244, %v293
        %327 = vst.msk [vmem:[%s322 + $0x31] sm:$0xff] %vm244, %v294
        %328 = vst.msk [vmem:[%s322 + $0x39] sm:$0xff] %vm244, %v295
        %329 = vst.msk [vmem:[%s322 + $0x49] sm:$0xff] %vm244, %v296
        %330 = vst.msk [vmem:[%s322 + $0x51] sm:$0xff] %vm244, %v297
        %331 = vst.msk [vmem:[%s322 + $0x61] sm:$0xff] %vm244, %v298
        %332 = vst.msk [vmem:[%s322 + $0x69] sm:$0xff] %vm244, %v299
        %333 = vst.msk [vmem:[%s322 + $0x79] sm:$0xff] %vm244, %v300
        %334 = vst.msk [vmem:[%s322 + $0x81] sm:$0xff] %vm244, %v301
        %335 = vst.msk [vmem:[%s322 + $0x91] sm:$0xff] %vm244, %v302
        %336 = vst.msk [vmem:[%s322 + $0x99] sm:$0xff] %vm244, %v303
        %337 = vst.msk [vmem:[%s322 + $0xa9] sm:$0xff] %vm244, %v304
        %338 = vst.msk [vmem:[%s322 + $0xb1] sm:$0xff] %vm244, %v305
        %339 = vst.msk [vmem:[%s322 + $0xc1] sm:$0xff] %vm244, %v306
        %340 = vst.msk [vmem:[%s322 + $0xc9] sm:$0xff] %vm244, %v307
        %341 = vst.msk [vmem:[%s322 + $0xd9] sm:$0xff] %vm244, %v308
        %342 = vst.msk [vmem:[%s322 + $0xe1] sm:$0xff] %vm244, %v309
        %343 = vst.msk [vmem:[%s322 + $0xf1] sm:$0xff] %vm244, %v310
        %344 = vst.msk [vmem:[%s322 + $0xf9] sm:$0xff] %vm244, %v311
        %345 = vst.msk [vmem:[%s322 + $0x109] sm:$0xff] %vm244, %v312
        %346 = vst.msk [vmem:[%s322 + $0x111] sm:$0xff] %vm244, %v313
        %347 = vst.msk [vmem:[%s322 + $0x121] sm:$0xff] %vm244, %v314
        %348 = vst.msk [vmem:[%s322 + $0x129] sm:$0xff] %vm244, %v315
        %349 = vst.msk [vmem:[%s322 + $0x139] sm:$0xff] %vm244, %v316
        %350 = vst.msk [vmem:[%s322 + $0x141] sm:$0xff] %vm244, %v317
        %351 = vst.msk [vmem:[%s322 + $0x151] sm:$0xff] %vm244, %v318
        %352 = vst.msk [vmem:[%s322 + $0x159] sm:$0xff] %vm244, %v319
        %353 = vst.msk [vmem:[%s322 + $0x169] sm:$0xff] %vm244, %v320
        %354 = vst.msk [vmem:[%s322 + $0x171] sm:$0xff] %vm244, %v321
        %v355 = vld [vmem:[#allocation2] sm:$0xff]
        %v356 = vld [vmem:[#allocation2 + $0x8] sm:$0xff]
        %v357 = vld [vmem:[#allocation2 + $0x18] sm:$0xff]
        %v358 = vld [vmem:[#allocation2 + $0x20] sm:$0xff]
        %v359 = vld [vmem:[#allocation2 + $0x30] sm:$0xff]
        %v360 = vld [vmem:[#allocation2 + $0x38] sm:$0xff]
        %v361 = vld [vmem:[#allocation2 + $0x48] sm:$0xff]
        %v362 = vld [vmem:[#allocation2 + $0x50] sm:$0xff]
        %v363 = vld [vmem:[#allocation2 + $0x60] sm:$0xff]
        %v364 = vld [vmem:[#allocation2 + $0x68] sm:$0xff]
        %v365 = vld [vmem:[#allocation2 + $0x78] sm:$0xff]
        %v366 = vld [vmem:[#allocation2 + $0x80] sm:$0xff]
        %v367 = vld [vmem:[#allocation2 + $0x90] sm:$0xff]
        %v368 = vld [vmem:[#allocation2 + $0x98] sm:$0xff]
        %v369 = vld [vmem:[#allocation2 + $0xa8] sm:$0xff]
        %v370 = vld [vmem:[#allocation2 + $0xb0] sm:$0xff]
        %v371 = vld [vmem:[#allocation2 + $0xc0] sm:$0xff]
        %v372 = vld [vmem:[#allocation2 + $0xc8] sm:$0xff]
        %v373 = vld [vmem:[#allocation2 + $0xd8] sm:$0xff]
        %v374 = vld [vmem:[#allocation2 + $0xe0] sm:$0xff]
        %v375 = vld [vmem:[#allocation2 + $0xf0] sm:$0xff]
        %v376 = vld [vmem:[#allocation2 + $0xf8] sm:$0xff]
        %v377 = vld [vmem:[#allocation2 + $0x108] sm:$0xff]
        %v378 = vld [vmem:[#allocation2 + $0x110] sm:$0xff]
        %v379 = vld [vmem:[#allocation2 + $0x120] sm:$0xff]
        %v380 = vld [vmem:[#allocation2 + $0x128] sm:$0xff]
        %v381 = vld [vmem:[#allocation2 + $0x138] sm:$0xff]
        %v382 = vld [vmem:[#allocation2 + $0x140] sm:$0xff]
        %v383 = vld [vmem:[#allocation2 + $0x150] sm:$0xff]
        %v384 = vld [vmem:[#allocation2 + $0x158] sm:$0xff]
        %v385 = vld [vmem:[#allocation2 + $0x168] sm:$0xff]
        %v386 = vld [vmem:[#allocation2 + $0x170] sm:$0xff]
        %v387 = vpack.c.bf16 %v356, %v355
        %v388 = vpack.c.bf16 %v358, %v357
        %v389 = vpack.c.bf16 %v360, %v359
        %v390 = vpack.c.bf16 %v362, %v361
        %v391 = vpack.c.bf16 %v364, %v363
        %v392 = vpack.c.bf16 %v366, %v365
        %v393 = vpack.c.bf16 %v368, %v367
        %v394 = vpack.c.bf16 %v370, %v369
        %v395 = vpack.c.bf16 %v372, %v371
        %v396 = vpack.c.bf16 %v374, %v373
        %v397 = vpack.c.bf16 %v376, %v375
        %v398 = vpack.c.bf16 %v378, %v377
        %v399 = vpack.c.bf16 %v380, %v379
        %v400 = vpack.c.bf16 %v382, %v381
        %v401 = vpack.c.bf16 %v384, %v383
        %v402 = vpack.c.bf16 %v386, %v385
        %403 = vst.msk [vmem:[#allocation3] sm:$0xff] %vm244, %v387
        %404 = vst.msk [vmem:[#allocation3 + $0x28] sm:$0xff] %vm244, %v388
        %405 = vst.msk [vmem:[#allocation3 + $0x50] sm:$0xff] %vm244, %v389
        %406 = vst.msk [vmem:[#allocation3 + $0x78] sm:$0xff] %vm244, %v390
        %407 = vst.msk [vmem:[#allocation3 + $0xa0] sm:$0xff] %vm244, %v391
        %408 = vst.msk [vmem:[#allocation3 + $0xc8] sm:$0xff] %vm244, %v392
        %409 = vst.msk [vmem:[#allocation3 + $0xf0] sm:$0xff] %vm244, %v393
        %410 = vst.msk [vmem:[#allocation3 + $0x118] sm:$0xff] %vm244, %v394
        %411 = vst.msk [vmem:[#allocation3 + $0x140] sm:$0xff] %vm244, %v395
        %412 = vst.msk [vmem:[#allocation3 + $0x168] sm:$0xff] %vm244, %v396
        %413 = vst.msk [vmem:[#allocation3 + $0x190] sm:$0xff] %vm244, %v397
        %414 = vst.msk [vmem:[#allocation3 + $0x1b8] sm:$0xff] %vm244, %v398
        %415 = vst.msk [vmem:[#allocation3 + $0x1e0] sm:$0xff] %vm244, %v399
        %416 = vst.msk [vmem:[#allocation3 + $0x208] sm:$0xff] %vm244, %v400
        %417 = vst.msk [vmem:[#allocation3 + $0x230] sm:$0xff] %vm244, %v401
        %418 = vst.msk [vmem:[#allocation3 + $0x258] sm:$0xff] %vm244, %v402
        %v419 = vld [vmem:[#allocation2 + $0x1] sm:$0xff]
        %v420 = vld [vmem:[#allocation2 + $0x9] sm:$0xff]
        %v421 = vld [vmem:[#allocation2 + $0x19] sm:$0xff]
        %v422 = vld [vmem:[#allocation2 + $0x21] sm:$0xff]
        %v423 = vld [vmem:[#allocation2 + $0x31] sm:$0xff]
        %v424 = vld [vmem:[#allocation2 + $0x39] sm:$0xff]
        %v425 = vld [vmem:[#allocation2 + $0x49] sm:$0xff]
        %v426 = vld [vmem:[#allocation2 + $0x51] sm:$0xff]
        %v427 = vld [vmem:[#allocation2 + $0x61] sm:$0xff]
        %v428 = vld [vmem:[#allocation2 + $0x69] sm:$0xff]
        %v429 = vld [vmem:[#allocation2 + $0x79] sm:$0xff]
        %v430 = vld [vmem:[#allocation2 + $0x81] sm:$0xff]
        %v431 = vld [vmem:[#allocation2 + $0x91] sm:$0xff]
        %v432 = vld [vmem:[#allocation2 + $0x99] sm:$0xff]
        %v433 = vld [vmem:[#allocation2 + $0xa9] sm:$0xff]
        %v434 = vld [vmem:[#allocation2 + $0xb1] sm:$0xff]
        %v435 = vld [vmem:[#allocation2 + $0xc1] sm:$0xff]
        %v436 = vld [vmem:[#allocation2 + $0xc9] sm:$0xff]
        %v437 = vld [vmem:[#allocation2 + $0xd9] sm:$0xff]
        %v438 = vld [vmem:[#allocation2 + $0xe1] sm:$0xff]
        %v439 = vld [vmem:[#allocation2 + $0xf1] sm:$0xff]
        %v440 = vld [vmem:[#allocation2 + $0xf9] sm:$0xff]
        %v441 = vld [vmem:[#allocation2 + $0x109] sm:$0xff]
        %v442 = vld [vmem:[#allocation2 + $0x111] sm:$0xff]
        %v443 = vld [vmem:[#allocation2 + $0x121] sm:$0xff]
        %v444 = vld [vmem:[#allocation2 + $0x129] sm:$0xff]
        %v445 = vld [vmem:[#allocation2 + $0x139] sm:$0xff]
        %v446 = vld [vmem:[#allocation2 + $0x141] sm:$0xff]
        %v447 = vld [vmem:[#allocation2 + $0x151] sm:$0xff]
        %v448 = vld [vmem:[#allocation2 + $0x159] sm:$0xff]
        %v449 = vld [vmem:[#allocation2 + $0x169] sm:$0xff]
        %v450 = vld [vmem:[#allocation2 + $0x171] sm:$0xff]
        %v451 = vpack.c.bf16 %v420, %v419
        %v452 = vpack.c.bf16 %v422, %v421
        %v453 = vpack.c.bf16 %v424, %v423
        %v454 = vpack.c.bf16 %v426, %v425
        %v455 = vpack.c.bf16 %v428, %v427
        %v456 = vpack.c.bf16 %v430, %v429
        %v457 = vpack.c.bf16 %v432, %v431
        %v458 = vpack.c.bf16 %v434, %v433
        %v459 = vpack.c.bf16 %v436, %v435
        %v460 = vpack.c.bf16 %v438, %v437
        %v461 = vpack.c.bf16 %v440, %v439
        %v462 = vpack.c.bf16 %v442, %v441
        %v463 = vpack.c.bf16 %v444, %v443
        %v464 = vpack.c.bf16 %v446, %v445
        %v465 = vpack.c.bf16 %v448, %v447
        %v466 = vpack.c.bf16 %v450, %v449
        %483 = vrot.lane.b32.xlu0 %v451, 64
        %v484 = vpop.permute.xlu0 %483
        %485 = vrot.lane.b32.xlu0 %v452, 64
        %v486 = vpop.permute.xlu0 %485
        %487 = vrot.lane.b32.xlu0 %v453, 64
        %v488 = vpop.permute.xlu0 %487
        %489 = vrot.lane.b32.xlu0 %v454, 64
        %v490 = vpop.permute.xlu0 %489
        %491 = vrot.lane.b32.xlu0 %v455, 64
        %v492 = vpop.permute.xlu0 %491
        %493 = vrot.lane.b32.xlu0 %v456, 64
        %v494 = vpop.permute.xlu0 %493
        %495 = vrot.lane.b32.xlu0 %v457, 64
        %v496 = vpop.permute.xlu0 %495
        %497 = vrot.lane.b32.xlu0 %v458, 64
        %v498 = vpop.permute.xlu0 %497
        %499 = vrot.lane.b32.xlu0 %v459, 64
        %v500 = vpop.permute.xlu0 %499
        %501 = vrot.lane.b32.xlu0 %v460, 64
        %v502 = vpop.permute.xlu0 %501
        %503 = vrot.lane.b32.xlu0 %v461, 64
        %v504 = vpop.permute.xlu0 %503
        %505 = vrot.lane.b32.xlu0 %v462, 64
        %v506 = vpop.permute.xlu0 %505
        %507 = vrot.lane.b32.xlu0 %v463, 64
        %v508 = vpop.permute.xlu0 %507
        %509 = vrot.lane.b32.xlu0 %v464, 64
        %v510 = vpop.permute.xlu0 %509
        %511 = vrot.lane.b32.xlu0 %v465, 64
        %v512 = vpop.permute.xlu0 %511
        %513 = vrot.lane.b32.xlu0 %v466, 64
        %v514 = vpop.permute.xlu0 %513
        %vm531 = vcmask 1048064
        %532 = vst.msk [vmem:[#allocation3] sm:$0xff] %vm531, %v484
        %533 = vst.msk [vmem:[#allocation3 + $0x28] sm:$0xff] %vm531, %v486
        %534 = vst.msk [vmem:[#allocation3 + $0x50] sm:$0xff] %vm531, %v488
        %535 = vst.msk [vmem:[#allocation3 + $0x78] sm:$0xff] %vm531, %v490
        %536 = vst.msk [vmem:[#allocation3 + $0xa0] sm:$0xff] %vm531, %v492
        %537 = vst.msk [vmem:[#allocation3 + $0xc8] sm:$0xff] %vm531, %v494
        %538 = vst.msk [vmem:[#allocation3 + $0xf0] sm:$0xff] %vm531, %v496
        %539 = vst.msk [vmem:[#allocation3 + $0x118] sm:$0xff] %vm531, %v498
        %540 = vst.msk [vmem:[#allocation3 + $0x140] sm:$0xff] %vm531, %v500
        %541 = vst.msk [vmem:[#allocation3 + $0x168] sm:$0xff] %vm531, %v502
        %542 = vst.msk [vmem:[#allocation3 + $0x190] sm:$0xff] %vm531, %v504
        %543 = vst.msk [vmem:[#allocation3 + $0x1b8] sm:$0xff] %vm531, %v506
        %544 = vst.msk [vmem:[#allocation3 + $0x1e0] sm:$0xff] %vm531, %v508
        %545 = vst.msk [vmem:[#allocation3 + $0x208] sm:$0xff] %vm531, %v510
        %546 = vst.msk [vmem:[#allocation3 + $0x230] sm:$0xff] %vm531, %v512
        %547 = vst.msk [vmem:[#allocation3 + $0x258] sm:$0xff] %vm531, %v514
        %v548 = vld [vmem:[#allocation2 + $0x2] sm:$0xff]
        %v549 = vld [vmem:[#allocation2 + $0xa] sm:$0xff]
        %v550 = vld [vmem:[#allocation2 + $0x1a] sm:$0xff]
        %v551 = vld [vmem:[#allocation2 + $0x22] sm:$0xff]
        %v552 = vld [vmem:[#allocation2 + $0x32] sm:$0xff]
        %v553 = vld [vmem:[#allocation2 + $0x3a] sm:$0xff]
        %v554 = vld [vmem:[#allocation2 + $0x4a] sm:$0xff]
        %v555 = vld [vmem:[#allocation2 + $0x52] sm:$0xff]
        %v556 = vld [vmem:[#allocation2 + $0x62] sm:$0xff]
        %v557 = vld [vmem:[#allocation2 + $0x6a] sm:$0xff]
        %v558 = vld [vmem:[#allocation2 + $0x7a] sm:$0xff]
        %v559 = vld [vmem:[#allocation2 + $0x82] sm:$0xff]
        %v560 = vld [vmem:[#allocation2 + $0x92] sm:$0xff]
        %v561 = vld [vmem:[#allocation2 + $0x9a] sm:$0xff]
        %v562 = vld [vmem:[#allocation2 + $0xaa] sm:$0xff]
        %v563 = vld [vmem:[#allocation2 + $0xb2] sm:$0xff]
        %v564 = vld [vmem:[#allocation2 + $0xc2] sm:$0xff]
        %v565 = vld [vmem:[#allocation2 + $0xca] sm:$0xff]
        %v566 = vld [vmem:[#allocation2 + $0xda] sm:$0xff]
        %v567 = vld [vmem:[#allocation2 + $0xe2] sm:$0xff]
        %v568 = vld [vmem:[#allocation2 + $0xf2] sm:$0xff]
        %v569 = vld [vmem:[#allocation2 + $0xfa] sm:$0xff]
        %v570 = vld [vmem:[#allocation2 + $0x10a] sm:$0xff]
        %v571 = vld [vmem:[#allocation2 + $0x112] sm:$0xff]
        %v572 = vld [vmem:[#allocation2 + $0x122] sm:$0xff]
        %v573 = vld [vmem:[#allocation2 + $0x12a] sm:$0xff]
        %v574 = vld [vmem:[#allocation2 + $0x13a] sm:$0xff]
        %v575 = vld [vmem:[#allocation2 + $0x142] sm:$0xff]
        %v576 = vld [vmem:[#allocation2 + $0x152] sm:$0xff]
        %v577 = vld [vmem:[#allocation2 + $0x15a] sm:$0xff]
        %v578 = vld [vmem:[#allocation2 + $0x16a] sm:$0xff]
        %v579 = vld [vmem:[#allocation2 + $0x172] sm:$0xff]
        %v580 = vpack.c.bf16 %v549, %v548
        %v581 = vpack.c.bf16 %v551, %v550
        %v582 = vpack.c.bf16 %v553, %v552
        %v583 = vpack.c.bf16 %v555, %v554
        %v584 = vpack.c.bf16 %v557, %v556
        %v585 = vpack.c.bf16 %v559, %v558
        %v586 = vpack.c.bf16 %v561, %v560
        %v587 = vpack.c.bf16 %v563, %v562
        %v588 = vpack.c.bf16 %v565, %v564
        %v589 = vpack.c.bf16 %v567, %v566
        %v590 = vpack.c.bf16 %v569, %v568
        %v591 = vpack.c.bf16 %v571, %v570
        %v592 = vpack.c.bf16 %v573, %v572
        %v593 = vpack.c.bf16 %v575, %v574
        %v594 = vpack.c.bf16 %v577, %v576
        %v595 = vpack.c.bf16 %v579, %v578
        %596 = vst.msk [vmem:[#allocation3 + $0x8] sm:$0xff] %vm244, %v580
        %597 = vst.msk [vmem:[#allocation3 + $0x30] sm:$0xff] %vm244, %v581
        %598 = vst.msk [vmem:[#allocation3 + $0x58] sm:$0xff] %vm244, %v582
        %599 = vst.msk [vmem:[#allocation3 + $0x80] sm:$0xff] %vm244, %v583
        %600 = vst.msk [vmem:[#allocation3 + $0xa8] sm:$0xff] %vm244, %v584
        %601 = vst.msk [vmem:[#allocation3 + $0xd0] sm:$0xff] %vm244, %v585
        %602 = vst.msk [vmem:[#allocation3 + $0xf8] sm:$0xff] %vm244, %v586
        %603 = vst.msk [vmem:[#allocation3 + $0x120] sm:$0xff] %vm244, %v587
        %604 = vst.msk [vmem:[#allocation3 + $0x148] sm:$0xff] %vm244, %v588
        %605 = vst.msk [vmem:[#allocation3 + $0x170] sm:$0xff] %vm244, %v589
        %606 = vst.msk [vmem:[#allocation3 + $0x198] sm:$0xff] %vm244, %v590
        %607 = vst.msk [vmem:[#allocation3 + $0x1c0] sm:$0xff] %vm244, %v591
        %608 = vst.msk [vmem:[#allocation3 + $0x1e8] sm:$0xff] %vm244, %v592
        %609 = vst.msk [vmem:[#allocation3 + $0x210] sm:$0xff] %vm244, %v593
        %610 = vst.msk [vmem:[#allocation3 + $0x238] sm:$0xff] %vm244, %v594
        %611 = vst.msk [vmem:[#allocation3 + $0x260] sm:$0xff] %vm244, %v595
        %v612 = vld [vmem:[%s322] sm:$0xff]
        %v613 = vld [vmem:[%s322 + $0x8] sm:$0xff]
        %v614 = vld [vmem:[%s322 + $0x18] sm:$0xff]
        %v615 = vld [vmem:[%s322 + $0x20] sm:$0xff]
        %v616 = vld [vmem:[%s322 + $0x30] sm:$0xff]
        %v617 = vld [vmem:[%s322 + $0x38] sm:$0xff]
        %v618 = vld [vmem:[%s322 + $0x48] sm:$0xff]
        %v619 = vld [vmem:[%s322 + $0x50] sm:$0xff]
        %v620 = vld [vmem:[%s322 + $0x60] sm:$0xff]
        %v621 = vld [vmem:[%s322 + $0x68] sm:$0xff]
        %v622 = vld [vmem:[%s322 + $0x78] sm:$0xff]
        %v623 = vld [vmem:[%s322 + $0x80] sm:$0xff]
        %v624 = vld [vmem:[%s322 + $0x90] sm:$0xff]
        %v625 = vld [vmem:[%s322 + $0x98] sm:$0xff]
        %v626 = vld [vmem:[%s322 + $0xa8] sm:$0xff]
        %v627 = vld [vmem:[%s322 + $0xb0] sm:$0xff]
        %v628 = vld [vmem:[%s322 + $0xc0] sm:$0xff]
        %v629 = vld [vmem:[%s322 + $0xc8] sm:$0xff]
        %v630 = vld [vmem:[%s322 + $0xd8] sm:$0xff]
        %v631 = vld [vmem:[%s322 + $0xe0] sm:$0xff]
        %v632 = vld [vmem:[%s322 + $0xf0] sm:$0xff]
        %v633 = vld [vmem:[%s322 + $0xf8] sm:$0xff]
        %v634 = vld [vmem:[%s322 + $0x108] sm:$0xff]
        %v635 = vld [vmem:[%s322 + $0x110] sm:$0xff]
        %v636 = vld [vmem:[%s322 + $0x120] sm:$0xff]
        %v637 = vld [vmem:[%s322 + $0x128] sm:$0xff]
        %v638 = vld [vmem:[%s322 + $0x138] sm:$0xff]
        %v639 = vld [vmem:[%s322 + $0x140] sm:$0xff]
        %v640 = vld [vmem:[%s322 + $0x150] sm:$0xff]
        %v641 = vld [vmem:[%s322 + $0x158] sm:$0xff]
        %v642 = vld [vmem:[%s322 + $0x168] sm:$0xff]
        %v643 = vld [vmem:[%s322 + $0x170] sm:$0xff]
        %v644 = vpack.c.bf16 %v613, %v612
        %v645 = vpack.c.bf16 %v615, %v614
        %v646 = vpack.c.bf16 %v617, %v616
        %v647 = vpack.c.bf16 %v619, %v618
        %v648 = vpack.c.bf16 %v621, %v620
        %v649 = vpack.c.bf16 %v623, %v622
        %v650 = vpack.c.bf16 %v625, %v624
        %v651 = vpack.c.bf16 %v627, %v626
        %v652 = vpack.c.bf16 %v629, %v628
        %v653 = vpack.c.bf16 %v631, %v630
        %v654 = vpack.c.bf16 %v633, %v632
        %v655 = vpack.c.bf16 %v635, %v634
        %v656 = vpack.c.bf16 %v637, %v636
        %v657 = vpack.c.bf16 %v639, %v638
        %v658 = vpack.c.bf16 %v641, %v640
        %v659 = vpack.c.bf16 %v643, %v642
        %676 = vrot.lane.b32.xlu0 %v644, 64
        %v677 = vpop.permute.xlu0 %676
        %678 = vrot.lane.b32.xlu0 %v645, 64
        %v679 = vpop.permute.xlu0 %678
        %680 = vrot.lane.b32.xlu0 %v646, 64
        %v681 = vpop.permute.xlu0 %680
        %682 = vrot.lane.b32.xlu0 %v647, 64
        %v683 = vpop.permute.xlu0 %682
        %684 = vrot.lane.b32.xlu0 %v648, 64
        %v685 = vpop.permute.xlu0 %684
        %686 = vrot.lane.b32.xlu0 %v649, 64
        %v687 = vpop.permute.xlu0 %686
        %688 = vrot.lane.b32.xlu0 %v650, 64
        %v689 = vpop.permute.xlu0 %688
        %690 = vrot.lane.b32.xlu0 %v651, 64
        %v691 = vpop.permute.xlu0 %690
        %692 = vrot.lane.b32.xlu0 %v652, 64
        %v693 = vpop.permute.xlu0 %692
        %694 = vrot.lane.b32.xlu0 %v653, 64
        %v695 = vpop.permute.xlu0 %694
        %696 = vrot.lane.b32.xlu0 %v654, 64
        %v697 = vpop.permute.xlu0 %696
        %698 = vrot.lane.b32.xlu0 %v655, 64
        %v699 = vpop.permute.xlu0 %698
        %700 = vrot.lane.b32.xlu0 %v656, 64
        %v701 = vpop.permute.xlu0 %700
        %702 = vrot.lane.b32.xlu0 %v657, 64
        %v703 = vpop.permute.xlu0 %702
        %704 = vrot.lane.b32.xlu0 %v658, 64
        %v705 = vpop.permute.xlu0 %704
        %706 = vrot.lane.b32.xlu0 %v659, 64
        %v707 = vpop.permute.xlu0 %706
        %724 = vst.msk [vmem:[#allocation3 + $0x8] sm:$0xff] %vm531, %v677
        %725 = vst.msk [vmem:[#allocation3 + $0x30] sm:$0xff] %vm531, %v679
        %726 = vst.msk [vmem:[#allocation3 + $0x58] sm:$0xff] %vm531, %v681
        %727 = vst.msk [vmem:[#allocation3 + $0x80] sm:$0xff] %vm531, %v683
        %728 = vst.msk [vmem:[#allocation3 + $0xa8] sm:$0xff] %vm531, %v685
        %729 = vst.msk [vmem:[#allocation3 + $0xd0] sm:$0xff] %vm531, %v687
        %730 = vst.msk [vmem:[#allocation3 + $0xf8] sm:$0xff] %vm531, %v689
        %731 = vst.msk [vmem:[#allocation3 + $0x120] sm:$0xff] %vm531, %v691
        %732 = vst.msk [vmem:[#allocation3 + $0x148] sm:$0xff] %vm531, %v693
        %733 = vst.msk [vmem:[#allocation3 + $0x170] sm:$0xff] %vm531, %v695
        %734 = vst.msk [vmem:[#allocation3 + $0x198] sm:$0xff] %vm531, %v697
        %735 = vst.msk [vmem:[#allocation3 + $0x1c0] sm:$0xff] %vm531, %v699
        %736 = vst.msk [vmem:[#allocation3 + $0x1e8] sm:$0xff] %vm531, %v701
        %737 = vst.msk [vmem:[#allocation3 + $0x210] sm:$0xff] %vm531, %v703
        %738 = vst.msk [vmem:[#allocation3 + $0x238] sm:$0xff] %vm531, %v705
        %739 = vst.msk [vmem:[#allocation3 + $0x260] sm:$0xff] %vm531, %v707
        %v740 = vld [vmem:[%s322 + $0x1] sm:$0xff]
        %v741 = vld [vmem:[%s322 + $0x9] sm:$0xff]
        %v742 = vld [vmem:[%s322 + $0x19] sm:$0xff]
        %v743 = vld [vmem:[%s322 + $0x21] sm:$0xff]
        %v744 = vld [vmem:[%s322 + $0x31] sm:$0xff]
        %v745 = vld [vmem:[%s322 + $0x39] sm:$0xff]
        %v746 = vld [vmem:[%s322 + $0x49] sm:$0xff]
        %v747 = vld [vmem:[%s322 + $0x51] sm:$0xff]
        %v748 = vld [vmem:[%s322 + $0x61] sm:$0xff]
        %v749 = vld [vmem:[%s322 + $0x69] sm:$0xff]
        %v750 = vld [vmem:[%s322 + $0x79] sm:$0xff]
        %v751 = vld [vmem:[%s322 + $0x81] sm:$0xff]
        %v752 = vld [vmem:[%s322 + $0x91] sm:$0xff]
        %v753 = vld [vmem:[%s322 + $0x99] sm:$0xff]
        %v754 = vld [vmem:[%s322 + $0xa9] sm:$0xff]
        %v755 = vld [vmem:[%s322 + $0xb1] sm:$0xff]
        %v756 = vld [vmem:[%s322 + $0xc1] sm:$0xff]
        %v757 = vld [vmem:[%s322 + $0xc9] sm:$0xff]
        %v758 = vld [vmem:[%s322 + $0xd9] sm:$0xff]
        %v759 = vld [vmem:[%s322 + $0xe1] sm:$0xff]
        %v760 = vld [vmem:[%s322 + $0xf1] sm:$0xff]
        %v761 = vld [vmem:[%s322 + $0xf9] sm:$0xff]
        %v762 = vld [vmem:[%s322 + $0x109] sm:$0xff]
        %v763 = vld [vmem:[%s322 + $0x111] sm:$0xff]
        %v764 = vld [vmem:[%s322 + $0x121] sm:$0xff]
        %v765 = vld [vmem:[%s322 + $0x129] sm:$0xff]
        %v766 = vld [vmem:[%s322 + $0x139] sm:$0xff]
        %v767 = vld [vmem:[%s322 + $0x141] sm:$0xff]
        %v768 = vld [vmem:[%s322 + $0x151] sm:$0xff]
        %v769 = vld [vmem:[%s322 + $0x159] sm:$0xff]
        %v770 = vld [vmem:[%s322 + $0x169] sm:$0xff]
        %v771 = vld [vmem:[%s322 + $0x171] sm:$0xff]
        %v772 = vpack.c.bf16 %v741, %v740
        %v773 = vpack.c.bf16 %v743, %v742
        %v774 = vpack.c.bf16 %v745, %v744
        %v775 = vpack.c.bf16 %v747, %v746
        %v776 = vpack.c.bf16 %v749, %v748
        %v777 = vpack.c.bf16 %v751, %v750
        %v778 = vpack.c.bf16 %v753, %v752
        %v779 = vpack.c.bf16 %v755, %v754
        %v780 = vpack.c.bf16 %v757, %v756
        %v781 = vpack.c.bf16 %v759, %v758
        %v782 = vpack.c.bf16 %v761, %v760
        %v783 = vpack.c.bf16 %v763, %v762
        %v784 = vpack.c.bf16 %v765, %v764
        %v785 = vpack.c.bf16 %v767, %v766
        %v786 = vpack.c.bf16 %v769, %v768
        %v787 = vpack.c.bf16 %v771, %v770
        %788 = vst.msk [vmem:[#allocation3 + $0x10] sm:$0xff] %vm244, %v772
        %789 = vst.msk [vmem:[#allocation3 + $0x38] sm:$0xff] %vm244, %v773
        %790 = vst.msk [vmem:[#allocation3 + $0x60] sm:$0xff] %vm244, %v774
        %791 = vst.msk [vmem:[#allocation3 + $0x88] sm:$0xff] %vm244, %v775
        %792 = vst.msk [vmem:[#allocation3 + $0xb0] sm:$0xff] %vm244, %v776
        %793 = vst.msk [vmem:[#allocation3 + $0xd8] sm:$0xff] %vm244, %v777
        %794 = vst.msk [vmem:[#allocation3 + $0x100] sm:$0xff] %vm244, %v778
        %795 = vst.msk [vmem:[#allocation3 + $0x128] sm:$0xff] %vm244, %v779
        %796 = vst.msk [vmem:[#allocation3 + $0x150] sm:$0xff] %vm244, %v780
        %797 = vst.msk [vmem:[#allocation3 + $0x178] sm:$0xff] %vm244, %v781
        %798 = vst.msk [vmem:[#allocation3 + $0x1a0] sm:$0xff] %vm244, %v782
        %799 = vst.msk [vmem:[#allocation3 + $0x1c8] sm:$0xff] %vm244, %v783
        %800 = vst.msk [vmem:[#allocation3 + $0x1f0] sm:$0xff] %vm244, %v784
        %801 = vst.msk [vmem:[#allocation3 + $0x218] sm:$0xff] %vm244, %v785
        %802 = vst.msk [vmem:[#allocation3 + $0x240] sm:$0xff] %vm244, %v786
        %803 = vst.msk [vmem:[#allocation3 + $0x268] sm:$0xff] %vm244, %v787
        %v804 = vld [vmem:[%s322 + $0x2] sm:$0xff]
        %v805 = vld [vmem:[%s322 + $0xa] sm:$0xff]
        %v806 = vld [vmem:[%s322 + $0x1a] sm:$0xff]
        %v807 = vld [vmem:[%s322 + $0x22] sm:$0xff]
        %v808 = vld [vmem:[%s322 + $0x32] sm:$0xff]
        %v809 = vld [vmem:[%s322 + $0x3a] sm:$0xff]
        %v810 = vld [vmem:[%s322 + $0x4a] sm:$0xff]
        %v811 = vld [vmem:[%s322 + $0x52] sm:$0xff]
        %v812 = vld [vmem:[%s322 + $0x62] sm:$0xff]
        %v813 = vld [vmem:[%s322 + $0x6a] sm:$0xff]
        %v814 = vld [vmem:[%s322 + $0x7a] sm:$0xff]
        %v815 = vld [vmem:[%s322 + $0x82] sm:$0xff]
        %v816 = vld [vmem:[%s322 + $0x92] sm:$0xff]
        %v817 = vld [vmem:[%s322 + $0x9a] sm:$0xff]
        %v818 = vld [vmem:[%s322 + $0xaa] sm:$0xff]
        %v819 = vld [vmem:[%s322 + $0xb2] sm:$0xff]
        %v820 = vld [vmem:[%s322 + $0xc2] sm:$0xff]
        %v821 = vld [vmem:[%s322 + $0xca] sm:$0xff]
        %v822 = vld [vmem:[%s322 + $0xda] sm:$0xff]
        %v823 = vld [vmem:[%s322 + $0xe2] sm:$0xff]
        %v824 = vld [vmem:[%s322 + $0xf2] sm:$0xff]
        %v825 = vld [vmem:[%s322 + $0xfa] sm:$0xff]
        %v826 = vld [vmem:[%s322 + $0x10a] sm:$0xff]
        %v827 = vld [vmem:[%s322 + $0x112] sm:$0xff]
        %v828 = vld [vmem:[%s322 + $0x122] sm:$0xff]
        %v829 = vld [vmem:[%s322 + $0x12a] sm:$0xff]
        %v830 = vld [vmem:[%s322 + $0x13a] sm:$0xff]
        %v831 = vld [vmem:[%s322 + $0x142] sm:$0xff]
        %v832 = vld [vmem:[%s322 + $0x152] sm:$0xff]
        %v833 = vld [vmem:[%s322 + $0x15a] sm:$0xff]
        %v834 = vld [vmem:[%s322 + $0x16a] sm:$0xff]
        %v835 = vld [vmem:[%s322 + $0x172] sm:$0xff]
        %v836 = vpack.c.bf16 %v805, %v804
        %v837 = vpack.c.bf16 %v807, %v806
        %v838 = vpack.c.bf16 %v809, %v808
        %v839 = vpack.c.bf16 %v811, %v810
        %v840 = vpack.c.bf16 %v813, %v812
        %v841 = vpack.c.bf16 %v815, %v814
        %v842 = vpack.c.bf16 %v817, %v816
        %v843 = vpack.c.bf16 %v819, %v818
        %v844 = vpack.c.bf16 %v821, %v820
        %v845 = vpack.c.bf16 %v823, %v822
        %v846 = vpack.c.bf16 %v825, %v824
        %v847 = vpack.c.bf16 %v827, %v826
        %v848 = vpack.c.bf16 %v829, %v828
        %v849 = vpack.c.bf16 %v831, %v830
        %v850 = vpack.c.bf16 %v833, %v832
        %v851 = vpack.c.bf16 %v835, %v834
        %868 = vrot.lane.b32.xlu0 %v836, 64
        %v869 = vpop.permute.xlu0 %868
        %870 = vrot.lane.b32.xlu0 %v837, 64
        %v871 = vpop.permute.xlu0 %870
        %872 = vrot.lane.b32.xlu0 %v838, 64
        %v873 = vpop.permute.xlu0 %872
        %874 = vrot.lane.b32.xlu0 %v839, 64
        %v875 = vpop.permute.xlu0 %874
        %876 = vrot.lane.b32.xlu0 %v840, 64
        %v877 = vpop.permute.xlu0 %876
        %878 = vrot.lane.b32.xlu0 %v841, 64
        %v879 = vpop.permute.xlu0 %878
        %880 = vrot.lane.b32.xlu0 %v842, 64
        %v881 = vpop.permute.xlu0 %880
        %882 = vrot.lane.b32.xlu0 %v843, 64
        %v883 = vpop.permute.xlu0 %882
        %884 = vrot.lane.b32.xlu0 %v844, 64
        %v885 = vpop.permute.xlu0 %884
        %886 = vrot.lane.b32.xlu0 %v845, 64
        %v887 = vpop.permute.xlu0 %886
        %888 = vrot.lane.b32.xlu0 %v846, 64
        %v889 = vpop.permute.xlu0 %888
        %890 = vrot.lane.b32.xlu0 %v847, 64
        %v891 = vpop.permute.xlu0 %890
        %892 = vrot.lane.b32.xlu0 %v848, 64
        %v893 = vpop.permute.xlu0 %892
        %894 = vrot.lane.b32.xlu0 %v849, 64
        %v895 = vpop.permute.xlu0 %894
        %896 = vrot.lane.b32.xlu0 %v850, 64
        %v897 = vpop.permute.xlu0 %896
        %898 = vrot.lane.b32.xlu0 %v851, 64
        %v899 = vpop.permute.xlu0 %898
        %916 = vst.msk [vmem:[#allocation3 + $0x10] sm:$0xff] %vm531, %v869
        %917 = vst.msk [vmem:[#allocation3 + $0x38] sm:$0xff] %vm531, %v871
        %918 = vst.msk [vmem:[#allocation3 + $0x60] sm:$0xff] %vm531, %v873
        %919 = vst.msk [vmem:[#allocation3 + $0x88] sm:$0xff] %vm531, %v875
        %920 = vst.msk [vmem:[#allocation3 + $0xb0] sm:$0xff] %vm531, %v877
        %921 = vst.msk [vmem:[#allocation3 + $0xd8] sm:$0xff] %vm531, %v879
        %922 = vst.msk [vmem:[#allocation3 + $0x100] sm:$0xff] %vm531, %v881
        %923 = vst.msk [vmem:[#allocation3 + $0x128] sm:$0xff] %vm531, %v883
        %924 = vst.msk [vmem:[#allocation3 + $0x150] sm:$0xff] %vm531, %v885
        %925 = vst.msk [vmem:[#allocation3 + $0x178] sm:$0xff] %vm531, %v887
        %926 = vst.msk [vmem:[#allocation3 + $0x1a0] sm:$0xff] %vm531, %v889
        %927 = vst.msk [vmem:[#allocation3 + $0x1c8] sm:$0xff] %vm531, %v891
        %928 = vst.msk [vmem:[#allocation3 + $0x1f0] sm:$0xff] %vm531, %v893
        %929 = vst.msk [vmem:[#allocation3 + $0x218] sm:$0xff] %vm531, %v895
        %930 = vst.msk [vmem:[#allocation3 + $0x240] sm:$0xff] %vm531, %v897
        %931 = vst.msk [vmem:[#allocation3 + $0x268] sm:$0xff] %vm531, %v899
        %s932 = scalar_lea.vmem [#allocation2], 48
        %v933 = vld [vmem:[%s932] sm:$0xff]
        %v934 = vld [vmem:[%s932 + $0x8] sm:$0xff]
        %v935 = vld [vmem:[%s932 + $0x18] sm:$0xff]
        %v936 = vld [vmem:[%s932 + $0x20] sm:$0xff]
        %v937 = vld [vmem:[%s932 + $0x30] sm:$0xff]
        %v938 = vld [vmem:[%s932 + $0x38] sm:$0xff]
        %v939 = vld [vmem:[%s932 + $0x48] sm:$0xff]
        %v940 = vld [vmem:[%s932 + $0x50] sm:$0xff]
        %v941 = vld [vmem:[%s932 + $0x60] sm:$0xff]
        %v942 = vld [vmem:[%s932 + $0x68] sm:$0xff]
        %v943 = vld [vmem:[%s932 + $0x78] sm:$0xff]
        %v944 = vld [vmem:[%s932 + $0x80] sm:$0xff]
        %v945 = vld [vmem:[%s932 + $0x90] sm:$0xff]
        %v946 = vld [vmem:[%s932 + $0x98] sm:$0xff]
        %v947 = vld [vmem:[%s932 + $0xa8] sm:$0xff]
        %v948 = vld [vmem:[%s932 + $0xb0] sm:$0xff]
        %v949 = vld [vmem:[%s932 + $0xc0] sm:$0xff]
        %v950 = vld [vmem:[%s932 + $0xc8] sm:$0xff]
        %v951 = vld [vmem:[%s932 + $0xd8] sm:$0xff]
        %v952 = vld [vmem:[%s932 + $0xe0] sm:$0xff]
        %v953 = vld [vmem:[%s932 + $0xf0] sm:$0xff]
        %v954 = vld [vmem:[%s932 + $0xf8] sm:$0xff]
        %v955 = vld [vmem:[%s932 + $0x108] sm:$0xff]
        %v956 = vld [vmem:[%s932 + $0x110] sm:$0xff]
        %v957 = vld [vmem:[%s932 + $0x120] sm:$0xff]
        %v958 = vld [vmem:[%s932 + $0x128] sm:$0xff]
        %v959 = vld [vmem:[%s932 + $0x138] sm:$0xff]
        %v960 = vld [vmem:[%s932 + $0x140] sm:$0xff]
        %v961 = vld [vmem:[%s932 + $0x150] sm:$0xff]
        %v962 = vld [vmem:[%s932 + $0x158] sm:$0xff]
        %v963 = vld [vmem:[%s932 + $0x168] sm:$0xff]
        %v964 = vld [vmem:[%s932 + $0x170] sm:$0xff]
        %v965 = vpack.c.bf16 %v934, %v933
        %v966 = vpack.c.bf16 %v936, %v935
        %v967 = vpack.c.bf16 %v938, %v937
        %v968 = vpack.c.bf16 %v940, %v939
        %v969 = vpack.c.bf16 %v942, %v941
        %v970 = vpack.c.bf16 %v944, %v943
        %v971 = vpack.c.bf16 %v946, %v945
        %v972 = vpack.c.bf16 %v948, %v947
        %v973 = vpack.c.bf16 %v950, %v949
        %v974 = vpack.c.bf16 %v952, %v951
        %v975 = vpack.c.bf16 %v954, %v953
        %v976 = vpack.c.bf16 %v956, %v955
        %v977 = vpack.c.bf16 %v958, %v957
        %v978 = vpack.c.bf16 %v960, %v959
        %v979 = vpack.c.bf16 %v962, %v961
        %v980 = vpack.c.bf16 %v964, %v963
        %981 = vst.msk [vmem:[#allocation3 + $0x18] sm:$0xff] %vm244, %v965
        %982 = vst.msk [vmem:[#allocation3 + $0x40] sm:$0xff] %vm244, %v966
        %983 = vst.msk [vmem:[#allocation3 + $0x68] sm:$0xff] %vm244, %v967
        %984 = vst.msk [vmem:[#allocation3 + $0x90] sm:$0xff] %vm244, %v968
        %985 = vst.msk [vmem:[#allocation3 + $0xb8] sm:$0xff] %vm244, %v969
        %986 = vst.msk [vmem:[#allocation3 + $0xe0] sm:$0xff] %vm244, %v970
        %987 = vst.msk [vmem:[#allocation3 + $0x108] sm:$0xff] %vm244, %v971
        %988 = vst.msk [vmem:[#allocation3 + $0x130] sm:$0xff] %vm244, %v972
        %989 = vst.msk [vmem:[#allocation3 + $0x158] sm:$0xff] %vm244, %v973
        %990 = vst.msk [vmem:[#allocation3 + $0x180] sm:$0xff] %vm244, %v974
        %991 = vst.msk [vmem:[#allocation3 + $0x1a8] sm:$0xff] %vm244, %v975
        %992 = vst.msk [vmem:[#allocation3 + $0x1d0] sm:$0xff] %vm244, %v976
        %993 = vst.msk [vmem:[#allocation3 + $0x1f8] sm:$0xff] %vm244, %v977
        %994 = vst.msk [vmem:[#allocation3 + $0x220] sm:$0xff] %vm244, %v978
        %995 = vst.msk [vmem:[#allocation3 + $0x248] sm:$0xff] %vm244, %v979
        %996 = vst.msk [vmem:[#allocation3 + $0x270] sm:$0xff] %vm244, %v980
        %v997 = vld [vmem:[%s932 + $0x1] sm:$0xff]
        %v998 = vld [vmem:[%s932 + $0x9] sm:$0xff]
        %v999 = vld [vmem:[%s932 + $0x19] sm:$0xff]
        %v1000 = vld [vmem:[%s932 + $0x21] sm:$0xff]
        %v1001 = vld [vmem:[%s932 + $0x31] sm:$0xff]
        %v1002 = vld [vmem:[%s932 + $0x39] sm:$0xff]
        %v1003 = vld [vmem:[%s932 + $0x49] sm:$0xff]
        %v1004 = vld [vmem:[%s932 + $0x51] sm:$0xff]
        %v1005 = vld [vmem:[%s932 + $0x61] sm:$0xff]
        %v1006 = vld [vmem:[%s932 + $0x69] sm:$0xff]
        %v1007 = vld [vmem:[%s932 + $0x79] sm:$0xff]
        %v1008 = vld [vmem:[%s932 + $0x81] sm:$0xff]
        %v1009 = vld [vmem:[%s932 + $0x91] sm:$0xff]
        %v1010 = vld [vmem:[%s932 + $0x99] sm:$0xff]
        %v1011 = vld [vmem:[%s932 + $0xa9] sm:$0xff]
        %v1012 = vld [vmem:[%s932 + $0xb1] sm:$0xff]
        %v1013 = vld [vmem:[%s932 + $0xc1] sm:$0xff]
        %v1014 = vld [vmem:[%s932 + $0xc9] sm:$0xff]
        %v1015 = vld [vmem:[%s932 + $0xd9] sm:$0xff]
        %v1016 = vld [vmem:[%s932 + $0xe1] sm:$0xff]
        %v1017 = vld [vmem:[%s932 + $0xf1] sm:$0xff]
        %v1018 = vld [vmem:[%s932 + $0xf9] sm:$0xff]
        %v1019 = vld [vmem:[%s932 + $0x109] sm:$0xff]
        %v1020 = vld [vmem:[%s932 + $0x111] sm:$0xff]
        %v1021 = vld [vmem:[%s932 + $0x121] sm:$0xff]
        %v1022 = vld [vmem:[%s932 + $0x129] sm:$0xff]
        %v1023 = vld [vmem:[%s932 + $0x139] sm:$0xff]
        %v1024 = vld [vmem:[%s932 + $0x141] sm:$0xff]
        %v1025 = vld [vmem:[%s932 + $0x151] sm:$0xff]
        %v1026 = vld [vmem:[%s932 + $0x159] sm:$0xff]
        %v1027 = vld [vmem:[%s932 + $0x169] sm:$0xff]
        %v1028 = vld [vmem:[%s932 + $0x171] sm:$0xff]
        %v1029 = vpack.c.bf16 %v998, %v997
        %v1030 = vpack.c.bf16 %v1000, %v999
        %v1031 = vpack.c.bf16 %v1002, %v1001
        %v1032 = vpack.c.bf16 %v1004, %v1003
        %v1033 = vpack.c.bf16 %v1006, %v1005
        %v1034 = vpack.c.bf16 %v1008, %v1007
        %v1035 = vpack.c.bf16 %v1010, %v1009
        %v1036 = vpack.c.bf16 %v1012, %v1011
        %v1037 = vpack.c.bf16 %v1014, %v1013
        %v1038 = vpack.c.bf16 %v1016, %v1015
        %v1039 = vpack.c.bf16 %v1018, %v1017
        %v1040 = vpack.c.bf16 %v1020, %v1019
        %v1041 = vpack.c.bf16 %v1022, %v1021
        %v1042 = vpack.c.bf16 %v1024, %v1023
        %v1043 = vpack.c.bf16 %v1026, %v1025
        %v1044 = vpack.c.bf16 %v1028, %v1027
        %1061 = vrot.lane.b32.xlu0 %v1029, 64
        %v1062 = vpop.permute.xlu0 %1061
        %1063 = vrot.lane.b32.xlu0 %v1030, 64
        %v1064 = vpop.permute.xlu0 %1063
        %1065 = vrot.lane.b32.xlu0 %v1031, 64
        %v1066 = vpop.permute.xlu0 %1065
        %1067 = vrot.lane.b32.xlu0 %v1032, 64
        %v1068 = vpop.permute.xlu0 %1067
        %1069 = vrot.lane.b32.xlu0 %v1033, 64
        %v1070 = vpop.permute.xlu0 %1069
        %1071 = vrot.lane.b32.xlu0 %v1034, 64
        %v1072 = vpop.permute.xlu0 %1071
        %1073 = vrot.lane.b32.xlu0 %v1035, 64
        %v1074 = vpop.permute.xlu0 %1073
        %1075 = vrot.lane.b32.xlu0 %v1036, 64
        %v1076 = vpop.permute.xlu0 %1075
        %1077 = vrot.lane.b32.xlu0 %v1037, 64
        %v1078 = vpop.permute.xlu0 %1077
        %1079 = vrot.lane.b32.xlu0 %v1038, 64
        %v1080 = vpop.permute.xlu0 %1079
        %1081 = vrot.lane.b32.xlu0 %v1039, 64
        %v1082 = vpop.permute.xlu0 %1081
        %1083 = vrot.lane.b32.xlu0 %v1040, 64
        %v1084 = vpop.permute.xlu0 %1083
        %1085 = vrot.lane.b32.xlu0 %v1041, 64
        %v1086 = vpop.permute.xlu0 %1085
        %1087 = vrot.lane.b32.xlu0 %v1042, 64
        %v1088 = vpop.permute.xlu0 %1087
        %1089 = vrot.lane.b32.xlu0 %v1043, 64
        %v1090 = vpop.permute.xlu0 %1089
        %1091 = vrot.lane.b32.xlu0 %v1044, 64
        %v1092 = vpop.permute.xlu0 %1091
        %1109 = vst.msk [vmem:[#allocation3 + $0x18] sm:$0xff] %vm531, %v1062
        %1110 = vst.msk [vmem:[#allocation3 + $0x40] sm:$0xff] %vm531, %v1064
        %1111 = vst.msk [vmem:[#allocation3 + $0x68] sm:$0xff] %vm531, %v1066
        %1112 = vst.msk [vmem:[#allocation3 + $0x90] sm:$0xff] %vm531, %v1068
        %1113 = vst.msk [vmem:[#allocation3 + $0xb8] sm:$0xff] %vm531, %v1070
        %1114 = vst.msk [vmem:[#allocation3 + $0xe0] sm:$0xff] %vm531, %v1072
        %1115 = vst.msk [vmem:[#allocation3 + $0x108] sm:$0xff] %vm531, %v1074
        %1116 = vst.msk [vmem:[#allocation3 + $0x130] sm:$0xff] %vm531, %v1076
        %1117 = vst.msk [vmem:[#allocation3 + $0x158] sm:$0xff] %vm531, %v1078
        %1118 = vst.msk [vmem:[#allocation3 + $0x180] sm:$0xff] %vm531, %v1080
        %1119 = vst.msk [vmem:[#allocation3 + $0x1a8] sm:$0xff] %vm531, %v1082
        %1120 = vst.msk [vmem:[#allocation3 + $0x1d0] sm:$0xff] %vm531, %v1084
        %1121 = vst.msk [vmem:[#allocation3 + $0x1f8] sm:$0xff] %vm531, %v1086
        %1122 = vst.msk [vmem:[#allocation3 + $0x220] sm:$0xff] %vm531, %v1088
        %1123 = vst.msk [vmem:[#allocation3 + $0x248] sm:$0xff] %vm531, %v1090
        %1124 = vst.msk [vmem:[#allocation3 + $0x270] sm:$0xff] %vm531, %v1092
        %v1125 = vld [vmem:[%s932 + $0x2] sm:$0xff]
        %v1126 = vld [vmem:[%s932 + $0xa] sm:$0xff]
        %v1127 = vld [vmem:[%s932 + $0x1a] sm:$0xff]
        %v1128 = vld [vmem:[%s932 + $0x22] sm:$0xff]
        %v1129 = vld [vmem:[%s932 + $0x32] sm:$0xff]
        %v1130 = vld [vmem:[%s932 + $0x3a] sm:$0xff]
        %v1131 = vld [vmem:[%s932 + $0x4a] sm:$0xff]
        %v1132 = vld [vmem:[%s932 + $0x52] sm:$0xff]
        %v1133 = vld [vmem:[%s932 + $0x62] sm:$0xff]
        %v1134 = vld [vmem:[%s932 + $0x6a] sm:$0xff]
        %v1135 = vld [vmem:[%s932 + $0x7a] sm:$0xff]
        %v1136 = vld [vmem:[%s932 + $0x82] sm:$0xff]
        %v1137 = vld [vmem:[%s932 + $0x92] sm:$0xff]
        %v1138 = vld [vmem:[%s932 + $0x9a] sm:$0xff]
        %v1139 = vld [vmem:[%s932 + $0xaa] sm:$0xff]
        %v1140 = vld [vmem:[%s932 + $0xb2] sm:$0xff]
        %v1141 = vld [vmem:[%s932 + $0xc2] sm:$0xff]
        %v1142 = vld [vmem:[%s932 + $0xca] sm:$0xff]
        %v1143 = vld [vmem:[%s932 + $0xda] sm:$0xff]
        %v1144 = vld [vmem:[%s932 + $0xe2] sm:$0xff]
        %v1145 = vld [vmem:[%s932 + $0xf2] sm:$0xff]
        %v1146 = vld [vmem:[%s932 + $0xfa] sm:$0xff]
        %v1147 = vld [vmem:[%s932 + $0x10a] sm:$0xff]
        %v1148 = vld [vmem:[%s932 + $0x112] sm:$0xff]
        %v1149 = vld [vmem:[%s932 + $0x122] sm:$0xff]
        %v1150 = vld [vmem:[%s932 + $0x12a] sm:$0xff]
        %v1151 = vld [vmem:[%s932 + $0x13a] sm:$0xff]
        %v1152 = vld [vmem:[%s932 + $0x142] sm:$0xff]
        %v1153 = vld [vmem:[%s932 + $0x152] sm:$0xff]
        %v1154 = vld [vmem:[%s932 + $0x15a] sm:$0xff]
        %v1155 = vld [vmem:[%s932 + $0x16a] sm:$0xff]
        %v1156 = vld [vmem:[%s932 + $0x172] sm:$0xff]
        %v1157 = vpack.c.bf16 %v1126, %v1125
        %v1158 = vpack.c.bf16 %v1128, %v1127
        %v1159 = vpack.c.bf16 %v1130, %v1129
        %v1160 = vpack.c.bf16 %v1132, %v1131
        %v1161 = vpack.c.bf16 %v1134, %v1133
        %v1162 = vpack.c.bf16 %v1136, %v1135
        %v1163 = vpack.c.bf16 %v1138, %v1137
        %v1164 = vpack.c.bf16 %v1140, %v1139
        %v1165 = vpack.c.bf16 %v1142, %v1141
        %v1166 = vpack.c.bf16 %v1144, %v1143
        %v1167 = vpack.c.bf16 %v1146, %v1145
        %v1168 = vpack.c.bf16 %v1148, %v1147
        %v1169 = vpack.c.bf16 %v1150, %v1149
        %v1170 = vpack.c.bf16 %v1152, %v1151
        %v1171 = vpack.c.bf16 %v1154, %v1153
        %v1172 = vpack.c.bf16 %v1156, %v1155
        %1173 = vst.msk [vmem:[#allocation3 + $0x20] sm:$0xff] %vm244, %v1157
        %1174 = vst.msk [vmem:[#allocation3 + $0x48] sm:$0xff] %vm244, %v1158
        %1175 = vst.msk [vmem:[#allocation3 + $0x70] sm:$0xff] %vm244, %v1159
        %1176 = vst.msk [vmem:[#allocation3 + $0x98] sm:$0xff] %vm244, %v1160
        %1177 = vst.msk [vmem:[#allocation3 + $0xc0] sm:$0xff] %vm244, %v1161
        %1178 = vst.msk [vmem:[#allocation3 + $0xe8] sm:$0xff] %vm244, %v1162
        %1179 = vst.msk [vmem:[#allocation3 + $0x110] sm:$0xff] %vm244, %v1163
        %1180 = vst.msk [vmem:[#allocation3 + $0x138] sm:$0xff] %vm244, %v1164
        %1181 = vst.msk [vmem:[#allocation3 + $0x160] sm:$0xff] %vm244, %v1165
        %1182 = vst.msk [vmem:[#allocation3 + $0x188] sm:$0xff] %vm244, %v1166
        %1183 = vst.msk [vmem:[#allocation3 + $0x1b0] sm:$0xff] %vm244, %v1167
        %1184 = vst.msk [vmem:[#allocation3 + $0x1d8] sm:$0xff] %vm244, %v1168
        %1185 = vst.msk [vmem:[#allocation3 + $0x200] sm:$0xff] %vm244, %v1169
        %1186 = vst.msk [vmem:[#allocation3 + $0x228] sm:$0xff] %vm244, %v1170
        %1187 = vst.msk [vmem:[#allocation3 + $0x250] sm:$0xff] %vm244, %v1171
        %1188 = vst.msk [vmem:[#allocation3 + $0x278] sm:$0xff] %vm244, %v1172
        %v1189 = vld [vmem:[#allocation3] sm:$0xff]
        %v1190 = vld [vmem:[#allocation3 + $0x8] sm:$0xff]
        %v1191 = vld [vmem:[#allocation3 + $0x10] sm:$0xff]
        %v1192 = vld [vmem:[#allocation3 + $0x18] sm:$0xff]
        %v1193 = vld [vmem:[#allocation3 + $0x20] sm:$0xff]
        %v1194 = vld [vmem:[#allocation3 + $0x28] sm:$0xff]
        %v1195 = vld [vmem:[#allocation3 + $0x30] sm:$0xff]
        %v1196 = vld [vmem:[#allocation3 + $0x38] sm:$0xff]
        %v1197 = vld [vmem:[#allocation3 + $0x40] sm:$0xff]
        %v1198 = vld [vmem:[#allocation3 + $0x48] sm:$0xff]
        %v1199 = vld [vmem:[#allocation3 + $0x50] sm:$0xff]
        %v1200 = vld [vmem:[#allocation3 + $0x58] sm:$0xff]
        %v1201 = vld [vmem:[#allocation3 + $0x60] sm:$0xff]
        %v1202 = vld [vmem:[#allocation3 + $0x68] sm:$0xff]
        %v1203 = vld [vmem:[#allocation3 + $0x70] sm:$0xff]
        %v1204 = vld [vmem:[#allocation3 + $0x78] sm:$0xff]
        %v1205 = vld [vmem:[#allocation3 + $0x80] sm:$0xff]
        %v1206 = vld [vmem:[#allocation3 + $0x88] sm:$0xff]
        %v1207 = vld [vmem:[#allocation3 + $0x90] sm:$0xff]
        %v1208 = vld [vmem:[#allocation3 + $0x98] sm:$0xff]
        %v1209 = vld [vmem:[#allocation3 + $0xa0] sm:$0xff]
        %v1210 = vld [vmem:[#allocation3 + $0xa8] sm:$0xff]
        %v1211 = vld [vmem:[#allocation3 + $0xb0] sm:$0xff]
        %v1212 = vld [vmem:[#allocation3 + $0xb8] sm:$0xff]
        %v1213 = vld [vmem:[#allocation3 + $0xc0] sm:$0xff]
        %v1214 = vld [vmem:[#allocation3 + $0xc8] sm:$0xff]
        %v1215 = vld [vmem:[#allocation3 + $0xd0] sm:$0xff]
        %v1216 = vld [vmem:[#allocation3 + $0xd8] sm:$0xff]
        %v1217 = vld [vmem:[#allocation3 + $0xe0] sm:$0xff]
        %v1218 = vld [vmem:[#allocation3 + $0xe8] sm:$0xff]
        %v1219 = vld [vmem:[#allocation3 + $0xf0] sm:$0xff]
        %v1220 = vld [vmem:[#allocation3 + $0xf8] sm:$0xff]
        %v1221 = vld [vmem:[#allocation3 + $0x100] sm:$0xff]
        %v1222 = vld [vmem:[#allocation3 + $0x108] sm:$0xff]
        %v1223 = vld [vmem:[#allocation3 + $0x110] sm:$0xff]
        %v1224 = vld [vmem:[#allocation3 + $0x118] sm:$0xff]
        %v1225 = vld [vmem:[#allocation3 + $0x120] sm:$0xff]
        %v1226 = vld [vmem:[#allocation3 + $0x128] sm:$0xff]
        %v1227 = vld [vmem:[#allocation3 + $0x130] sm:$0xff]
        %v1228 = vld [vmem:[#allocation3 + $0x138] sm:$0xff]
        %v1229 = vld [vmem:[#allocation3 + $0x140] sm:$0xff]
        %v1230 = vld [vmem:[#allocation3 + $0x148] sm:$0xff]
        %v1231 = vld [vmem:[#allocation3 + $0x150] sm:$0xff]
        %v1232 = vld [vmem:[#allocation3 + $0x158] sm:$0xff]
        %v1233 = vld [vmem:[#allocation3 + $0x160] sm:$0xff]
        %v1234 = vld [vmem:[#allocation3 + $0x168] sm:$0xff]
        %v1235 = vld [vmem:[#allocation3 + $0x170] sm:$0xff]
        %v1236 = vld [vmem:[#allocation3 + $0x178] sm:$0xff]
        %v1237 = vld [vmem:[#allocation3 + $0x180] sm:$0xff]
        %v1238 = vld [vmem:[#allocation3 + $0x188] sm:$0xff]
        %v1239 = vld [vmem:[#allocation3 + $0x190] sm:$0xff]
        %v1240 = vld [vmem:[#allocation3 + $0x198] sm:$0xff]
        %v1241 = vld [vmem:[#allocation3 + $0x1a0] sm:$0xff]
        %v1242 = vld [vmem:[#allocation3 + $0x1a8] sm:$0xff]
        %v1243 = vld [vmem:[#allocation3 + $0x1b0] sm:$0xff]
        %v1244 = vld [vmem:[#allocation3 + $0x1b8] sm:$0xff]
        %v1245 = vld [vmem:[#allocation3 + $0x1c0] sm:$0xff]
        %v1246 = vld [vmem:[#allocation3 + $0x1c8] sm:$0xff]
        %v1247 = vld [vmem:[#allocation3 + $0x1d0] sm:$0xff]
        %v1248 = vld [vmem:[#allocation3 + $0x1d8] sm:$0xff]
        %v1249 = vld [vmem:[#allocation3 + $0x1e0] sm:$0xff]
        %v1250 = vld [vmem:[#allocation3 + $0x1e8] sm:$0xff]
        %v1251 = vld [vmem:[#allocation3 + $0x1f0] sm:$0xff]
        %v1252 = vld [vmem:[#allocation3 + $0x1f8] sm:$0xff]
        %v1253 = vld [vmem:[#allocation3 + $0x200] sm:$0xff]
        %v1254 = vld [vmem:[#allocation3 + $0x208] sm:$0xff]
        %v1255 = vld [vmem:[#allocation3 + $0x210] sm:$0xff]
        %v1256 = vld [vmem:[#allocation3 + $0x218] sm:$0xff]
        %v1257 = vld [vmem:[#allocation3 + $0x220] sm:$0xff]
        %v1258 = vld [vmem:[#allocation3 + $0x228] sm:$0xff]
        %v1259 = vld [vmem:[#allocation3 + $0x230] sm:$0xff]
        %v1260 = vld [vmem:[#allocation3 + $0x238] sm:$0xff]
        %v1261 = vld [vmem:[#allocation3 + $0x240] sm:$0xff]
        %v1262 = vld [vmem:[#allocation3 + $0x248] sm:$0xff]
        %v1263 = vld [vmem:[#allocation3 + $0x250] sm:$0xff]
        %v1264 = vld [vmem:[#allocation3 + $0x258] sm:$0xff]
        %v1265 = vld [vmem:[#allocation3 + $0x260] sm:$0xff]
        %v1266 = vld [vmem:[#allocation3 + $0x268] sm:$0xff]
        %v1267 = vld [vmem:[#allocation3 + $0x270] sm:$0xff]
        %v1268 = vld [vmem:[#allocation3 + $0x278] sm:$0xff]
        %v1269 = vld [vmem:[%s1] sm:$0xf]
        %v1270 = vld [vmem:[%s1 + $0x4] sm:$0xf]
        %v1271 = vld [vmem:[%s1 + $0x8] sm:$0xf]
        %v1272 = vld [vmem:[%s1 + $0xc] sm:$0xf]
        %v1273 = vld [vmem:[%s1 + $0x10] sm:$0xf]
        %v1274 = vld [vmem:[%s1 + $0x14] sm:$0xf]
        %v1275 = vld [vmem:[%s1 + $0x18] sm:$0xf]
        %v1276 = vld [vmem:[%s1 + $0x1c] sm:$0xf]
        %v1277 = vld [vmem:[%s1 + $0x20] sm:$0xf]
        %v1278 = vld [vmem:[%s1 + $0x24] sm:$0xf]
        %v1279 = vld [vmem:[%s1 + $0x28] sm:$0xf]
        %v1280 = vld [vmem:[%s1 + $0x2c] sm:$0xf]
        %v1281 = vld [vmem:[%s1 + $0x30] sm:$0xf]
        %v1282 = vld [vmem:[%s1 + $0x34] sm:$0xf]
        %v1283 = vld [vmem:[%s1 + $0x38] sm:$0xf]
        %v1284 = vld [vmem:[%s1 + $0x3c] sm:$0xf]
        %v1285 = vld [vmem:[%s1 + $0x40] sm:$0xf]
        %v1286 = vld [vmem:[%s1 + $0x44] sm:$0xf]
        %v1287 = vld [vmem:[%s1 + $0x48] sm:$0xf]
        %v1288 = vld [vmem:[%s1 + $0x4c] sm:$0xf]
        %v1289 = vld [vmem:[%s1 + $0x50] sm:$0xf]
        %v1290 = vld [vmem:[%s1 + $0x54] sm:$0xf]
        %v1291 = vld [vmem:[%s1 + $0x58] sm:$0xf]
        %v1292 = vld [vmem:[%s1 + $0x5c] sm:$0xf]
        %v1293 = vld [vmem:[%s1 + $0x60] sm:$0xf]
        %v1294 = vld [vmem:[%s1 + $0x64] sm:$0xf]
        %v1295 = vld [vmem:[%s1 + $0x68] sm:$0xf]
        %v1296 = vld [vmem:[%s1 + $0x6c] sm:$0xf]
        %v1297 = vld [vmem:[%s1 + $0x70] sm:$0xf]
        %v1298 = vld [vmem:[%s1 + $0x74] sm:$0xf]
        %v1299 = vld [vmem:[%s1 + $0x78] sm:$0xf]
        %v1300 = vld [vmem:[%s1 + $0x7c] sm:$0xf]
        %v1301 = vld [vmem:[%s1 + $0x80] sm:$0xf]
        %v1302 = vld [vmem:[%s1 + $0x84] sm:$0xf]
        %v1303 = vld [vmem:[%s1 + $0x88] sm:$0xf]
        %v1304 = vld [vmem:[%s1 + $0x8c] sm:$0xf]
        %v1305 = vld [vmem:[%s1 + $0x90] sm:$0xf]
        %v1306 = vld [vmem:[%s1 + $0x94] sm:$0xf]
        %v1307 = vld [vmem:[%s1 + $0x98] sm:$0xf]
        %v1308 = vld [vmem:[%s1 + $0x9c] sm:$0xf]
        %v1309 = vld [vmem:[%s1 + $0xa0] sm:$0xf]
        %v1310 = vld [vmem:[%s1 + $0xa4] sm:$0xf]
        %v1311 = vld [vmem:[%s1 + $0xa8] sm:$0xf]
        %v1312 = vld [vmem:[%s1 + $0xac] sm:$0xf]
        %v1313 = vld [vmem:[%s1 + $0xb0] sm:$0xf]
        %v1314 = vld [vmem:[%s1 + $0xb4] sm:$0xf]
        %v1315 = vld [vmem:[%s1 + $0xb8] sm:$0xf]
        %v1316 = vld [vmem:[%s1 + $0xbc] sm:$0xf]
        %v1317 = vld [vmem:[%s1 + $0xc0] sm:$0xf]
        %v1318 = vld [vmem:[%s1 + $0xc4] sm:$0xf]
        %v1319 = vld [vmem:[%s1 + $0xc8] sm:$0xf]
        %v1320 = vld [vmem:[%s1 + $0xcc] sm:$0xf]
        %v1321 = vld [vmem:[%s1 + $0xd0] sm:$0xf]
        %v1322 = vld [vmem:[%s1 + $0xd4] sm:$0xf]
        %v1323 = vld [vmem:[%s1 + $0xd8] sm:$0xf]
        %v1324 = vld [vmem:[%s1 + $0xdc] sm:$0xf]
        %v1325 = vld [vmem:[%s1 + $0xe0] sm:$0xf]
        %v1326 = vld [vmem:[%s1 + $0xe4] sm:$0xf]
        %v1327 = vld [vmem:[%s1 + $0xe8] sm:$0xf]
        %v1328 = vld [vmem:[%s1 + $0xec] sm:$0xf]
        %v1329 = vld [vmem:[%s1 + $0xf0] sm:$0xf]
        %v1330 = vld [vmem:[%s1 + $0xf4] sm:$0xf]
        %v1331 = vld [vmem:[%s1 + $0xf8] sm:$0xf]
        %v1332 = vld [vmem:[%s1 + $0xfc] sm:$0xf]
        %v1333 = vld [vmem:[%s1 + $0x100] sm:$0xf]
        %v1334 = vld [vmem:[%s1 + $0x104] sm:$0xf]
        %v1335 = vld [vmem:[%s1 + $0x108] sm:$0xf]
        %v1336 = vld [vmem:[%s1 + $0x10c] sm:$0xf]
        %v1337 = vld [vmem:[%s1 + $0x110] sm:$0xf]
        %v1338 = vld [vmem:[%s1 + $0x114] sm:$0xf]
        %v1339 = vld [vmem:[%s1 + $0x118] sm:$0xf]
        %v1340 = vld [vmem:[%s1 + $0x11c] sm:$0xf]
        %v1341 = vld [vmem:[%s2] sm:$0x1]
        %v1343 = vlaneseq
        %v1344 = vshrl.u32 %v1343, 7
        %v1345 = vsub.s32 0, %v1344
        %v1346 = vrot.slane %v1341, %v1345
        %v1420 = vunpack.c.l.b16 %v1269
        %v1421 = vunpack.c.l.b16 %v1270
        %v1422 = vunpack.c.l.b16 %v1271
        %v1423 = vunpack.c.l.b16 %v1272
        %v1424 = vunpack.c.l.b16 %v1273
        %v1425 = vunpack.c.l.b16 %v1274
        %v1426 = vunpack.c.l.b16 %v1275
        %v1427 = vunpack.c.l.b16 %v1276
        %v1428 = vunpack.c.l.b16 %v1277
        %v1429 = vunpack.c.l.b16 %v1278
        %v1430 = vunpack.c.l.b16 %v1279
        %v1431 = vunpack.c.l.b16 %v1280
        %v1432 = vunpack.c.l.b16 %v1281
        %v1433 = vunpack.c.l.b16 %v1282
        %v1434 = vunpack.c.l.b16 %v1283
        %v1435 = vunpack.c.l.b16 %v1284
        %v1436 = vunpack.c.l.b16 %v1285
        %v1437 = vunpack.c.l.b16 %v1286
        %v1438 = vunpack.c.l.b16 %v1287
        %v1439 = vunpack.c.l.b16 %v1288
        %v1440 = vunpack.c.l.b16 %v1289
        %v1441 = vunpack.c.l.b16 %v1290
        %v1442 = vunpack.c.l.b16 %v1291
        %v1443 = vunpack.c.l.b16 %v1292
        %v1444 = vunpack.c.l.b16 %v1293
        %v1445 = vunpack.c.l.b16 %v1294
        %v1446 = vunpack.c.l.b16 %v1295
        %v1447 = vunpack.c.l.b16 %v1296
        %v1448 = vunpack.c.l.b16 %v1297
        %v1449 = vunpack.c.l.b16 %v1298
        %v1450 = vunpack.c.l.b16 %v1299
        %v1451 = vunpack.c.l.b16 %v1300
        %v1452 = vunpack.c.l.b16 %v1301
        %v1453 = vunpack.c.l.b16 %v1302
        %v1454 = vunpack.c.l.b16 %v1303
        %v1455 = vunpack.c.l.b16 %v1304
        %v1456 = vunpack.c.l.b16 %v1305
        %v1457 = vunpack.c.l.b16 %v1306
        %v1458 = vunpack.c.l.b16 %v1307
        %v1459 = vunpack.c.l.b16 %v1308
        %v1460 = vunpack.c.l.b16 %v1309
        %v1461 = vunpack.c.l.b16 %v1310
        %v1462 = vunpack.c.l.b16 %v1311
        %v1463 = vunpack.c.l.b16 %v1312
        %v1464 = vunpack.c.l.b16 %v1313
        %v1465 = vunpack.c.l.b16 %v1314
        %v1466 = vunpack.c.l.b16 %v1315
        %v1467 = vunpack.c.l.b16 %v1316
        %v1468 = vunpack.c.l.b16 %v1317
        %v1469 = vunpack.c.l.b16 %v1318
        %v1470 = vunpack.c.l.b16 %v1319
        %v1471 = vunpack.c.l.b16 %v1320
        %v1472 = vunpack.c.l.b16 %v1321
        %v1473 = vunpack.c.l.b16 %v1322
        %v1474 = vunpack.c.l.b16 %v1323
        %v1475 = vunpack.c.l.b16 %v1324
        %v1476 = vunpack.c.l.b16 %v1325
        %v1477 = vunpack.c.l.b16 %v1326
        %v1478 = vunpack.c.l.b16 %v1327
        %v1479 = vunpack.c.l.b16 %v1328
        %v1480 = vunpack.c.l.b16 %v1329
        %v1481 = vunpack.c.l.b16 %v1330
        %v1482 = vunpack.c.l.b16 %v1331
        %v1483 = vunpack.c.l.b16 %v1332
        %v1484 = vunpack.c.l.b16 %v1333
        %v1485 = vunpack.c.l.b16 %v1334
        %v1486 = vunpack.c.l.b16 %v1335
        %v1487 = vunpack.c.l.b16 %v1336
        %v1488 = vunpack.c.l.b16 %v1337
        %v1489 = vunpack.c.l.b16 %v1338
        %v1490 = vunpack.c.l.b16 %v1339
        %v1491 = vunpack.c.l.b16 %v1340
        %v1492 = vpack.c.b16 %v1421, %v1420
        %v1493 = vpack.c.b16 %v1423, %v1422
        %v1494 = vpack.c.b16 %v1425, %v1424
        %v1495 = vpack.c.b16 %v1427, %v1426
        %v1496 = vpack.c.b16 %v1429, %v1428
        %v1497 = vpack.c.b16 %v1431, %v1430
        %v1498 = vpack.c.b16 %v1433, %v1432
        %v1499 = vpack.c.b16 %v1435, %v1434
        %v1500 = vpack.c.b16 %v1437, %v1436
        %v1501 = vpack.c.b16 %v1439, %v1438
        %v1502 = vpack.c.b16 %v1441, %v1440
        %v1503 = vpack.c.b16 %v1443, %v1442
        %v1504 = vpack.c.b16 %v1445, %v1444
        %v1505 = vpack.c.b16 %v1447, %v1446
        %v1506 = vpack.c.b16 %v1449, %v1448
        %v1507 = vpack.c.b16 %v1451, %v1450
        %v1508 = vpack.c.b16 %v1453, %v1452
        %v1509 = vpack.c.b16 %v1455, %v1454
        %v1510 = vpack.c.b16 %v1457, %v1456
        %v1511 = vpack.c.b16 %v1459, %v1458
        %v1512 = vpack.c.b16 %v1461, %v1460
        %v1513 = vpack.c.b16 %v1463, %v1462
        %v1514 = vpack.c.b16 %v1465, %v1464
        %v1515 = vpack.c.b16 %v1467, %v1466
        %v1516 = vpack.c.b16 %v1469, %v1468
        %v1517 = vpack.c.b16 %v1471, %v1470
        %v1518 = vpack.c.b16 %v1473, %v1472
        %v1519 = vpack.c.b16 %v1475, %v1474
        %v1520 = vpack.c.b16 %v1477, %v1476
        %v1521 = vpack.c.b16 %v1479, %v1478
        %v1522 = vpack.c.b16 %v1481, %v1480
        %v1523 = vpack.c.b16 %v1483, %v1482
        %v1524 = vpack.c.b16 %v1485, %v1484
        %v1525 = vpack.c.b16 %v1487, %v1486
        %v1526 = vpack.c.b16 %v1489, %v1488
        %v1527 = vpack.c.b16 %v1491, %v1490
        %v1565 = vsel %vm244, %v1193, 0
        %v1568 = vsel %vm244, %v1198, 0
        %v1571 = vsel %vm244, %v1203, 0
        %v1574 = vsel %vm244, %v1208, 0
        %v1577 = vsel %vm244, %v1213, 0
        %v1580 = vsel %vm244, %v1218, 0
        %v1583 = vsel %vm244, %v1223, 0
        %v1586 = vsel %vm244, %v1228, 0
        %v1589 = vsel %vm244, %v1233, 0
        %v1592 = vsel %vm244, %v1238, 0
        %v1595 = vsel %vm244, %v1243, 0
        %v1598 = vsel %vm244, %v1248, 0
        %v1601 = vsel %vm244, %v1253, 0
        %v1604 = vsel %vm244, %v1258, 0
        %v1607 = vsel %vm244, %v1263, 0
        %v1610 = vsel %vm244, %v1268, 0
        %1612 = vmatprep.subr.bf16.mxu0 0
        %1613 = vmatpush1.bf16.msra.mxu0 %v1492
        %1614 = vmatprep.subr.bf16.mxu0 0
        %1615 = vmatpush1.bf16.msra.mxu0 %v1493
        %1616 = vmatprep.subr.bf16.mxu0 0
        %1617 = vmatpush1.bf16.msra.mxu0 %v1494
        %1618 = vmatprep.subr.bf16.mxu0 0
        %1619 = vmatpush1.bf16.msra.mxu0 %v1495
        %1620 = vmatprep.subr.bf16.mxu0 0
        %1621 = vmatpush1.bf16.msra.mxu0 %v1496
        %1622 = vmatprep.subr.bf16.mxu0 0
        %1623 = vmatpush1.bf16.msra.mxu0 %v1497
        %1624 = vmatprep.subr.bf16.mxu0 0
        %1625 = vmatpush1.bf16.msra.mxu0 %v1498
        %1626 = vmatprep.subr.bf16.mxu0 0
        %1627 = vmatpush1.bf16.msra.mxu0 %v1499
        %1628 = vmatprep.subr.bf16.mxu0 0
        %1629 = vmatpush1.bf16.msra.mxu0 %v1500
        %1630 = vmatprep.subr.bf16.mxu0 0
        %1631 = vmatpush1.bf16.msra.mxu0 %v1501
        %1632 = vmatprep.subr.bf16.mxu0 0
        %1633 = vmatpush1.bf16.msra.mxu0 %v1502
        %1634 = vmatprep.subr.bf16.mxu0 0
        %1635 = vmatpush1.bf16.msra.mxu0 %v1503
        %1636 = vmatprep.subr.bf16.mxu0 0
        %1637 = vmatpush1.bf16.msra.mxu0 %v1504
        %1638 = vmatprep.subr.bf16.mxu0 0
        %1639 = vmatpush1.bf16.msra.mxu0 %v1505
        %1640 = vmatprep.subr.bf16.mxu0 0
        %1641 = vmatpush1.bf16.msra.mxu0 %v1506
        %1642 = vmatprep.subr.bf16.mxu0 0
        %1643 = vmatpush1.bf16.msra.mxu0 %v1507
        %1644 = vmatprep.mubr.bf16.mxu0 %v1190
        %1645 = vmatmul.mubr.bf16.gmra.mrb[0].mxu0 %v1189
        %v1646 = vpop.f32.mrb[0].mxu0
        %v1647 = vadd.f32 %v1346, %v1646
        %v1648 = vpop.f32.mrb[0].mxu0
        %v1649 = vpop.f32.mrb[0].mxu0
        %v1650 = vadd.f32 %v1346, %v1649
        %v1651 = vpop.f32.mrb[0].mxu0
        %1652 = vmatprep.mubr.bf16.mxu0 %v1195
        %1653 = vmatmul.mubr.bf16.gmra.mrb[0].mxu0 %v1194
        %v1654 = vpop.f32.mrb[0].mxu0
        %v1655 = vadd.f32 %v1346, %v1654
        %v1656 = vpop.f32.mrb[0].mxu0
        %v1657 = vpop.f32.mrb[0].mxu0
        %v1658 = vadd.f32 %v1346, %v1657
        %v1659 = vpop.f32.mrb[0].mxu0
        %1660 = vmatprep.mubr.bf16.mxu0 %v1200
        %1661 = vmatmul.mubr.bf16.gmra.mrb[0].mxu0 %v1199
        %v1662 = vpop.f32.mrb[0].mxu0
        %v1663 = vadd.f32 %v1346, %v1662
        %v1664 = vpop.f32.mrb[0].mxu0
        %v1665 = vpop.f32.mrb[0].mxu0
        %v1666 = vadd.f32 %v1346, %v1665
        %v1667 = vpop.f32.mrb[0].mxu0
        %1668 = vmatprep.mubr.bf16.mxu0 %v1205
        %1669 = vmatmul.mubr.bf16.gmra.mrb[0].mxu0 %v1204
        %v1670 = vpop.f32.mrb[0].mxu0
        %v1671 = vadd.f32 %v1346, %v1670
        %v1672 = vpop.f32.mrb[0].mxu0
        %v1673 = vpop.f32.mrb[0].mxu0
        %v1674 = vadd.f32 %v1346, %v1673
        %v1675 = vpop.f32.mrb[0].mxu0
        %1676 = vmatprep.mubr.bf16.mxu0 %v1210
        %1677 = vmatmul.mubr.bf16.gmra.mrb[0].mxu0 %v1209
        %v1678 = vpop.f32.mrb[0].mxu0
        %v1679 = vadd.f32 %v1346, %v1678
        %v1680 = vpop.f32.mrb[0].mxu0
        %v1681 = vpop.f32.mrb[0].mxu0
        %v1682 = vadd.f32 %v1346, %v1681
        %v1683 = vpop.f32.mrb[0].mxu0
        %1684 = vmatprep.mubr.bf16.mxu0 %v1215
        %1685 = vmatmul.mubr.bf16.gmra.mrb[0].mxu0 %v1214
        %v1686 = vpop.f32.mrb[0].mxu0
        %v1687 = vadd.f32 %v1346, %v1686
        %v1688 = vpop.f32.mrb[0].mxu0
        %v1689 = vpop.f32.mrb[0].mxu0
        %v1690 = vadd.f32 %v1346, %v1689
        %v1691 = vpop.f32.mrb[0].mxu0
        %1692 = vmatprep.mubr.bf16.mxu0 %v1220
        %1693 = vmatmul.mubr.bf16.gmra.mrb[0].mxu0 %v1219
        %v1694 = vpop.f32.mrb[0].mxu0
        %v1695 = vadd.f32 %v1346, %v1694
        %v1696 = vpop.f32.mrb[0].mxu0
        %v1697 = vpop.f32.mrb[0].mxu0
        %v1698 = vadd.f32 %v1346, %v1697
        %v1699 = vpop.f32.mrb[0].mxu0
        %1700 = vmatprep.mubr.bf16.mxu0 %v1225
        %1701 = vmatmul.mubr.bf16.gmra.mrb[0].mxu0 %v1224
        %v1702 = vpop.f32.mrb[0].mxu0
        %v1703 = vadd.f32 %v1346, %v1702
        %v1704 = vpop.f32.mrb[0].mxu0
        %v1705 = vpop.f32.mrb[0].mxu0
        %v1706 = vadd.f32 %v1346, %v1705
        %v1707 = vpop.f32.mrb[0].mxu0
        %1708 = vmatprep.mubr.bf16.mxu0 %v1230
        %1709 = vmatmul.mubr.bf16.gmra.mrb[0].mxu0 %v1229
        %v1710 = vpop.f32.mrb[0].mxu0
        %v1711 = vadd.f32 %v1346, %v1710
        %v1712 = vpop.f32.mrb[0].mxu0
        %v1713 = vpop.f32.mrb[0].mxu0
        %v1714 = vadd.f32 %v1346, %v1713
        %v1715 = vpop.f32.mrb[0].mxu0
        %1716 = vmatprep.mubr.bf16.mxu0 %v1235
        %1717 = vmatmul.mubr.bf16.gmra.mrb[0].mxu0 %v1234
        %v1718 = vpop.f32.mrb[0].mxu0
        %v1719 = vadd.f32 %v1346, %v1718
        %v1720 = vpop.f32.mrb[0].mxu0
        %v1721 = vpop.f32.mrb[0].mxu0
        %v1722 = vadd.f32 %v1346, %v1721
        %v1723 = vpop.f32.mrb[0].mxu0
        %1724 = vmatprep.mubr.bf16.mxu0 %v1240
        %1725 = vmatmul.mubr.bf16.gmra.mrb[0].mxu0 %v1239
        %v1726 = vpop.f32.mrb[0].mxu0
        %v1727 = vadd.f32 %v1346, %v1726
        %v1728 = vpop.f32.mrb[0].mxu0
        %v1729 = vpop.f32.mrb[0].mxu0
        %v1730 = vadd.f32 %v1346, %v1729
        %v1731 = vpop.f32.mrb[0].mxu0
        %1732 = vmatprep.mubr.bf16.mxu0 %v1245
        %1733 = vmatmul.mubr.bf16.gmra.mrb[0].mxu0 %v1244
        %v1734 = vpop.f32.mrb[0].mxu0
        %v1735 = vadd.f32 %v1346, %v1734
        %v1736 = vpop.f32.mrb[0].mxu0
        %v1737 = vpop.f32.mrb[0].mxu0
        %v1738 = vadd.f32 %v1346, %v1737
        %v1739 = vpop.f32.mrb[0].mxu0
        %1740 = vmatprep.mubr.bf16.mxu0 %v1250
        %1741 = vmatmul.mubr.bf16.gmra.mrb[0].mxu0 %v1249
        %v1742 = vpop.f32.mrb[0].mxu0
        %v1743 = vadd.f32 %v1346, %v1742
        %v1744 = vpop.f32.mrb[0].mxu0
        %v1745 = vpop.f32.mrb[0].mxu0
        %v1746 = vadd.f32 %v1346, %v1745
        %v1747 = vpop.f32.mrb[0].mxu0
        %1748 = vmatprep.mubr.bf16.mxu0 %v1255
        %1749 = vmatmul.mubr.bf16.gmra.mrb[0].mxu0 %v1254
        %v1750 = vpop.f32.mrb[0].mxu0
        %v1751 = vadd.f32 %v1346, %v1750
        %v1752 = vpop.f32.mrb[0].mxu0
        %v1753 = vpop.f32.mrb[0].mxu0
        %v1754 = vadd.f32 %v1346, %v1753
        %v1755 = vpop.f32.mrb[0].mxu0
        %1756 = vmatprep.mubr.bf16.mxu0 %v1260
        %1757 = vmatmul.mubr.bf16.gmra.mrb[0].mxu0 %v1259
        %v1758 = vpop.f32.mrb[0].mxu0
        %v1759 = vadd.f32 %v1346, %v1758
        %v1760 = vpop.f32.mrb[0].mxu0
        %v1761 = vpop.f32.mrb[0].mxu0
        %v1762 = vadd.f32 %v1346, %v1761
        %v1763 = vpop.f32.mrb[0].mxu0
        %1764 = vmatprep.mubr.bf16.mxu0 %v1265
        %1765 = vmatmul.mubr.bf16.gmra.mrb[0].mxu0 %v1264
        %v1766 = vpop.f32.mrb[0].mxu0
        %v1767 = vadd.f32 %v1346, %v1766
        %v1768 = vpop.f32.mrb[0].mxu0
        %v1769 = vpop.f32.mrb[0].mxu0
        %v1770 = vadd.f32 %v1346, %v1769
        %v1771 = vpop.f32.mrb[0].mxu0
        %1772 = vdwg.mxu0
        %1773 = vmatprep.subr.bf16.mxu0 0
        %1774 = vmatpush1.bf16.msra.mxu0 %v1508
        %1775 = vmatprep.subr.bf16.mxu0 0
        %1776 = vmatpush1.bf16.msra.mxu0 %v1509
        %1777 = vmatprep.subr.bf16.mxu0 0
        %1778 = vmatpush1.bf16.msra.mxu0 %v1510
        %1779 = vmatprep.subr.bf16.mxu0 0
        %1780 = vmatpush1.bf16.msra.mxu0 %v1511
        %1781 = vmatprep.subr.bf16.mxu0 0
        %1782 = vmatpush1.bf16.msra.mxu0 %v1512
        %1783 = vmatprep.subr.bf16.mxu0 0
        %1784 = vmatpush1.bf16.msra.mxu0 %v1513
        %1785 = vmatprep.subr.bf16.mxu0 0
        %1786 = vmatpush1.bf16.msra.mxu0 %v1514
        %1787 = vmatprep.subr.bf16.mxu0 0
        %1788 = vmatpush1.bf16.msra.mxu0 %v1515
        %1789 = vmatprep.subr.bf16.mxu0 0
        %1790 = vmatpush1.bf16.msra.mxu0 %v1516
        %1791 = vmatprep.subr.bf16.mxu0 0
        %1792 = vmatpush1.bf16.msra.mxu0 %v1517
        %1793 = vmatprep.subr.bf16.mxu0 0
        %1794 = vmatpush1.bf16.msra.mxu0 %v1518
        %1795 = vmatprep.subr.bf16.mxu0 0
        %1796 = vmatpush1.bf16.msra.mxu0 %v1519
        %1797 = vmatprep.subr.bf16.mxu0 0
        %1798 = vmatpush1.bf16.msra.mxu0 %v1520
        %1799 = vmatprep.subr.bf16.mxu0 0
        %1800 = vmatpush1.bf16.msra.mxu0 %v1521
        %1801 = vmatprep.subr.bf16.mxu0 0
        %1802 = vmatpush1.bf16.msra.mxu0 %v1522
        %1803 = vmatprep.subr.bf16.mxu0 0
        %1804 = vmatpush1.bf16.msra.mxu0 %v1523
        %1805 = vmatprep.mubr.bf16.mxu0 %v1192
        %1806 = vmatmul.mubr.bf16.gmra.mrb[0].mxu0 %v1191
        %v1807 = vpop.f32.mrb[0].mxu0
        %v1808 = vadd.f32 %v1647, %v1807
        %v1809 = vpop.f32.mrb[0].mxu0
        %v1810 = vpop.f32.mrb[0].mxu0
        %v1811 = vadd.f32 %v1650, %v1810
        %v1812 = vpop.f32.mrb[0].mxu0
        %1813 = vmatprep.mubr.bf16.mxu0 %v1197
        %1814 = vmatmul.mubr.bf16.gmra.mrb[0].mxu0 %v1196
        %v1815 = vpop.f32.mrb[0].mxu0
        %v1816 = vadd.f32 %v1655, %v1815
        %v1817 = vpop.f32.mrb[0].mxu0
        %v1818 = vpop.f32.mrb[0].mxu0
        %v1819 = vadd.f32 %v1658, %v1818
        %v1820 = vpop.f32.mrb[0].mxu0
        %1821 = vmatprep.mubr.bf16.mxu0 %v1202
        %1822 = vmatmul.mubr.bf16.gmra.mrb[0].mxu0 %v1201
        %v1823 = vpop.f32.mrb[0].mxu0
        %v1824 = vadd.f32 %v1663, %v1823
        %v1825 = vpop.f32.mrb[0].mxu0
        %v1826 = vpop.f32.mrb[0].mxu0
        %v1827 = vadd.f32 %v1666, %v1826
        %v1828 = vpop.f32.mrb[0].mxu0
        %1829 = vmatprep.mubr.bf16.mxu0 %v1207
        %1830 = vmatmul.mubr.bf16.gmra.mrb[0].mxu0 %v1206
        %v1831 = vpop.f32.mrb[0].mxu0
        %v1832 = vadd.f32 %v1671, %v1831
        %v1833 = vpop.f32.mrb[0].mxu0
        %v1834 = vpop.f32.mrb[0].mxu0
        %v1835 = vadd.f32 %v1674, %v1834
        %v1836 = vpop.f32.mrb[0].mxu0
        %1837 = vmatprep.mubr.bf16.mxu0 %v1212
        %1838 = vmatmul.mubr.bf16.gmra.mrb[0].mxu0 %v1211
        %v1839 = vpop.f32.mrb[0].mxu0
        %v1840 = vadd.f32 %v1679, %v1839
        %v1841 = vpop.f32.mrb[0].mxu0
        %v1842 = vpop.f32.mrb[0].mxu0
        %v1843 = vadd.f32 %v1682, %v1842
        %v1844 = vpop.f32.mrb[0].mxu0
        %1845 = vmatprep.mubr.bf16.mxu0 %v1217
        %1846 = vmatmul.mubr.bf16.gmra.mrb[0].mxu0 %v1216
        %v1847 = vpop.f32.mrb[0].mxu0
        %v1848 = vadd.f32 %v1687, %v1847
        %v1849 = vpop.f32.mrb[0].mxu0
        %v1850 = vpop.f32.mrb[0].mxu0
        %v1851 = vadd.f32 %v1690, %v1850
        %v1852 = vpop.f32.mrb[0].mxu0
        %1853 = vmatprep.mubr.bf16.mxu0 %v1222
        %1854 = vmatmul.mubr.bf16.gmra.mrb[0].mxu0 %v1221
        %v1855 = vpop.f32.mrb[0].mxu0
        %v1856 = vadd.f32 %v1695, %v1855
        %v1857 = vpop.f32.mrb[0].mxu0
        %v1858 = vpop.f32.mrb[0].mxu0
        %v1859 = vadd.f32 %v1698, %v1858
        %v1860 = vpop.f32.mrb[0].mxu0
        %1861 = vmatprep.mubr.bf16.mxu0 %v1227
        %1862 = vmatmul.mubr.bf16.gmra.mrb[0].mxu0 %v1226
        %v1863 = vpop.f32.mrb[0].mxu0
        %v1864 = vadd.f32 %v1703, %v1863
        %v1865 = vpop.f32.mrb[0].mxu0
        %v1866 = vpop.f32.mrb[0].mxu0
        %v1867 = vadd.f32 %v1706, %v1866
        %v1868 = vpop.f32.mrb[0].mxu0
        %1869 = vmatprep.mubr.bf16.mxu0 %v1232
        %1870 = vmatmul.mubr.bf16.gmra.mrb[0].mxu0 %v1231
        %v1871 = vpop.f32.mrb[0].mxu0
        %v1872 = vadd.f32 %v1711, %v1871
        %v1873 = vpop.f32.mrb[0].mxu0
        %v1874 = vpop.f32.mrb[0].mxu0
        %v1875 = vadd.f32 %v1714, %v1874
        %v1876 = vpop.f32.mrb[0].mxu0
        %1877 = vmatprep.mubr.bf16.mxu0 %v1237
        %1878 = vmatmul.mubr.bf16.gmra.mrb[0].mxu0 %v1236
        %v1879 = vpop.f32.mrb[0].mxu0
        %v1880 = vadd.f32 %v1719, %v1879
        %v1881 = vpop.f32.mrb[0].mxu0
        %v1882 = vpop.f32.mrb[0].mxu0
        %v1883 = vadd.f32 %v1722, %v1882
        %v1884 = vpop.f32.mrb[0].mxu0
        %1885 = vmatprep.mubr.bf16.mxu0 %v1242
        %1886 = vmatmul.mubr.bf16.gmra.mrb[0].mxu0 %v1241
        %v1887 = vpop.f32.mrb[0].mxu0
        %v1888 = vadd.f32 %v1727, %v1887
        %v1889 = vpop.f32.mrb[0].mxu0
        %v1890 = vpop.f32.mrb[0].mxu0
        %v1891 = vadd.f32 %v1730, %v1890
        %v1892 = vpop.f32.mrb[0].mxu0
        %1893 = vmatprep.mubr.bf16.mxu0 %v1247
        %1894 = vmatmul.mubr.bf16.gmra.mrb[0].mxu0 %v1246
        %v1895 = vpop.f32.mrb[0].mxu0
        %v1896 = vadd.f32 %v1735, %v1895
        %v1897 = vpop.f32.mrb[0].mxu0
        %v1898 = vpop.f32.mrb[0].mxu0
        %v1899 = vadd.f32 %v1738, %v1898
        %v1900 = vpop.f32.mrb[0].mxu0
        %1901 = vmatprep.mubr.bf16.mxu0 %v1252
        %1902 = vmatmul.mubr.bf16.gmra.mrb[0].mxu0 %v1251
        %v1903 = vpop.f32.mrb[0].mxu0
        %v1904 = vadd.f32 %v1743, %v1903
        %v1905 = vpop.f32.mrb[0].mxu0
        %v1906 = vpop.f32.mrb[0].mxu0
        %v1907 = vadd.f32 %v1746, %v1906
        %v1908 = vpop.f32.mrb[0].mxu0
        %1909 = vmatprep.mubr.bf16.mxu0 %v1257
        %1910 = vmatmul.mubr.bf16.gmra.mrb[0].mxu0 %v1256
        %v1911 = vpop.f32.mrb[0].mxu0
        %v1912 = vadd.f32 %v1751, %v1911
        %v1913 = vpop.f32.mrb[0].mxu0
        %v1914 = vpop.f32.mrb[0].mxu0
        %v1915 = vadd.f32 %v1754, %v1914
        %v1916 = vpop.f32.mrb[0].mxu0
        %1917 = vmatprep.mubr.bf16.mxu0 %v1262
        %1918 = vmatmul.mubr.bf16.gmra.mrb[0].mxu0 %v1261
        %v1919 = vpop.f32.mrb[0].mxu0
        %v1920 = vadd.f32 %v1759, %v1919
        %v1921 = vpop.f32.mrb[0].mxu0
        %v1922 = vpop.f32.mrb[0].mxu0
        %v1923 = vadd.f32 %v1762, %v1922
        %v1924 = vpop.f32.mrb[0].mxu0
        %1925 = vmatprep.mubr.bf16.mxu0 %v1267
        %1926 = vmatmul.mubr.bf16.gmra.mrb[0].mxu0 %v1266
        %v1927 = vpop.f32.mrb[0].mxu0
        %v1928 = vadd.f32 %v1767, %v1927
        %v1929 = vpop.f32.mrb[0].mxu0
        %v1930 = vpop.f32.mrb[0].mxu0
        %v1931 = vadd.f32 %v1770, %v1930
        %v1932 = vpop.f32.mrb[0].mxu0
        %1933 = vdwg.mxu0
        %1934 = vmatprep.subr.bf16.mxu0 0
        %1935 = vmatpush1.bf16.msra.mxu0 %v1524
        %1936 = vmatprep.subr.bf16.mxu0 0
        %1937 = vmatpush1.bf16.msra.mxu0 %v1525
        %1938 = vmatprep.subr.bf16.mxu0 0
        %1939 = vmatpush1.bf16.msra.mxu0 %v1526
        %1940 = vmatprep.subr.bf16.mxu0 0
        %1941 = vmatpush1.bf16.msra.mxu0 %v1527
        %1942 = vmatprep.subr.bf16.mxu0 0
        %1943 = vmatpush1.bf16.msra.mxu0 0
        %1944 = vmatprep.subr.bf16.mxu0 0
        %1945 = vmatpush1.bf16.msra.mxu0 0
        %1946 = vmatprep.subr.bf16.mxu0 0
        %1947 = vmatpush1.bf16.msra.mxu0 0
        %1948 = vmatprep.subr.bf16.mxu0 0
        %1949 = vmatpush1.bf16.msra.mxu0 0
        %1950 = vmatprep.subr.bf16.mxu0 0
        %1951 = vmatpush1.bf16.msra.mxu0 0
        %1952 = vmatprep.subr.bf16.mxu0 0
        %1953 = vmatpush1.bf16.msra.mxu0 0
        %1954 = vmatprep.subr.bf16.mxu0 0
        %1955 = vmatpush1.bf16.msra.mxu0 0
        %1956 = vmatprep.subr.bf16.mxu0 0
        %1957 = vmatpush1.bf16.msra.mxu0 0
        %1958 = vmatprep.subr.bf16.mxu0 0
        %1959 = vmatpush1.bf16.msra.mxu0 0
        %1960 = vmatprep.subr.bf16.mxu0 0
        %1961 = vmatpush1.bf16.msra.mxu0 0
        %1962 = vmatprep.subr.bf16.mxu0 0
        %1963 = vmatpush1.bf16.msra.mxu0 0
        %1964 = vmatprep.subr.bf16.mxu0 0
        %1965 = vmatpush1.bf16.msra.mxu0 0
        %1966 = vmatprep.mubr.bf16.mxu0 0
        %1967 = vmatmul.mubr.bf16.gmra.mrb[0].mxu0 %v1565
        %v1968 = vpop.f32.mrb[0].mxu0
        %v1969 = vadd.f32 %v1808, %v1968
        %v1970 = vpop.f32.mrb[0].mxu0
        %v1971 = vpop.f32.mrb[0].mxu0
        %v1972 = vadd.f32 %v1811, %v1971
        %v1973 = vpop.f32.mrb[0].mxu0
        %1974 = vmatprep.mubr.bf16.mxu0 0
        %1975 = vmatmul.mubr.bf16.gmra.mrb[0].mxu0 %v1568
        %v1976 = vpop.f32.mrb[0].mxu0
        %v1977 = vadd.f32 %v1816, %v1976
        %v1978 = vpop.f32.mrb[0].mxu0
        %v1979 = vpop.f32.mrb[0].mxu0
        %v1980 = vadd.f32 %v1819, %v1979
        %v1981 = vpop.f32.mrb[0].mxu0
        %1982 = vmatprep.mubr.bf16.mxu0 0
        %1983 = vmatmul.mubr.bf16.gmra.mrb[0].mxu0 %v1571
        %v1984 = vpop.f32.mrb[0].mxu0
        %v1985 = vadd.f32 %v1824, %v1984
        %v1986 = vpop.f32.mrb[0].mxu0
        %v1987 = vpop.f32.mrb[0].mxu0
        %v1988 = vadd.f32 %v1827, %v1987
        %v1989 = vpop.f32.mrb[0].mxu0
        %1990 = vmatprep.mubr.bf16.mxu0 0
        %1991 = vmatmul.mubr.bf16.gmra.mrb[0].mxu0 %v1574
        %v1992 = vpop.f32.mrb[0].mxu0
        %v1993 = vadd.f32 %v1832, %v1992
        %v1994 = vpop.f32.mrb[0].mxu0
        %v1995 = vpop.f32.mrb[0].mxu0
        %v1996 = vadd.f32 %v1835, %v1995
        %v1997 = vpop.f32.mrb[0].mxu0
        %1998 = vmatprep.mubr.bf16.mxu0 0
        %1999 = vmatmul.mubr.bf16.gmra.mrb[0].mxu0 %v1577
        %v2000 = vpop.f32.mrb[0].mxu0
        %v2001 = vadd.f32 %v1840, %v2000
        %v2002 = vpop.f32.mrb[0].mxu0
        %v2003 = vpop.f32.mrb[0].mxu0
        %v2004 = vadd.f32 %v1843, %v2003
        %v2005 = vpop.f32.mrb[0].mxu0
        %2006 = vmatprep.mubr.bf16.mxu0 0
        %2007 = vmatmul.mubr.bf16.gmra.mrb[0].mxu0 %v1580
        %v2008 = vpop.f32.mrb[0].mxu0
        %v2009 = vadd.f32 %v1848, %v2008
        %v2010 = vpop.f32.mrb[0].mxu0
        %v2011 = vpop.f32.mrb[0].mxu0
        %v2012 = vadd.f32 %v1851, %v2011
        %v2013 = vpop.f32.mrb[0].mxu0
        %2014 = vmatprep.mubr.bf16.mxu0 0
        %2015 = vmatmul.mubr.bf16.gmra.mrb[0].mxu0 %v1583
        %v2016 = vpop.f32.mrb[0].mxu0
        %v2017 = vadd.f32 %v1856, %v2016
        %v2018 = vpop.f32.mrb[0].mxu0
        %v2019 = vpop.f32.mrb[0].mxu0
        %v2020 = vadd.f32 %v1859, %v2019
        %v2021 = vpop.f32.mrb[0].mxu0
        %2022 = vmatprep.mubr.bf16.mxu0 0
        %2023 = vmatmul.mubr.bf16.gmra.mrb[0].mxu0 %v1586
        %v2024 = vpop.f32.mrb[0].mxu0
        %v2025 = vadd.f32 %v1864, %v2024
        %v2026 = vpop.f32.mrb[0].mxu0
        %v2027 = vpop.f32.mrb[0].mxu0
        %v2028 = vadd.f32 %v1867, %v2027
        %v2029 = vpop.f32.mrb[0].mxu0
        %2030 = vmatprep.mubr.bf16.mxu0 0
        %2031 = vmatmul.mubr.bf16.gmra.mrb[0].mxu0 %v1589
        %v2032 = vpop.f32.mrb[0].mxu0
        %v2033 = vadd.f32 %v1872, %v2032
        %v2034 = vpop.f32.mrb[0].mxu0
        %v2035 = vpop.f32.mrb[0].mxu0
        %v2036 = vadd.f32 %v1875, %v2035
        %v2037 = vpop.f32.mrb[0].mxu0
        %2038 = vmatprep.mubr.bf16.mxu0 0
        %2039 = vmatmul.mubr.bf16.gmra.mrb[0].mxu0 %v1592
        %v2040 = vpop.f32.mrb[0].mxu0
        %v2041 = vadd.f32 %v1880, %v2040
        %v2042 = vpop.f32.mrb[0].mxu0
        %v2043 = vpop.f32.mrb[0].mxu0
        %v2044 = vadd.f32 %v1883, %v2043
        %v2045 = vpop.f32.mrb[0].mxu0
        %2046 = vmatprep.mubr.bf16.mxu0 0
        %2047 = vmatmul.mubr.bf16.gmra.mrb[0].mxu0 %v1595
        %v2048 = vpop.f32.mrb[0].mxu0
        %v2049 = vadd.f32 %v1888, %v2048
        %v2050 = vpop.f32.mrb[0].mxu0
        %v2051 = vpop.f32.mrb[0].mxu0
        %v2052 = vadd.f32 %v1891, %v2051
        %v2053 = vpop.f32.mrb[0].mxu0
        %2054 = vmatprep.mubr.bf16.mxu0 0
        %2055 = vmatmul.mubr.bf16.gmra.mrb[0].mxu0 %v1598
        %v2056 = vpop.f32.mrb[0].mxu0
        %v2057 = vadd.f32 %v1896, %v2056
        %v2058 = vpop.f32.mrb[0].mxu0
        %v2059 = vpop.f32.mrb[0].mxu0
        %v2060 = vadd.f32 %v1899, %v2059
        %v2061 = vpop.f32.mrb[0].mxu0
        %2062 = vmatprep.mubr.bf16.mxu0 0
        %2063 = vmatmul.mubr.bf16.gmra.mrb[0].mxu0 %v1601
        %v2064 = vpop.f32.mrb[0].mxu0
        %v2065 = vadd.f32 %v1904, %v2064
        %v2066 = vpop.f32.mrb[0].mxu0
        %v2067 = vpop.f32.mrb[0].mxu0
        %v2068 = vadd.f32 %v1907, %v2067
        %v2069 = vpop.f32.mrb[0].mxu0
        %2070 = vmatprep.mubr.bf16.mxu0 0
        %2071 = vmatmul.mubr.bf16.gmra.mrb[0].mxu0 %v1604
        %v2072 = vpop.f32.mrb[0].mxu0
        %v2073 = vadd.f32 %v1912, %v2072
        %v2074 = vpop.f32.mrb[0].mxu0
        %v2075 = vpop.f32.mrb[0].mxu0
        %v2076 = vadd.f32 %v1915, %v2075
        %v2077 = vpop.f32.mrb[0].mxu0
        %2078 = vmatprep.mubr.bf16.mxu0 0
        %2079 = vmatmul.mubr.bf16.gmra.mrb[0].mxu0 %v1607
        %v2080 = vpop.f32.mrb[0].mxu0
        %v2081 = vadd.f32 %v1920, %v2080
        %v2082 = vpop.f32.mrb[0].mxu0
        %v2083 = vpop.f32.mrb[0].mxu0
        %v2084 = vadd.f32 %v1923, %v2083
        %v2085 = vpop.f32.mrb[0].mxu0
        %2086 = vmatprep.mubr.bf16.mxu0 0
        %2087 = vmatmul.mubr.bf16.gmra.mrb[0].mxu0 %v1610
        %v2088 = vpop.f32.mrb[0].mxu0
        %v2089 = vadd.f32 %v1928, %v2088
        %v2090 = vpop.f32.mrb[0].mxu0
        %v2091 = vpop.f32.mrb[0].mxu0
        %v2092 = vadd.f32 %v1931, %v2091
        %v2093 = vpop.f32.mrb[0].mxu0
        %2094 = vdwg.mxu0
        %v2095 = vmax.f32 %v1969, 0.0
        %v2096 = vmax.f32 %v1972, 0.0
        %v2097 = vmax.f32 %v1977, 0.0
        %v2098 = vmax.f32 %v1980, 0.0
        %v2099 = vmax.f32 %v1985, 0.0
        %v2100 = vmax.f32 %v1988, 0.0
        %v2101 = vmax.f32 %v1993, 0.0
        %v2102 = vmax.f32 %v1996, 0.0
        %v2103 = vmax.f32 %v2001, 0.0
        %v2104 = vmax.f32 %v2004, 0.0
        %v2105 = vmax.f32 %v2009, 0.0
        %v2106 = vmax.f32 %v2012, 0.0
        %v2107 = vmax.f32 %v2017, 0.0
        %v2108 = vmax.f32 %v2020, 0.0
        %v2109 = vmax.f32 %v2025, 0.0
        %v2110 = vmax.f32 %v2028, 0.0
        %v2111 = vmax.f32 %v2033, 0.0
        %v2112 = vmax.f32 %v2036, 0.0
        %v2113 = vmax.f32 %v2041, 0.0
        %v2114 = vmax.f32 %v2044, 0.0
        %v2115 = vmax.f32 %v2049, 0.0
        %v2116 = vmax.f32 %v2052, 0.0
        %v2117 = vmax.f32 %v2057, 0.0
        %v2118 = vmax.f32 %v2060, 0.0
        %v2119 = vmax.f32 %v2065, 0.0
        %v2120 = vmax.f32 %v2068, 0.0
        %v2121 = vmax.f32 %v2073, 0.0
        %v2122 = vmax.f32 %v2076, 0.0
        %v2123 = vmax.f32 %v2081, 0.0
        %v2124 = vmax.f32 %v2084, 0.0
        %v2125 = vmax.f32 %v2089, 0.0
        %v2126 = vmax.f32 %v2092, 0.0
        %2127 = vst.msk [vmem:[%s322 + $0x1] sm:$0xff] %vm244, %v2095
        %2128 = vst.msk [vmem:[%s322 + $0x9] sm:$0xff] %vm244, %v2096
        %2129 = vst.msk [vmem:[%s322 + $0x19] sm:$0xff] %vm244, %v2097
        %2130 = vst.msk [vmem:[%s322 + $0x21] sm:$0xff] %vm244, %v2098
        %2131 = vst.msk [vmem:[%s322 + $0x31] sm:$0xff] %vm244, %v2099
        %2132 = vst.msk [vmem:[%s322 + $0x39] sm:$0xff] %vm244, %v2100
        %2133 = vst.msk [vmem:[%s322 + $0x49] sm:$0xff] %vm244, %v2101
        %2134 = vst.msk [vmem:[%s322 + $0x51] sm:$0xff] %vm244, %v2102
        %2135 = vst.msk [vmem:[%s322 + $0x61] sm:$0xff] %vm244, %v2103
        %2136 = vst.msk [vmem:[%s322 + $0x69] sm:$0xff] %vm244, %v2104
        %2137 = vst.msk [vmem:[%s322 + $0x79] sm:$0xff] %vm244, %v2105
        %2138 = vst.msk [vmem:[%s322 + $0x81] sm:$0xff] %vm244, %v2106
        %2139 = vst.msk [vmem:[%s322 + $0x91] sm:$0xff] %vm244, %v2107
        %2140 = vst.msk [vmem:[%s322 + $0x99] sm:$0xff] %vm244, %v2108
        %2141 = vst.msk [vmem:[%s322 + $0xa9] sm:$0xff] %vm244, %v2109
        %2142 = vst.msk [vmem:[%s322 + $0xb1] sm:$0xff] %vm244, %v2110
        %2143 = vst.msk [vmem:[%s322 + $0xc1] sm:$0xff] %vm244, %v2111
        %2144 = vst.msk [vmem:[%s322 + $0xc9] sm:$0xff] %vm244, %v2112
        %2145 = vst.msk [vmem:[%s322 + $0xd9] sm:$0xff] %vm244, %v2113
        %2146 = vst.msk [vmem:[%s322 + $0xe1] sm:$0xff] %vm244, %v2114
        %2147 = vst.msk [vmem:[%s322 + $0xf1] sm:$0xff] %vm244, %v2115
        %2148 = vst.msk [vmem:[%s322 + $0xf9] sm:$0xff] %vm244, %v2116
        %2149 = vst.msk [vmem:[%s322 + $0x109] sm:$0xff] %vm244, %v2117
        %2150 = vst.msk [vmem:[%s322 + $0x111] sm:$0xff] %vm244, %v2118
        %2151 = vst.msk [vmem:[%s322 + $0x121] sm:$0xff] %vm244, %v2119
        %2152 = vst.msk [vmem:[%s322 + $0x129] sm:$0xff] %vm244, %v2120
        %2153 = vst.msk [vmem:[%s322 + $0x139] sm:$0xff] %vm244, %v2121
        %2154 = vst.msk [vmem:[%s322 + $0x141] sm:$0xff] %vm244, %v2122
        %2155 = vst.msk [vmem:[%s322 + $0x151] sm:$0xff] %vm244, %v2123
        %2156 = vst.msk [vmem:[%s322 + $0x159] sm:$0xff] %vm244, %v2124
        %2157 = vst.msk [vmem:[%s322 + $0x169] sm:$0xff] %vm244, %v2125
        %2158 = vst.msk [vmem:[%s322 + $0x171] sm:$0xff] %vm244, %v2126
        %v2159 = vld [vmem:[#allocation2] sm:$0xff]
        %v2160 = vld [vmem:[#allocation2 + $0x8] sm:$0xff]
        %v2161 = vld [vmem:[#allocation2 + $0x18] sm:$0xff]
        %v2162 = vld [vmem:[#allocation2 + $0x20] sm:$0xff]
        %v2163 = vld [vmem:[#allocation2 + $0x30] sm:$0xff]
        %v2164 = vld [vmem:[#allocation2 + $0x38] sm:$0xff]
        %v2165 = vld [vmem:[#allocation2 + $0x48] sm:$0xff]
        %v2166 = vld [vmem:[#allocation2 + $0x50] sm:$0xff]
        %v2167 = vld [vmem:[#allocation2 + $0x60] sm:$0xff]
        %v2168 = vld [vmem:[#allocation2 + $0x68] sm:$0xff]
        %v2169 = vld [vmem:[#allocation2 + $0x78] sm:$0xff]
        %v2170 = vld [vmem:[#allocation2 + $0x80] sm:$0xff]
        %v2171 = vld [vmem:[#allocation2 + $0x90] sm:$0xff]
        %v2172 = vld [vmem:[#allocation2 + $0x98] sm:$0xff]
        %v2173 = vld [vmem:[#allocation2 + $0xa8] sm:$0xff]
        %v2174 = vld [vmem:[#allocation2 + $0xb0] sm:$0xff]
        %v2175 = vld [vmem:[#allocation2 + $0xc0] sm:$0xff]
        %v2176 = vld [vmem:[#allocation2 + $0xc8] sm:$0xff]
        %v2177 = vld [vmem:[#allocation2 + $0xd8] sm:$0xff]
        %v2178 = vld [vmem:[#allocation2 + $0xe0] sm:$0xff]
        %v2179 = vld [vmem:[#allocation2 + $0xf0] sm:$0xff]
        %v2180 = vld [vmem:[#allocation2 + $0xf8] sm:$0xff]
        %v2181 = vld [vmem:[#allocation2 + $0x108] sm:$0xff]
        %v2182 = vld [vmem:[#allocation2 + $0x110] sm:$0xff]
        %v2183 = vld [vmem:[#allocation2 + $0x120] sm:$0xff]
        %v2184 = vld [vmem:[#allocation2 + $0x128] sm:$0xff]
        %v2185 = vld [vmem:[#allocation2 + $0x138] sm:$0xff]
        %v2186 = vld [vmem:[#allocation2 + $0x140] sm:$0xff]
        %v2187 = vld [vmem:[#allocation2 + $0x150] sm:$0xff]
        %v2188 = vld [vmem:[#allocation2 + $0x158] sm:$0xff]
        %v2189 = vld [vmem:[#allocation2 + $0x168] sm:$0xff]
        %v2190 = vld [vmem:[#allocation2 + $0x170] sm:$0xff]
        %v2191 = vpack.c.bf16 %v2160, %v2159
        %v2192 = vpack.c.bf16 %v2162, %v2161
        %v2193 = vpack.c.bf16 %v2164, %v2163
        %v2194 = vpack.c.bf16 %v2166, %v2165
        %v2195 = vpack.c.bf16 %v2168, %v2167
        %v2196 = vpack.c.bf16 %v2170, %v2169
        %v2197 = vpack.c.bf16 %v2172, %v2171
        %v2198 = vpack.c.bf16 %v2174, %v2173
        %v2199 = vpack.c.bf16 %v2176, %v2175
        %v2200 = vpack.c.bf16 %v2178, %v2177
        %v2201 = vpack.c.bf16 %v2180, %v2179
        %v2202 = vpack.c.bf16 %v2182, %v2181
        %v2203 = vpack.c.bf16 %v2184, %v2183
        %v2204 = vpack.c.bf16 %v2186, %v2185
        %v2205 = vpack.c.bf16 %v2188, %v2187
        %v2206 = vpack.c.bf16 %v2190, %v2189
        %2207 = vst.msk [vmem:[#allocation3] sm:$0xff] %vm244, %v2191
        %2208 = vst.msk [vmem:[#allocation3 + $0x28] sm:$0xff] %vm244, %v2192
        %2209 = vst.msk [vmem:[#allocation3 + $0x50] sm:$0xff] %vm244, %v2193
        %2210 = vst.msk [vmem:[#allocation3 + $0x78] sm:$0xff] %vm244, %v2194
        %2211 = vst.msk [vmem:[#allocation3 + $0xa0] sm:$0xff] %vm244, %v2195
        %2212 = vst.msk [vmem:[#allocation3 + $0xc8] sm:$0xff] %vm244, %v2196
        %2213 = vst.msk [vmem:[#allocation3 + $0xf0] sm:$0xff] %vm244, %v2197
        %2214 = vst.msk [vmem:[#allocation3 + $0x118] sm:$0xff] %vm244, %v2198
        %2215 = vst.msk [vmem:[#allocation3 + $0x140] sm:$0xff] %vm244, %v2199
        %2216 = vst.msk [vmem:[#allocation3 + $0x168] sm:$0xff] %vm244, %v2200
        %2217 = vst.msk [vmem:[#allocation3 + $0x190] sm:$0xff] %vm244, %v2201
        %2218 = vst.msk [vmem:[#allocation3 + $0x1b8] sm:$0xff] %vm244, %v2202
        %2219 = vst.msk [vmem:[#allocation3 + $0x1e0] sm:$0xff] %vm244, %v2203
        %2220 = vst.msk [vmem:[#allocation3 + $0x208] sm:$0xff] %vm244, %v2204
        %2221 = vst.msk [vmem:[#allocation3 + $0x230] sm:$0xff] %vm244, %v2205
        %2222 = vst.msk [vmem:[#allocation3 + $0x258] sm:$0xff] %vm244, %v2206
        %v2223 = vld [vmem:[#allocation2 + $0x1] sm:$0xff]
        %v2224 = vld [vmem:[#allocation2 + $0x9] sm:$0xff]
        %v2225 = vld [vmem:[#allocation2 + $0x19] sm:$0xff]
        %v2226 = vld [vmem:[#allocation2 + $0x21] sm:$0xff]
        %v2227 = vld [vmem:[#allocation2 + $0x31] sm:$0xff]
        %v2228 = vld [vmem:[#allocation2 + $0x39] sm:$0xff]
        %v2229 = vld [vmem:[#allocation2 + $0x49] sm:$0xff]
        %v2230 = vld [vmem:[#allocation2 + $0x51] sm:$0xff]
        %v2231 = vld [vmem:[#allocation2 + $0x61] sm:$0xff]
        %v2232 = vld [vmem:[#allocation2 + $0x69] sm:$0xff]
        %v2233 = vld [vmem:[#allocation2 + $0x79] sm:$0xff]
        %v2234 = vld [vmem:[#allocation2 + $0x81] sm:$0xff]
        %v2235 = vld [vmem:[#allocation2 + $0x91] sm:$0xff]
        %v2236 = vld [vmem:[#allocation2 + $0x99] sm:$0xff]
        %v2237 = vld [vmem:[#allocation2 + $0xa9] sm:$0xff]
        %v2238 = vld [vmem:[#allocation2 + $0xb1] sm:$0xff]
        %v2239 = vld [vmem:[#allocation2 + $0xc1] sm:$0xff]
        %v2240 = vld [vmem:[#allocation2 + $0xc9] sm:$0xff]
        %v2241 = vld [vmem:[#allocation2 + $0xd9] sm:$0xff]
        %v2242 = vld [vmem:[#allocation2 + $0xe1] sm:$0xff]
        %v2243 = vld [vmem:[#allocation2 + $0xf1] sm:$0xff]
        %v2244 = vld [vmem:[#allocation2 + $0xf9] sm:$0xff]
        %v2245 = vld [vmem:[#allocation2 + $0x109] sm:$0xff]
        %v2246 = vld [vmem:[#allocation2 + $0x111] sm:$0xff]
        %v2247 = vld [vmem:[#allocation2 + $0x121] sm:$0xff]
        %v2248 = vld [vmem:[#allocation2 + $0x129] sm:$0xff]
        %v2249 = vld [vmem:[#allocation2 + $0x139] sm:$0xff]
        %v2250 = vld [vmem:[#allocation2 + $0x141] sm:$0xff]
        %v2251 = vld [vmem:[#allocation2 + $0x151] sm:$0xff]
        %v2252 = vld [vmem:[#allocation2 + $0x159] sm:$0xff]
        %v2253 = vld [vmem:[#allocation2 + $0x169] sm:$0xff]
        %v2254 = vld [vmem:[#allocation2 + $0x171] sm:$0xff]
        %v2255 = vpack.c.bf16 %v2224, %v2223
        %v2256 = vpack.c.bf16 %v2226, %v2225
        %v2257 = vpack.c.bf16 %v2228, %v2227
        %v2258 = vpack.c.bf16 %v2230, %v2229
        %v2259 = vpack.c.bf16 %v2232, %v2231
        %v2260 = vpack.c.bf16 %v2234, %v2233
        %v2261 = vpack.c.bf16 %v2236, %v2235
        %v2262 = vpack.c.bf16 %v2238, %v2237
        %v2263 = vpack.c.bf16 %v2240, %v2239
        %v2264 = vpack.c.bf16 %v2242, %v2241
        %v2265 = vpack.c.bf16 %v2244, %v2243
        %v2266 = vpack.c.bf16 %v2246, %v2245
        %v2267 = vpack.c.bf16 %v2248, %v2247
        %v2268 = vpack.c.bf16 %v2250, %v2249
        %v2269 = vpack.c.bf16 %v2252, %v2251
        %v2270 = vpack.c.bf16 %v2254, %v2253
        %2287 = vrot.lane.b32.xlu0 %v2255, 64
        %v2288 = vpop.permute.xlu0 %2287
        %2289 = vrot.lane.b32.xlu0 %v2256, 64
        %v2290 = vpop.permute.xlu0 %2289
        %2291 = vrot.lane.b32.xlu0 %v2257, 64
        %v2292 = vpop.permute.xlu0 %2291
        %2293 = vrot.lane.b32.xlu0 %v2258, 64
        %v2294 = vpop.permute.xlu0 %2293
        %2295 = vrot.lane.b32.xlu0 %v2259, 64
        %v2296 = vpop.permute.xlu0 %2295
        %2297 = vrot.lane.b32.xlu0 %v2260, 64
        %v2298 = vpop.permute.xlu0 %2297
        %2299 = vrot.lane.b32.xlu0 %v2261, 64
        %v2300 = vpop.permute.xlu0 %2299
        %2301 = vrot.lane.b32.xlu0 %v2262, 64
        %v2302 = vpop.permute.xlu0 %2301
        %2303 = vrot.lane.b32.xlu0 %v2263, 64
        %v2304 = vpop.permute.xlu0 %2303
        %2305 = vrot.lane.b32.xlu0 %v2264, 64
        %v2306 = vpop.permute.xlu0 %2305
        %2307 = vrot.lane.b32.xlu0 %v2265, 64
        %v2308 = vpop.permute.xlu0 %2307
        %2309 = vrot.lane.b32.xlu0 %v2266, 64
        %v2310 = vpop.permute.xlu0 %2309
        %2311 = vrot.lane.b32.xlu0 %v2267, 64
        %v2312 = vpop.permute.xlu0 %2311
        %2313 = vrot.lane.b32.xlu0 %v2268, 64
        %v2314 = vpop.permute.xlu0 %2313
        %2315 = vrot.lane.b32.xlu0 %v2269, 64
        %v2316 = vpop.permute.xlu0 %2315
        %2317 = vrot.lane.b32.xlu0 %v2270, 64
        %v2318 = vpop.permute.xlu0 %2317
        %2335 = vst.msk [vmem:[#allocation3] sm:$0xff] %vm531, %v2288
        %2336 = vst.msk [vmem:[#allocation3 + $0x28] sm:$0xff] %vm531, %v2290
        %2337 = vst.msk [vmem:[#allocation3 + $0x50] sm:$0xff] %vm531, %v2292
        %2338 = vst.msk [vmem:[#allocation3 + $0x78] sm:$0xff] %vm531, %v2294
        %2339 = vst.msk [vmem:[#allocation3 + $0xa0] sm:$0xff] %vm531, %v2296
        %2340 = vst.msk [vmem:[#allocation3 + $0xc8] sm:$0xff] %vm531, %v2298
        %2341 = vst.msk [vmem:[#allocation3 + $0xf0] sm:$0xff] %vm531, %v2300
        %2342 = vst.msk [vmem:[#allocation3 + $0x118] sm:$0xff] %vm531, %v2302
        %2343 = vst.msk [vmem:[#allocation3 + $0x140] sm:$0xff] %vm531, %v2304
        %2344 = vst.msk [vmem:[#allocation3 + $0x168] sm:$0xff] %vm531, %v2306
        %2345 = vst.msk [vmem:[#allocation3 + $0x190] sm:$0xff] %vm531, %v2308
        %2346 = vst.msk [vmem:[#allocation3 + $0x1b8] sm:$0xff] %vm531, %v2310
        %2347 = vst.msk [vmem:[#allocation3 + $0x1e0] sm:$0xff] %vm531, %v2312
        %2348 = vst.msk [vmem:[#allocation3 + $0x208] sm:$0xff] %vm531, %v2314
        %2349 = vst.msk [vmem:[#allocation3 + $0x230] sm:$0xff] %vm531, %v2316
        %2350 = vst.msk [vmem:[#allocation3 + $0x258] sm:$0xff] %vm531, %v2318
        %v2351 = vld [vmem:[#allocation2 + $0x2] sm:$0xff]
        %v2352 = vld [vmem:[#allocation2 + $0xa] sm:$0xff]
        %v2353 = vld [vmem:[#allocation2 + $0x1a] sm:$0xff]
        %v2354 = vld [vmem:[#allocation2 + $0x22] sm:$0xff]
        %v2355 = vld [vmem:[#allocation2 + $0x32] sm:$0xff]
        %v2356 = vld [vmem:[#allocation2 + $0x3a] sm:$0xff]
        %v2357 = vld [vmem:[#allocation2 + $0x4a] sm:$0xff]
        %v2358 = vld [vmem:[#allocation2 + $0x52] sm:$0xff]
        %v2359 = vld [vmem:[#allocation2 + $0x62] sm:$0xff]
        %v2360 = vld [vmem:[#allocation2 + $0x6a] sm:$0xff]
        %v2361 = vld [vmem:[#allocation2 + $0x7a] sm:$0xff]
        %v2362 = vld [vmem:[#allocation2 + $0x82] sm:$0xff]
        %v2363 = vld [vmem:[#allocation2 + $0x92] sm:$0xff]
        %v2364 = vld [vmem:[#allocation2 + $0x9a] sm:$0xff]
        %v2365 = vld [vmem:[#allocation2 + $0xaa] sm:$0xff]
        %v2366 = vld [vmem:[#allocation2 + $0xb2] sm:$0xff]
        %v2367 = vld [vmem:[#allocation2 + $0xc2] sm:$0xff]
        %v2368 = vld [vmem:[#allocation2 + $0xca] sm:$0xff]
        %v2369 = vld [vmem:[#allocation2 + $0xda] sm:$0xff]
        %v2370 = vld [vmem:[#allocation2 + $0xe2] sm:$0xff]
        %v2371 = vld [vmem:[#allocation2 + $0xf2] sm:$0xff]
        %v2372 = vld [vmem:[#allocation2 + $0xfa] sm:$0xff]
        %v2373 = vld [vmem:[#allocation2 + $0x10a] sm:$0xff]
        %v2374 = vld [vmem:[#allocation2 + $0x112] sm:$0xff]
        %v2375 = vld [vmem:[#allocation2 + $0x122] sm:$0xff]
        %v2376 = vld [vmem:[#allocation2 + $0x12a] sm:$0xff]
        %v2377 = vld [vmem:[#allocation2 + $0x13a] sm:$0xff]
        %v2378 = vld [vmem:[#allocation2 + $0x142] sm:$0xff]
        %v2379 = vld [vmem:[#allocation2 + $0x152] sm:$0xff]
        %v2380 = vld [vmem:[#allocation2 + $0x15a] sm:$0xff]
        %v2381 = vld [vmem:[#allocation2 + $0x16a] sm:$0xff]
        %v2382 = vld [vmem:[#allocation2 + $0x172] sm:$0xff]
        %v2383 = vpack.c.bf16 %v2352, %v2351
        %v2384 = vpack.c.bf16 %v2354, %v2353
        %v2385 = vpack.c.bf16 %v2356, %v2355
        %v2386 = vpack.c.bf16 %v2358, %v2357
        %v2387 = vpack.c.bf16 %v2360, %v2359
        %v2388 = vpack.c.bf16 %v2362, %v2361
        %v2389 = vpack.c.bf16 %v2364, %v2363
        %v2390 = vpack.c.bf16 %v2366, %v2365
        %v2391 = vpack.c.bf16 %v2368, %v2367
        %v2392 = vpack.c.bf16 %v2370, %v2369
        %v2393 = vpack.c.bf16 %v2372, %v2371
        %v2394 = vpack.c.bf16 %v2374, %v2373
        %v2395 = vpack.c.bf16 %v2376, %v2375
        %v2396 = vpack.c.bf16 %v2378, %v2377
        %v2397 = vpack.c.bf16 %v2380, %v2379
        %v2398 = vpack.c.bf16 %v2382, %v2381
        %2399 = vst.msk [vmem:[#allocation3 + $0x8] sm:$0xff] %vm244, %v2383
        %2400 = vst.msk [vmem:[#allocation3 + $0x30] sm:$0xff] %vm244, %v2384
        %2401 = vst.msk [vmem:[#allocation3 + $0x58] sm:$0xff] %vm244, %v2385
        %2402 = vst.msk [vmem:[#allocation3 + $0x80] sm:$0xff] %vm244, %v2386
        %2403 = vst.msk [vmem:[#allocation3 + $0xa8] sm:$0xff] %vm244, %v2387
        %2404 = vst.msk [vmem:[#allocation3 + $0xd0] sm:$0xff] %vm244, %v2388
        %2405 = vst.msk [vmem:[#allocation3 + $0xf8] sm:$0xff] %vm244, %v2389
        %2406 = vst.msk [vmem:[#allocation3 + $0x120] sm:$0xff] %vm244, %v2390
        %2407 = vst.msk [vmem:[#allocation3 + $0x148] sm:$0xff] %vm244, %v2391
        %2408 = vst.msk [vmem:[#allocation3 + $0x170] sm:$0xff] %vm244, %v2392
        %2409 = vst.msk [vmem:[#allocation3 + $0x198] sm:$0xff] %vm244, %v2393
        %2410 = vst.msk [vmem:[#allocation3 + $0x1c0] sm:$0xff] %vm244, %v2394
        %2411 = vst.msk [vmem:[#allocation3 + $0x1e8] sm:$0xff] %vm244, %v2395
        %2412 = vst.msk [vmem:[#allocation3 + $0x210] sm:$0xff] %vm244, %v2396
        %2413 = vst.msk [vmem:[#allocation3 + $0x238] sm:$0xff] %vm244, %v2397
        %2414 = vst.msk [vmem:[#allocation3 + $0x260] sm:$0xff] %vm244, %v2398
        %v2415 = vld [vmem:[%s322] sm:$0xff]
        %v2416 = vld [vmem:[%s322 + $0x8] sm:$0xff]
        %v2417 = vld [vmem:[%s322 + $0x18] sm:$0xff]
        %v2418 = vld [vmem:[%s322 + $0x20] sm:$0xff]
        %v2419 = vld [vmem:[%s322 + $0x30] sm:$0xff]
        %v2420 = vld [vmem:[%s322 + $0x38] sm:$0xff]
        %v2421 = vld [vmem:[%s322 + $0x48] sm:$0xff]
        %v2422 = vld [vmem:[%s322 + $0x50] sm:$0xff]
        %v2423 = vld [vmem:[%s322 + $0x60] sm:$0xff]
        %v2424 = vld [vmem:[%s322 + $0x68] sm:$0xff]
        %v2425 = vld [vmem:[%s322 + $0x78] sm:$0xff]
        %v2426 = vld [vmem:[%s322 + $0x80] sm:$0xff]
        %v2427 = vld [vmem:[%s322 + $0x90] sm:$0xff]
        %v2428 = vld [vmem:[%s322 + $0x98] sm:$0xff]
        %v2429 = vld [vmem:[%s322 + $0xa8] sm:$0xff]
        %v2430 = vld [vmem:[%s322 + $0xb0] sm:$0xff]
        %v2431 = vld [vmem:[%s322 + $0xc0] sm:$0xff]
        %v2432 = vld [vmem:[%s322 + $0xc8] sm:$0xff]
        %v2433 = vld [vmem:[%s322 + $0xd8] sm:$0xff]
        %v2434 = vld [vmem:[%s322 + $0xe0] sm:$0xff]
        %v2435 = vld [vmem:[%s322 + $0xf0] sm:$0xff]
        %v2436 = vld [vmem:[%s322 + $0xf8] sm:$0xff]
        %v2437 = vld [vmem:[%s322 + $0x108] sm:$0xff]
        %v2438 = vld [vmem:[%s322 + $0x110] sm:$0xff]
        %v2439 = vld [vmem:[%s322 + $0x120] sm:$0xff]
        %v2440 = vld [vmem:[%s322 + $0x128] sm:$0xff]
        %v2441 = vld [vmem:[%s322 + $0x138] sm:$0xff]
        %v2442 = vld [vmem:[%s322 + $0x140] sm:$0xff]
        %v2443 = vld [vmem:[%s322 + $0x150] sm:$0xff]
        %v2444 = vld [vmem:[%s322 + $0x158] sm:$0xff]
        %v2445 = vld [vmem:[%s322 + $0x168] sm:$0xff]
        %v2446 = vld [vmem:[%s322 + $0x170] sm:$0xff]
        %v2447 = vpack.c.bf16 %v2416, %v2415
        %v2448 = vpack.c.bf16 %v2418, %v2417
        %v2449 = vpack.c.bf16 %v2420, %v2419
        %v2450 = vpack.c.bf16 %v2422, %v2421
        %v2451 = vpack.c.bf16 %v2424, %v2423
        %v2452 = vpack.c.bf16 %v2426, %v2425
        %v2453 = vpack.c.bf16 %v2428, %v2427
        %v2454 = vpack.c.bf16 %v2430, %v2429
        %v2455 = vpack.c.bf16 %v2432, %v2431
        %v2456 = vpack.c.bf16 %v2434, %v2433
        %v2457 = vpack.c.bf16 %v2436, %v2435
        %v2458 = vpack.c.bf16 %v2438, %v2437
        %v2459 = vpack.c.bf16 %v2440, %v2439
        %v2460 = vpack.c.bf16 %v2442, %v2441
        %v2461 = vpack.c.bf16 %v2444, %v2443
        %v2462 = vpack.c.bf16 %v2446, %v2445
        %2479 = vrot.lane.b32.xlu0 %v2447, 64
        %v2480 = vpop.permute.xlu0 %2479
        %2481 = vrot.lane.b32.xlu0 %v2448, 64
        %v2482 = vpop.permute.xlu0 %2481
        %2483 = vrot.lane.b32.xlu0 %v2449, 64
        %v2484 = vpop.permute.xlu0 %2483
        %2485 = vrot.lane.b32.xlu0 %v2450, 64
        %v2486 = vpop.permute.xlu0 %2485
        %2487 = vrot.lane.b32.xlu0 %v2451, 64
        %v2488 = vpop.permute.xlu0 %2487
        %2489 = vrot.lane.b32.xlu0 %v2452, 64
        %v2490 = vpop.permute.xlu0 %2489
        %2491 = vrot.lane.b32.xlu0 %v2453, 64
        %v2492 = vpop.permute.xlu0 %2491
        %2493 = vrot.lane.b32.xlu0 %v2454, 64
        %v2494 = vpop.permute.xlu0 %2493
        %2495 = vrot.lane.b32.xlu0 %v2455, 64
        %v2496 = vpop.permute.xlu0 %2495
        %2497 = vrot.lane.b32.xlu0 %v2456, 64
        %v2498 = vpop.permute.xlu0 %2497
        %2499 = vrot.lane.b32.xlu0 %v2457, 64
        %v2500 = vpop.permute.xlu0 %2499
        %2501 = vrot.lane.b32.xlu0 %v2458, 64
        %v2502 = vpop.permute.xlu0 %2501
        %2503 = vrot.lane.b32.xlu0 %v2459, 64
        %v2504 = vpop.permute.xlu0 %2503
        %2505 = vrot.lane.b32.xlu0 %v2460, 64
        %v2506 = vpop.permute.xlu0 %2505
        %2507 = vrot.lane.b32.xlu0 %v2461, 64
        %v2508 = vpop.permute.xlu0 %2507
        %2509 = vrot.lane.b32.xlu0 %v2462, 64
        %v2510 = vpop.permute.xlu0 %2509
        %2527 = vst.msk [vmem:[#allocation3 + $0x8] sm:$0xff] %vm531, %v2480
        %2528 = vst.msk [vmem:[#allocation3 + $0x30] sm:$0xff] %vm531, %v2482
        %2529 = vst.msk [vmem:[#allocation3 + $0x58] sm:$0xff] %vm531, %v2484
        %2530 = vst.msk [vmem:[#allocation3 + $0x80] sm:$0xff] %vm531, %v2486
        %2531 = vst.msk [vmem:[#allocation3 + $0xa8] sm:$0xff] %vm531, %v2488
        %2532 = vst.msk [vmem:[#allocation3 + $0xd0] sm:$0xff] %vm531, %v2490
        %2533 = vst.msk [vmem:[#allocation3 + $0xf8] sm:$0xff] %vm531, %v2492
        %2534 = vst.msk [vmem:[#allocation3 + $0x120] sm:$0xff] %vm531, %v2494
        %2535 = vst.msk [vmem:[#allocation3 + $0x148] sm:$0xff] %vm531, %v2496
        %2536 = vst.msk [vmem:[#allocation3 + $0x170] sm:$0xff] %vm531, %v2498
        %2537 = vst.msk [vmem:[#allocation3 + $0x198] sm:$0xff] %vm531, %v2500
        %2538 = vst.msk [vmem:[#allocation3 + $0x1c0] sm:$0xff] %vm531, %v2502
        %2539 = vst.msk [vmem:[#allocation3 + $0x1e8] sm:$0xff] %vm531, %v2504
        %2540 = vst.msk [vmem:[#allocation3 + $0x210] sm:$0xff] %vm531, %v2506
        %2541 = vst.msk [vmem:[#allocation3 + $0x238] sm:$0xff] %vm531, %v2508
        %2542 = vst.msk [vmem:[#allocation3 + $0x260] sm:$0xff] %vm531, %v2510
        %v2543 = vld [vmem:[%s322 + $0x1] sm:$0xff]
        %v2544 = vld [vmem:[%s322 + $0x9] sm:$0xff]
        %v2545 = vld [vmem:[%s322 + $0x19] sm:$0xff]
        %v2546 = vld [vmem:[%s322 + $0x21] sm:$0xff]
        %v2547 = vld [vmem:[%s322 + $0x31] sm:$0xff]
        %v2548 = vld [vmem:[%s322 + $0x39] sm:$0xff]
        %v2549 = vld [vmem:[%s322 + $0x49] sm:$0xff]
        %v2550 = vld [vmem:[%s322 + $0x51] sm:$0xff]
        %v2551 = vld [vmem:[%s322 + $0x61] sm:$0xff]
        %v2552 = vld [vmem:[%s322 + $0x69] sm:$0xff]
        %v2553 = vld [vmem:[%s322 + $0x79] sm:$0xff]
        %v2554 = vld [vmem:[%s322 + $0x81] sm:$0xff]
        %v2555 = vld [vmem:[%s322 + $0x91] sm:$0xff]
        %v2556 = vld [vmem:[%s322 + $0x99] sm:$0xff]
        %v2557 = vld [vmem:[%s322 + $0xa9] sm:$0xff]
        %v2558 = vld [vmem:[%s322 + $0xb1] sm:$0xff]
        %v2559 = vld [vmem:[%s322 + $0xc1] sm:$0xff]
        %v2560 = vld [vmem:[%s322 + $0xc9] sm:$0xff]
        %v2561 = vld [vmem:[%s322 + $0xd9] sm:$0xff]
        %v2562 = vld [vmem:[%s322 + $0xe1] sm:$0xff]
        %v2563 = vld [vmem:[%s322 + $0xf1] sm:$0xff]
        %v2564 = vld [vmem:[%s322 + $0xf9] sm:$0xff]
        %v2565 = vld [vmem:[%s322 + $0x109] sm:$0xff]
        %v2566 = vld [vmem:[%s322 + $0x111] sm:$0xff]
        %v2567 = vld [vmem:[%s322 + $0x121] sm:$0xff]
        %v2568 = vld [vmem:[%s322 + $0x129] sm:$0xff]
        %v2569 = vld [vmem:[%s322 + $0x139] sm:$0xff]
        %v2570 = vld [vmem:[%s322 + $0x141] sm:$0xff]
        %v2571 = vld [vmem:[%s322 + $0x151] sm:$0xff]
        %v2572 = vld [vmem:[%s322 + $0x159] sm:$0xff]
        %v2573 = vld [vmem:[%s322 + $0x169] sm:$0xff]
        %v2574 = vld [vmem:[%s322 + $0x171] sm:$0xff]
        %v2575 = vpack.c.bf16 %v2544, %v2543
        %v2576 = vpack.c.bf16 %v2546, %v2545
        %v2577 = vpack.c.bf16 %v2548, %v2547
        %v2578 = vpack.c.bf16 %v2550, %v2549
        %v2579 = vpack.c.bf16 %v2552, %v2551
        %v2580 = vpack.c.bf16 %v2554, %v2553
        %v2581 = vpack.c.bf16 %v2556, %v2555
        %v2582 = vpack.c.bf16 %v2558, %v2557
        %v2583 = vpack.c.bf16 %v2560, %v2559
        %v2584 = vpack.c.bf16 %v2562, %v2561
        %v2585 = vpack.c.bf16 %v2564, %v2563
        %v2586 = vpack.c.bf16 %v2566, %v2565
        %v2587 = vpack.c.bf16 %v2568, %v2567
        %v2588 = vpack.c.bf16 %v2570, %v2569
        %v2589 = vpack.c.bf16 %v2572, %v2571
        %v2590 = vpack.c.bf16 %v2574, %v2573
        %2591 = vst.msk [vmem:[#allocation3 + $0x10] sm:$0xff] %vm244, %v2575
        %2592 = vst.msk [vmem:[#allocation3 + $0x38] sm:$0xff] %vm244, %v2576
        %2593 = vst.msk [vmem:[#allocation3 + $0x60] sm:$0xff] %vm244, %v2577
        %2594 = vst.msk [vmem:[#allocation3 + $0x88] sm:$0xff] %vm244, %v2578
        %2595 = vst.msk [vmem:[#allocation3 + $0xb0] sm:$0xff] %vm244, %v2579
        %2596 = vst.msk [vmem:[#allocation3 + $0xd8] sm:$0xff] %vm244, %v2580
        %2597 = vst.msk [vmem:[#allocation3 + $0x100] sm:$0xff] %vm244, %v2581
        %2598 = vst.msk [vmem:[#allocation3 + $0x128] sm:$0xff] %vm244, %v2582
        %2599 = vst.msk [vmem:[#allocation3 + $0x150] sm:$0xff] %vm244, %v2583
        %2600 = vst.msk [vmem:[#allocation3 + $0x178] sm:$0xff] %vm244, %v2584
        %2601 = vst.msk [vmem:[#allocation3 + $0x1a0] sm:$0xff] %vm244, %v2585
        %2602 = vst.msk [vmem:[#allocation3 + $0x1c8] sm:$0xff] %vm244, %v2586
        %2603 = vst.msk [vmem:[#allocation3 + $0x1f0] sm:$0xff] %vm244, %v2587
        %2604 = vst.msk [vmem:[#allocation3 + $0x218] sm:$0xff] %vm244, %v2588
        %2605 = vst.msk [vmem:[#allocation3 + $0x240] sm:$0xff] %vm244, %v2589
        %2606 = vst.msk [vmem:[#allocation3 + $0x268] sm:$0xff] %vm244, %v2590
        %v2607 = vld [vmem:[%s322 + $0x2] sm:$0xff]
        %v2608 = vld [vmem:[%s322 + $0xa] sm:$0xff]
        %v2609 = vld [vmem:[%s322 + $0x1a] sm:$0xff]
        %v2610 = vld [vmem:[%s322 + $0x22] sm:$0xff]
        %v2611 = vld [vmem:[%s322 + $0x32] sm:$0xff]
        %v2612 = vld [vmem:[%s322 + $0x3a] sm:$0xff]
        %v2613 = vld [vmem:[%s322 + $0x4a] sm:$0xff]
        %v2614 = vld [vmem:[%s322 + $0x52] sm:$0xff]
        %v2615 = vld [vmem:[%s322 + $0x62] sm:$0xff]
        %v2616 = vld [vmem:[%s322 + $0x6a] sm:$0xff]
        %v2617 = vld [vmem:[%s322 + $0x7a] sm:$0xff]
        %v2618 = vld [vmem:[%s322 + $0x82] sm:$0xff]
        %v2619 = vld [vmem:[%s322 + $0x92] sm:$0xff]
        %v2620 = vld [vmem:[%s322 + $0x9a] sm:$0xff]
        %v2621 = vld [vmem:[%s322 + $0xaa] sm:$0xff]
        %v2622 = vld [vmem:[%s322 + $0xb2] sm:$0xff]
        %v2623 = vld [vmem:[%s322 + $0xc2] sm:$0xff]
        %v2624 = vld [vmem:[%s322 + $0xca] sm:$0xff]
        %v2625 = vld [vmem:[%s322 + $0xda] sm:$0xff]
        %v2626 = vld [vmem:[%s322 + $0xe2] sm:$0xff]
        %v2627 = vld [vmem:[%s322 + $0xf2] sm:$0xff]
        %v2628 = vld [vmem:[%s322 + $0xfa] sm:$0xff]
        %v2629 = vld [vmem:[%s322 + $0x10a] sm:$0xff]
        %v2630 = vld [vmem:[%s322 + $0x112] sm:$0xff]
        %v2631 = vld [vmem:[%s322 + $0x122] sm:$0xff]
        %v2632 = vld [vmem:[%s322 + $0x12a] sm:$0xff]
        %v2633 = vld [vmem:[%s322 + $0x13a] sm:$0xff]
        %v2634 = vld [vmem:[%s322 + $0x142] sm:$0xff]
        %v2635 = vld [vmem:[%s322 + $0x152] sm:$0xff]
        %v2636 = vld [vmem:[%s322 + $0x15a] sm:$0xff]
        %v2637 = vld [vmem:[%s322 + $0x16a] sm:$0xff]
        %v2638 = vld [vmem:[%s322 + $0x172] sm:$0xff]
        %v2639 = vpack.c.bf16 %v2608, %v2607
        %v2640 = vpack.c.bf16 %v2610, %v2609
        %v2641 = vpack.c.bf16 %v2612, %v2611
        %v2642 = vpack.c.bf16 %v2614, %v2613
        %v2643 = vpack.c.bf16 %v2616, %v2615
        %v2644 = vpack.c.bf16 %v2618, %v2617
        %v2645 = vpack.c.bf16 %v2620, %v2619
        %v2646 = vpack.c.bf16 %v2622, %v2621
        %v2647 = vpack.c.bf16 %v2624, %v2623
        %v2648 = vpack.c.bf16 %v2626, %v2625
        %v2649 = vpack.c.bf16 %v2628, %v2627
        %v2650 = vpack.c.bf16 %v2630, %v2629
        %v2651 = vpack.c.bf16 %v2632, %v2631
        %v2652 = vpack.c.bf16 %v2634, %v2633
        %v2653 = vpack.c.bf16 %v2636, %v2635
        %v2654 = vpack.c.bf16 %v2638, %v2637
        %2671 = vrot.lane.b32.xlu0 %v2639, 64
        %v2672 = vpop.permute.xlu0 %2671
        %2673 = vrot.lane.b32.xlu0 %v2640, 64
        %v2674 = vpop.permute.xlu0 %2673
        %2675 = vrot.lane.b32.xlu0 %v2641, 64
        %v2676 = vpop.permute.xlu0 %2675
        %2677 = vrot.lane.b32.xlu0 %v2642, 64
        %v2678 = vpop.permute.xlu0 %2677
        %2679 = vrot.lane.b32.xlu0 %v2643, 64
        %v2680 = vpop.permute.xlu0 %2679
        %2681 = vrot.lane.b32.xlu0 %v2644, 64
        %v2682 = vpop.permute.xlu0 %2681
        %2683 = vrot.lane.b32.xlu0 %v2645, 64
        %v2684 = vpop.permute.xlu0 %2683
        %2685 = vrot.lane.b32.xlu0 %v2646, 64
        %v2686 = vpop.permute.xlu0 %2685
        %2687 = vrot.lane.b32.xlu0 %v2647, 64
        %v2688 = vpop.permute.xlu0 %2687
        %2689 = vrot.lane.b32.xlu0 %v2648, 64
        %v2690 = vpop.permute.xlu0 %2689
        %2691 = vrot.lane.b32.xlu0 %v2649, 64
        %v2692 = vpop.permute.xlu0 %2691
        %2693 = vrot.lane.b32.xlu0 %v2650, 64
        %v2694 = vpop.permute.xlu0 %2693
        %2695 = vrot.lane.b32.xlu0 %v2651, 64
        %v2696 = vpop.permute.xlu0 %2695
        %2697 = vrot.lane.b32.xlu0 %v2652, 64
        %v2698 = vpop.permute.xlu0 %2697
        %2699 = vrot.lane.b32.xlu0 %v2653, 64
        %v2700 = vpop.permute.xlu0 %2699
        %2701 = vrot.lane.b32.xlu0 %v2654, 64
        %v2702 = vpop.permute.xlu0 %2701
        %2719 = vst.msk [vmem:[#allocation3 + $0x10] sm:$0xff] %vm531, %v2672
        %2720 = vst.msk [vmem:[#allocation3 + $0x38] sm:$0xff] %vm531, %v2674
        %2721 = vst.msk [vmem:[#allocation3 + $0x60] sm:$0xff] %vm531, %v2676
        %2722 = vst.msk [vmem:[#allocation3 + $0x88] sm:$0xff] %vm531, %v2678
        %2723 = vst.msk [vmem:[#allocation3 + $0xb0] sm:$0xff] %vm531, %v2680
        %2724 = vst.msk [vmem:[#allocation3 + $0xd8] sm:$0xff] %vm531, %v2682
        %2725 = vst.msk [vmem:[#allocation3 + $0x100] sm:$0xff] %vm531, %v2684
        %2726 = vst.msk [vmem:[#allocation3 + $0x128] sm:$0xff] %vm531, %v2686
        %2727 = vst.msk [vmem:[#allocation3 + $0x150] sm:$0xff] %vm531, %v2688
        %2728 = vst.msk [vmem:[#allocation3 + $0x178] sm:$0xff] %vm531, %v2690
        %2729 = vst.msk [vmem:[#allocation3 + $0x1a0] sm:$0xff] %vm531, %v2692
        %2730 = vst.msk [vmem:[#allocation3 + $0x1c8] sm:$0xff] %vm531, %v2694
        %2731 = vst.msk [vmem:[#allocation3 + $0x1f0] sm:$0xff] %vm531, %v2696
        %2732 = vst.msk [vmem:[#allocation3 + $0x218] sm:$0xff] %vm531, %v2698
        %2733 = vst.msk [vmem:[#allocation3 + $0x240] sm:$0xff] %vm531, %v2700
        %2734 = vst.msk [vmem:[#allocation3 + $0x268] sm:$0xff] %vm531, %v2702
        %v2735 = vld [vmem:[%s932] sm:$0xff]
        %v2736 = vld [vmem:[%s932 + $0x8] sm:$0xff]
        %v2737 = vld [vmem:[%s932 + $0x18] sm:$0xff]
        %v2738 = vld [vmem:[%s932 + $0x20] sm:$0xff]
        %v2739 = vld [vmem:[%s932 + $0x30] sm:$0xff]
        %v2740 = vld [vmem:[%s932 + $0x38] sm:$0xff]
        %v2741 = vld [vmem:[%s932 + $0x48] sm:$0xff]
        %v2742 = vld [vmem:[%s932 + $0x50] sm:$0xff]
        %v2743 = vld [vmem:[%s932 + $0x60] sm:$0xff]
        %v2744 = vld [vmem:[%s932 + $0x68] sm:$0xff]
        %v2745 = vld [vmem:[%s932 + $0x78] sm:$0xff]
        %v2746 = vld [vmem:[%s932 + $0x80] sm:$0xff]
        %v2747 = vld [vmem:[%s932 + $0x90] sm:$0xff]
        %v2748 = vld [vmem:[%s932 + $0x98] sm:$0xff]
        %v2749 = vld [vmem:[%s932 + $0xa8] sm:$0xff]
        %v2750 = vld [vmem:[%s932 + $0xb0] sm:$0xff]
        %v2751 = vld [vmem:[%s932 + $0xc0] sm:$0xff]
        %v2752 = vld [vmem:[%s932 + $0xc8] sm:$0xff]
        %v2753 = vld [vmem:[%s932 + $0xd8] sm:$0xff]
        %v2754 = vld [vmem:[%s932 + $0xe0] sm:$0xff]
        %v2755 = vld [vmem:[%s932 + $0xf0] sm:$0xff]
        %v2756 = vld [vmem:[%s932 + $0xf8] sm:$0xff]
        %v2757 = vld [vmem:[%s932 + $0x108] sm:$0xff]
        %v2758 = vld [vmem:[%s932 + $0x110] sm:$0xff]
        %v2759 = vld [vmem:[%s932 + $0x120] sm:$0xff]
        %v2760 = vld [vmem:[%s932 + $0x128] sm:$0xff]
        %v2761 = vld [vmem:[%s932 + $0x138] sm:$0xff]
        %v2762 = vld [vmem:[%s932 + $0x140] sm:$0xff]
        %v2763 = vld [vmem:[%s932 + $0x150] sm:$0xff]
        %v2764 = vld [vmem:[%s932 + $0x158] sm:$0xff]
        %v2765 = vld [vmem:[%s932 + $0x168] sm:$0xff]
        %v2766 = vld [vmem:[%s932 + $0x170] sm:$0xff]
        %v2767 = vpack.c.bf16 %v2736, %v2735
        %v2768 = vpack.c.bf16 %v2738, %v2737
        %v2769 = vpack.c.bf16 %v2740, %v2739
        %v2770 = vpack.c.bf16 %v2742, %v2741
        %v2771 = vpack.c.bf16 %v2744, %v2743
        %v2772 = vpack.c.bf16 %v2746, %v2745
        %v2773 = vpack.c.bf16 %v2748, %v2747
        %v2774 = vpack.c.bf16 %v2750, %v2749
        %v2775 = vpack.c.bf16 %v2752, %v2751
        %v2776 = vpack.c.bf16 %v2754, %v2753
        %v2777 = vpack.c.bf16 %v2756, %v2755
        %v2778 = vpack.c.bf16 %v2758, %v2757
        %v2779 = vpack.c.bf16 %v2760, %v2759
        %v2780 = vpack.c.bf16 %v2762, %v2761
        %v2781 = vpack.c.bf16 %v2764, %v2763
        %v2782 = vpack.c.bf16 %v2766, %v2765
        %2783 = vst.msk [vmem:[#allocation3 + $0x18] sm:$0xff] %vm244, %v2767
        %2784 = vst.msk [vmem:[#allocation3 + $0x40] sm:$0xff] %vm244, %v2768
        %2785 = vst.msk [vmem:[#allocation3 + $0x68] sm:$0xff] %vm244, %v2769
        %2786 = vst.msk [vmem:[#allocation3 + $0x90] sm:$0xff] %vm244, %v2770
        %2787 = vst.msk [vmem:[#allocation3 + $0xb8] sm:$0xff] %vm244, %v2771
        %2788 = vst.msk [vmem:[#allocation3 + $0xe0] sm:$0xff] %vm244, %v2772
        %2789 = vst.msk [vmem:[#allocation3 + $0x108] sm:$0xff] %vm244, %v2773
        %2790 = vst.msk [vmem:[#allocation3 + $0x130] sm:$0xff] %vm244, %v2774
        %2791 = vst.msk [vmem:[#allocation3 + $0x158] sm:$0xff] %vm244, %v2775
        %2792 = vst.msk [vmem:[#allocation3 + $0x180] sm:$0xff] %vm244, %v2776
        %2793 = vst.msk [vmem:[#allocation3 + $0x1a8] sm:$0xff] %vm244, %v2777
        %2794 = vst.msk [vmem:[#allocation3 + $0x1d0] sm:$0xff] %vm244, %v2778
        %2795 = vst.msk [vmem:[#allocation3 + $0x1f8] sm:$0xff] %vm244, %v2779
        %2796 = vst.msk [vmem:[#allocation3 + $0x220] sm:$0xff] %vm244, %v2780
        %2797 = vst.msk [vmem:[#allocation3 + $0x248] sm:$0xff] %vm244, %v2781
        %2798 = vst.msk [vmem:[#allocation3 + $0x270] sm:$0xff] %vm244, %v2782
        %v2799 = vld [vmem:[%s932 + $0x1] sm:$0xff]
        %v2800 = vld [vmem:[%s932 + $0x9] sm:$0xff]
        %v2801 = vld [vmem:[%s932 + $0x19] sm:$0xff]
        %v2802 = vld [vmem:[%s932 + $0x21] sm:$0xff]
        %v2803 = vld [vmem:[%s932 + $0x31] sm:$0xff]
        %v2804 = vld [vmem:[%s932 + $0x39] sm:$0xff]
        %v2805 = vld [vmem:[%s932 + $0x49] sm:$0xff]
        %v2806 = vld [vmem:[%s932 + $0x51] sm:$0xff]
        %v2807 = vld [vmem:[%s932 + $0x61] sm:$0xff]
        %v2808 = vld [vmem:[%s932 + $0x69] sm:$0xff]
        %v2809 = vld [vmem:[%s932 + $0x79] sm:$0xff]
        %v2810 = vld [vmem:[%s932 + $0x81] sm:$0xff]
        %v2811 = vld [vmem:[%s932 + $0x91] sm:$0xff]
        %v2812 = vld [vmem:[%s932 + $0x99] sm:$0xff]
        %v2813 = vld [vmem:[%s932 + $0xa9] sm:$0xff]
        %v2814 = vld [vmem:[%s932 + $0xb1] sm:$0xff]
        %v2815 = vld [vmem:[%s932 + $0xc1] sm:$0xff]
        %v2816 = vld [vmem:[%s932 + $0xc9] sm:$0xff]
        %v2817 = vld [vmem:[%s932 + $0xd9] sm:$0xff]
        %v2818 = vld [vmem:[%s932 + $0xe1] sm:$0xff]
        %v2819 = vld [vmem:[%s932 + $0xf1] sm:$0xff]
        %v2820 = vld [vmem:[%s932 + $0xf9] sm:$0xff]
        %v2821 = vld [vmem:[%s932 + $0x109] sm:$0xff]
        %v2822 = vld [vmem:[%s932 + $0x111] sm:$0xff]
        %v2823 = vld [vmem:[%s932 + $0x121] sm:$0xff]
        %v2824 = vld [vmem:[%s932 + $0x129] sm:$0xff]
        %v2825 = vld [vmem:[%s932 + $0x139] sm:$0xff]
        %v2826 = vld [vmem:[%s932 + $0x141] sm:$0xff]
        %v2827 = vld [vmem:[%s932 + $0x151] sm:$0xff]
        %v2828 = vld [vmem:[%s932 + $0x159] sm:$0xff]
        %v2829 = vld [vmem:[%s932 + $0x169] sm:$0xff]
        %v2830 = vld [vmem:[%s932 + $0x171] sm:$0xff]
        %v2831 = vpack.c.bf16 %v2800, %v2799
        %v2832 = vpack.c.bf16 %v2802, %v2801
        %v2833 = vpack.c.bf16 %v2804, %v2803
        %v2834 = vpack.c.bf16 %v2806, %v2805
        %v2835 = vpack.c.bf16 %v2808, %v2807
        %v2836 = vpack.c.bf16 %v2810, %v2809
        %v2837 = vpack.c.bf16 %v2812, %v2811
        %v2838 = vpack.c.bf16 %v2814, %v2813
        %v2839 = vpack.c.bf16 %v2816, %v2815
        %v2840 = vpack.c.bf16 %v2818, %v2817
        %v2841 = vpack.c.bf16 %v2820, %v2819
        %v2842 = vpack.c.bf16 %v2822, %v2821
        %v2843 = vpack.c.bf16 %v2824, %v2823
        %v2844 = vpack.c.bf16 %v2826, %v2825
        %v2845 = vpack.c.bf16 %v2828, %v2827
        %v2846 = vpack.c.bf16 %v2830, %v2829
        %2863 = vrot.lane.b32.xlu0 %v2831, 64
        %v2864 = vpop.permute.xlu0 %2863
        %2865 = vrot.lane.b32.xlu0 %v2832, 64
        %v2866 = vpop.permute.xlu0 %2865
        %2867 = vrot.lane.b32.xlu0 %v2833, 64
        %v2868 = vpop.permute.xlu0 %2867
        %2869 = vrot.lane.b32.xlu0 %v2834, 64
        %v2870 = vpop.permute.xlu0 %2869
        %2871 = vrot.lane.b32.xlu0 %v2835, 64
        %v2872 = vpop.permute.xlu0 %2871
        %2873 = vrot.lane.b32.xlu0 %v2836, 64
        %v2874 = vpop.permute.xlu0 %2873
        %2875 = vrot.lane.b32.xlu0 %v2837, 64
        %v2876 = vpop.permute.xlu0 %2875
        %2877 = vrot.lane.b32.xlu0 %v2838, 64
        %v2878 = vpop.permute.xlu0 %2877
        %2879 = vrot.lane.b32.xlu0 %v2839, 64
        %v2880 = vpop.permute.xlu0 %2879
        %2881 = vrot.lane.b32.xlu0 %v2840, 64
        %v2882 = vpop.permute.xlu0 %2881
        %2883 = vrot.lane.b32.xlu0 %v2841, 64
        %v2884 = vpop.permute.xlu0 %2883
        %2885 = vrot.lane.b32.xlu0 %v2842, 64
        %v2886 = vpop.permute.xlu0 %2885
        %2887 = vrot.lane.b32.xlu0 %v2843, 64
        %v2888 = vpop.permute.xlu0 %2887
        %2889 = vrot.lane.b32.xlu0 %v2844, 64
        %v2890 = vpop.permute.xlu0 %2889
        %2891 = vrot.lane.b32.xlu0 %v2845, 64
        %v2892 = vpop.permute.xlu0 %2891
        %2893 = vrot.lane.b32.xlu0 %v2846, 64
        %v2894 = vpop.permute.xlu0 %2893
        %2911 = vst.msk [vmem:[#allocation3 + $0x18] sm:$0xff] %vm531, %v2864
        %2912 = vst.msk [vmem:[#allocation3 + $0x40] sm:$0xff] %vm531, %v2866
        %2913 = vst.msk [vmem:[#allocation3 + $0x68] sm:$0xff] %vm531, %v2868
        %2914 = vst.msk [vmem:[#allocation3 + $0x90] sm:$0xff] %vm531, %v2870
        %2915 = vst.msk [vmem:[#allocation3 + $0xb8] sm:$0xff] %vm531, %v2872
        %2916 = vst.msk [vmem:[#allocation3 + $0xe0] sm:$0xff] %vm531, %v2874
        %2917 = vst.msk [vmem:[#allocation3 + $0x108] sm:$0xff] %vm531, %v2876
        %2918 = vst.msk [vmem:[#allocation3 + $0x130] sm:$0xff] %vm531, %v2878
        %2919 = vst.msk [vmem:[#allocation3 + $0x158] sm:$0xff] %vm531, %v2880
        %2920 = vst.msk [vmem:[#allocation3 + $0x180] sm:$0xff] %vm531, %v2882
        %2921 = vst.msk [vmem:[#allocation3 + $0x1a8] sm:$0xff] %vm531, %v2884
        %2922 = vst.msk [vmem:[#allocation3 + $0x1d0] sm:$0xff] %vm531, %v2886
        %2923 = vst.msk [vmem:[#allocation3 + $0x1f8] sm:$0xff] %vm531, %v2888
        %2924 = vst.msk [vmem:[#allocation3 + $0x220] sm:$0xff] %vm531, %v2890
        %2925 = vst.msk [vmem:[#allocation3 + $0x248] sm:$0xff] %vm531, %v2892
        %2926 = vst.msk [vmem:[#allocation3 + $0x270] sm:$0xff] %vm531, %v2894
        %v2927 = vld [vmem:[%s932 + $0x2] sm:$0xff]
        %v2928 = vld [vmem:[%s932 + $0xa] sm:$0xff]
        %v2929 = vld [vmem:[%s932 + $0x1a] sm:$0xff]
        %v2930 = vld [vmem:[%s932 + $0x22] sm:$0xff]
        %v2931 = vld [vmem:[%s932 + $0x32] sm:$0xff]
        %v2932 = vld [vmem:[%s932 + $0x3a] sm:$0xff]
        %v2933 = vld [vmem:[%s932 + $0x4a] sm:$0xff]
        %v2934 = vld [vmem:[%s932 + $0x52] sm:$0xff]
        %v2935 = vld [vmem:[%s932 + $0x62] sm:$0xff]
        %v2936 = vld [vmem:[%s932 + $0x6a] sm:$0xff]
        %v2937 = vld [vmem:[%s932 + $0x7a] sm:$0xff]
        %v2938 = vld [vmem:[%s932 + $0x82] sm:$0xff]
        %v2939 = vld [vmem:[%s932 + $0x92] sm:$0xff]
        %v2940 = vld [vmem:[%s932 + $0x9a] sm:$0xff]
        %v2941 = vld [vmem:[%s932 + $0xaa] sm:$0xff]
        %v2942 = vld [vmem:[%s932 + $0xb2] sm:$0xff]
        %v2943 = vld [vmem:[%s932 + $0xc2] sm:$0xff]
        %v2944 = vld [vmem:[%s932 + $0xca] sm:$0xff]
        %v2945 = vld [vmem:[%s932 + $0xda] sm:$0xff]
        %v2946 = vld [vmem:[%s932 + $0xe2] sm:$0xff]
        %v2947 = vld [vmem:[%s932 + $0xf2] sm:$0xff]
        %v2948 = vld [vmem:[%s932 + $0xfa] sm:$0xff]
        %v2949 = vld [vmem:[%s932 + $0x10a] sm:$0xff]
        %v2950 = vld [vmem:[%s932 + $0x112] sm:$0xff]
        %v2951 = vld [vmem:[%s932 + $0x122] sm:$0xff]
        %v2952 = vld [vmem:[%s932 + $0x12a] sm:$0xff]
        %v2953 = vld [vmem:[%s932 + $0x13a] sm:$0xff]
        %v2954 = vld [vmem:[%s932 + $0x142] sm:$0xff]
        %v2955 = vld [vmem:[%s932 + $0x152] sm:$0xff]
        %v2956 = vld [vmem:[%s932 + $0x15a] sm:$0xff]
        %v2957 = vld [vmem:[%s932 + $0x16a] sm:$0xff]
        %v2958 = vld [vmem:[%s932 + $0x172] sm:$0xff]
        %v2959 = vpack.c.bf16 %v2928, %v2927
        %v2960 = vpack.c.bf16 %v2930, %v2929
        %v2961 = vpack.c.bf16 %v2932, %v2931
        %v2962 = vpack.c.bf16 %v2934, %v2933
        %v2963 = vpack.c.bf16 %v2936, %v2935
        %v2964 = vpack.c.bf16 %v2938, %v2937
        %v2965 = vpack.c.bf16 %v2940, %v2939
        %v2966 = vpack.c.bf16 %v2942, %v2941
        %v2967 = vpack.c.bf16 %v2944, %v2943
        %v2968 = vpack.c.bf16 %v2946, %v2945
        %v2969 = vpack.c.bf16 %v2948, %v2947
        %v2970 = vpack.c.bf16 %v2950, %v2949
        %v2971 = vpack.c.bf16 %v2952, %v2951
        %v2972 = vpack.c.bf16 %v2954, %v2953
        %v2973 = vpack.c.bf16 %v2956, %v2955
        %v2974 = vpack.c.bf16 %v2958, %v2957
        %2975 = vst.msk [vmem:[#allocation3 + $0x20] sm:$0xff] %vm244, %v2959
        %2976 = vst.msk [vmem:[#allocation3 + $0x48] sm:$0xff] %vm244, %v2960
        %2977 = vst.msk [vmem:[#allocation3 + $0x70] sm:$0xff] %vm244, %v2961
        %2978 = vst.msk [vmem:[#allocation3 + $0x98] sm:$0xff] %vm244, %v2962
        %2979 = vst.msk [vmem:[#allocation3 + $0xc0] sm:$0xff] %vm244, %v2963
        %2980 = vst.msk [vmem:[#allocation3 + $0xe8] sm:$0xff] %vm244, %v2964
        %2981 = vst.msk [vmem:[#allocation3 + $0x110] sm:$0xff] %vm244, %v2965
        %2982 = vst.msk [vmem:[#allocation3 + $0x138] sm:$0xff] %vm244, %v2966
        %2983 = vst.msk [vmem:[#allocation3 + $0x160] sm:$0xff] %vm244, %v2967
        %2984 = vst.msk [vmem:[#allocation3 + $0x188] sm:$0xff] %vm244, %v2968
        %2985 = vst.msk [vmem:[#allocation3 + $0x1b0] sm:$0xff] %vm244, %v2969
        %2986 = vst.msk [vmem:[#allocation3 + $0x1d8] sm:$0xff] %vm244, %v2970
        %2987 = vst.msk [vmem:[#allocation3 + $0x200] sm:$0xff] %vm244, %v2971
        %2988 = vst.msk [vmem:[#allocation3 + $0x228] sm:$0xff] %vm244, %v2972
        %2989 = vst.msk [vmem:[#allocation3 + $0x250] sm:$0xff] %vm244, %v2973
        %2990 = vst.msk [vmem:[#allocation3 + $0x278] sm:$0xff] %vm244, %v2974
        %v2991 = vld [vmem:[#allocation3] sm:$0xff]
        %v2992 = vld [vmem:[#allocation3 + $0x8] sm:$0xff]
        %v2993 = vld [vmem:[#allocation3 + $0x10] sm:$0xff]
        %v2994 = vld [vmem:[#allocation3 + $0x18] sm:$0xff]
        %v2995 = vld [vmem:[#allocation3 + $0x20] sm:$0xff]
        %v2996 = vld [vmem:[#allocation3 + $0x28] sm:$0xff]
        %v2997 = vld [vmem:[#allocation3 + $0x30] sm:$0xff]
        %v2998 = vld [vmem:[#allocation3 + $0x38] sm:$0xff]
        %v2999 = vld [vmem:[#allocation3 + $0x40] sm:$0xff]
        %v3000 = vld [vmem:[#allocation3 + $0x48] sm:$0xff]
        %v3001 = vld [vmem:[#allocation3 + $0x50] sm:$0xff]
        %v3002 = vld [vmem:[#allocation3 + $0x58] sm:$0xff]
        %v3003 = vld [vmem:[#allocation3 + $0x60] sm:$0xff]
        %v3004 = vld [vmem:[#allocation3 + $0x68] sm:$0xff]
        %v3005 = vld [vmem:[#allocation3 + $0x70] sm:$0xff]
        %v3006 = vld [vmem:[#allocation3 + $0x78] sm:$0xff]
        %v3007 = vld [vmem:[#allocation3 + $0x80] sm:$0xff]
        %v3008 = vld [vmem:[#allocation3 + $0x88] sm:$0xff]
        %v3009 = vld [vmem:[#allocation3 + $0x90] sm:$0xff]
        %v3010 = vld [vmem:[#allocation3 + $0x98] sm:$0xff]
        %v3011 = vld [vmem:[#allocation3 + $0xa0] sm:$0xff]
        %v3012 = vld [vmem:[#allocation3 + $0xa8] sm:$0xff]
        %v3013 = vld [vmem:[#allocation3 + $0xb0] sm:$0xff]
        %v3014 = vld [vmem:[#allocation3 + $0xb8] sm:$0xff]
        %v3015 = vld [vmem:[#allocation3 + $0xc0] sm:$0xff]
        %v3016 = vld [vmem:[#allocation3 + $0xc8] sm:$0xff]
        %v3017 = vld [vmem:[#allocation3 + $0xd0] sm:$0xff]
        %v3018 = vld [vmem:[#allocation3 + $0xd8] sm:$0xff]
        %v3019 = vld [vmem:[#allocation3 + $0xe0] sm:$0xff]
        %v3020 = vld [vmem:[#allocation3 + $0xe8] sm:$0xff]
        %v3021 = vld [vmem:[#allocation3 + $0xf0] sm:$0xff]
        %v3022 = vld [vmem:[#allocation3 + $0xf8] sm:$0xff]
        %v3023 = vld [vmem:[#allocation3 + $0x100] sm:$0xff]
        %v3024 = vld [vmem:[#allocation3 + $0x108] sm:$0xff]
        %v3025 = vld [vmem:[#allocation3 + $0x110] sm:$0xff]
        %v3026 = vld [vmem:[#allocation3 + $0x118] sm:$0xff]
        %v3027 = vld [vmem:[#allocation3 + $0x120] sm:$0xff]
        %v3028 = vld [vmem:[#allocation3 + $0x128] sm:$0xff]
        %v3029 = vld [vmem:[#allocation3 + $0x130] sm:$0xff]
        %v3030 = vld [vmem:[#allocation3 + $0x138] sm:$0xff]
        %v3031 = vld [vmem:[#allocation3 + $0x140] sm:$0xff]
        %v3032 = vld [vmem:[#allocation3 + $0x148] sm:$0xff]
        %v3033 = vld [vmem:[#allocation3 + $0x150] sm:$0xff]
        %v3034 = vld [vmem:[#allocation3 + $0x158] sm:$0xff]
        %v3035 = vld [vmem:[#allocation3 + $0x160] sm:$0xff]
        %v3036 = vld [vmem:[#allocation3 + $0x168] sm:$0xff]
        %v3037 = vld [vmem:[#allocation3 + $0x170] sm:$0xff]
        %v3038 = vld [vmem:[#allocation3 + $0x178] sm:$0xff]
        %v3039 = vld [vmem:[#allocation3 + $0x180] sm:$0xff]
        %v3040 = vld [vmem:[#allocation3 + $0x188] sm:$0xff]
        %v3041 = vld [vmem:[#allocation3 + $0x190] sm:$0xff]
        %v3042 = vld [vmem:[#allocation3 + $0x198] sm:$0xff]
        %v3043 = vld [vmem:[#allocation3 + $0x1a0] sm:$0xff]
        %v3044 = vld [vmem:[#allocation3 + $0x1a8] sm:$0xff]
        %v3045 = vld [vmem:[#allocation3 + $0x1b0] sm:$0xff]
        %v3046 = vld [vmem:[#allocation3 + $0x1b8] sm:$0xff]
        %v3047 = vld [vmem:[#allocation3 + $0x1c0] sm:$0xff]
        %v3048 = vld [vmem:[#allocation3 + $0x1c8] sm:$0xff]
        %v3049 = vld [vmem:[#allocation3 + $0x1d0] sm:$0xff]
        %v3050 = vld [vmem:[#allocation3 + $0x1d8] sm:$0xff]
        %v3051 = vld [vmem:[#allocation3 + $0x1e0] sm:$0xff]
        %v3052 = vld [vmem:[#allocation3 + $0x1e8] sm:$0xff]
        %v3053 = vld [vmem:[#allocation3 + $0x1f0] sm:$0xff]
        %v3054 = vld [vmem:[#allocation3 + $0x1f8] sm:$0xff]
        %v3055 = vld [vmem:[#allocation3 + $0x200] sm:$0xff]
        %v3056 = vld [vmem:[#allocation3 + $0x208] sm:$0xff]
        %v3057 = vld [vmem:[#allocation3 + $0x210] sm:$0xff]
        %v3058 = vld [vmem:[#allocation3 + $0x218] sm:$0xff]
        %v3059 = vld [vmem:[#allocation3 + $0x220] sm:$0xff]
        %v3060 = vld [vmem:[#allocation3 + $0x228] sm:$0xff]
        %v3061 = vld [vmem:[#allocation3 + $0x230] sm:$0xff]
        %v3062 = vld [vmem:[#allocation3 + $0x238] sm:$0xff]
        %v3063 = vld [vmem:[#allocation3 + $0x240] sm:$0xff]
        %v3064 = vld [vmem:[#allocation3 + $0x248] sm:$0xff]
        %v3065 = vld [vmem:[#allocation3 + $0x250] sm:$0xff]
        %v3066 = vld [vmem:[#allocation3 + $0x258] sm:$0xff]
        %v3067 = vld [vmem:[#allocation3 + $0x260] sm:$0xff]
        %v3068 = vld [vmem:[#allocation3 + $0x268] sm:$0xff]
        %v3069 = vld [vmem:[#allocation3 + $0x270] sm:$0xff]
        %v3070 = vld [vmem:[#allocation3 + $0x278] sm:$0xff]
        %v3071 = vld [vmem:[%s3] sm:$0xf]
        %v3072 = vld [vmem:[%s3 + $0x4] sm:$0xf]
        %v3073 = vld [vmem:[%s3 + $0x8] sm:$0xf]
        %v3074 = vld [vmem:[%s3 + $0xc] sm:$0xf]
        %v3075 = vld [vmem:[%s3 + $0x10] sm:$0xf]
        %v3076 = vld [vmem:[%s3 + $0x14] sm:$0xf]
        %v3077 = vld [vmem:[%s3 + $0x18] sm:$0xf]
        %v3078 = vld [vmem:[%s3 + $0x1c] sm:$0xf]
        %v3079 = vld [vmem:[%s3 + $0x20] sm:$0xf]
        %v3080 = vld [vmem:[%s3 + $0x24] sm:$0xf]
        %v3081 = vld [vmem:[%s3 + $0x28] sm:$0xf]
        %v3082 = vld [vmem:[%s3 + $0x2c] sm:$0xf]
        %v3083 = vld [vmem:[%s3 + $0x30] sm:$0xf]
        %v3084 = vld [vmem:[%s3 + $0x34] sm:$0xf]
        %v3085 = vld [vmem:[%s3 + $0x38] sm:$0xf]
        %v3086 = vld [vmem:[%s3 + $0x3c] sm:$0xf]
        %v3087 = vld [vmem:[%s3 + $0x40] sm:$0xf]
        %v3088 = vld [vmem:[%s3 + $0x44] sm:$0xf]
        %v3089 = vld [vmem:[%s3 + $0x48] sm:$0xf]
        %v3090 = vld [vmem:[%s3 + $0x4c] sm:$0xf]
        %v3091 = vld [vmem:[%s3 + $0x50] sm:$0xf]
        %v3092 = vld [vmem:[%s3 + $0x54] sm:$0xf]
        %v3093 = vld [vmem:[%s3 + $0x58] sm:$0xf]
        %v3094 = vld [vmem:[%s3 + $0x5c] sm:$0xf]
        %v3095 = vld [vmem:[%s3 + $0x60] sm:$0xf]
        %v3096 = vld [vmem:[%s3 + $0x64] sm:$0xf]
        %v3097 = vld [vmem:[%s3 + $0x68] sm:$0xf]
        %v3098 = vld [vmem:[%s3 + $0x6c] sm:$0xf]
        %v3099 = vld [vmem:[%s3 + $0x70] sm:$0xf]
        %v3100 = vld [vmem:[%s3 + $0x74] sm:$0xf]
        %v3101 = vld [vmem:[%s3 + $0x78] sm:$0xf]
        %v3102 = vld [vmem:[%s3 + $0x7c] sm:$0xf]
        %v3103 = vld [vmem:[%s3 + $0x80] sm:$0xf]
        %v3104 = vld [vmem:[%s3 + $0x84] sm:$0xf]
        %v3105 = vld [vmem:[%s3 + $0x88] sm:$0xf]
        %v3106 = vld [vmem:[%s3 + $0x8c] sm:$0xf]
        %v3107 = vld [vmem:[%s3 + $0x90] sm:$0xf]
        %v3108 = vld [vmem:[%s3 + $0x94] sm:$0xf]
        %v3109 = vld [vmem:[%s3 + $0x98] sm:$0xf]
        %v3110 = vld [vmem:[%s3 + $0x9c] sm:$0xf]
        %v3111 = vld [vmem:[%s3 + $0xa0] sm:$0xf]
        %v3112 = vld [vmem:[%s3 + $0xa4] sm:$0xf]
        %v3113 = vld [vmem:[%s3 + $0xa8] sm:$0xf]
        %v3114 = vld [vmem:[%s3 + $0xac] sm:$0xf]
        %v3115 = vld [vmem:[%s3 + $0xb0] sm:$0xf]
        %v3116 = vld [vmem:[%s3 + $0xb4] sm:$0xf]
        %v3117 = vld [vmem:[%s3 + $0xb8] sm:$0xf]
        %v3118 = vld [vmem:[%s3 + $0xbc] sm:$0xf]
        %v3119 = vld [vmem:[%s3 + $0xc0] sm:$0xf]
        %v3120 = vld [vmem:[%s3 + $0xc4] sm:$0xf]
        %v3121 = vld [vmem:[%s3 + $0xc8] sm:$0xf]
        %v3122 = vld [vmem:[%s3 + $0xcc] sm:$0xf]
        %v3123 = vld [vmem:[%s3 + $0xd0] sm:$0xf]
        %v3124 = vld [vmem:[%s3 + $0xd4] sm:$0xf]
        %v3125 = vld [vmem:[%s3 + $0xd8] sm:$0xf]
        %v3126 = vld [vmem:[%s3 + $0xdc] sm:$0xf]
        %v3127 = vld [vmem:[%s3 + $0xe0] sm:$0xf]
        %v3128 = vld [vmem:[%s3 + $0xe4] sm:$0xf]
        %v3129 = vld [vmem:[%s3 + $0xe8] sm:$0xf]
        %v3130 = vld [vmem:[%s3 + $0xec] sm:$0xf]
        %v3131 = vld [vmem:[%s3 + $0xf0] sm:$0xf]
        %v3132 = vld [vmem:[%s3 + $0xf4] sm:$0xf]
        %v3133 = vld [vmem:[%s3 + $0xf8] sm:$0xf]
        %v3134 = vld [vmem:[%s3 + $0xfc] sm:$0xf]
        %v3135 = vld [vmem:[%s3 + $0x100] sm:$0xf]
        %v3136 = vld [vmem:[%s3 + $0x104] sm:$0xf]
        %v3137 = vld [vmem:[%s3 + $0x108] sm:$0xf]
        %v3138 = vld [vmem:[%s3 + $0x10c] sm:$0xf]
        %v3139 = vld [vmem:[%s3 + $0x110] sm:$0xf]
        %v3140 = vld [vmem:[%s3 + $0x114] sm:$0xf]
        %v3141 = vld [vmem:[%s3 + $0x118] sm:$0xf]
        %v3142 = vld [vmem:[%s3 + $0x11c] sm:$0xf]
        %v3143 = vld [vmem:[%s4] sm:$0x1]
        %v3145 = vlaneseq
        %v3146 = vshrl.u32 %v3145, 7
        %v3147 = vsub.s32 0, %v3146
        %v3148 = vrot.slane %v3143, %v3147
        %v3222 = vunpack.c.l.b16 %v3071
        %v3223 = vunpack.c.l.b16 %v3072
        %v3224 = vunpack.c.l.b16 %v3073
        %v3225 = vunpack.c.l.b16 %v3074
        %v3226 = vunpack.c.l.b16 %v3075
        %v3227 = vunpack.c.l.b16 %v3076
        %v3228 = vunpack.c.l.b16 %v3077
        %v3229 = vunpack.c.l.b16 %v3078
        %v3230 = vunpack.c.l.b16 %v3079
        %v3231 = vunpack.c.l.b16 %v3080
        %v3232 = vunpack.c.l.b16 %v3081
        %v3233 = vunpack.c.l.b16 %v3082
        %v3234 = vunpack.c.l.b16 %v3083
        %v3235 = vunpack.c.l.b16 %v3084
        %v3236 = vunpack.c.l.b16 %v3085
        %v3237 = vunpack.c.l.b16 %v3086
        %v3238 = vunpack.c.l.b16 %v3087
        %v3239 = vunpack.c.l.b16 %v3088
        %v3240 = vunpack.c.l.b16 %v3089
        %v3241 = vunpack.c.l.b16 %v3090
        %v3242 = vunpack.c.l.b16 %v3091
        %v3243 = vunpack.c.l.b16 %v3092
        %v3244 = vunpack.c.l.b16 %v3093
        %v3245 = vunpack.c.l.b16 %v3094
        %v3246 = vunpack.c.l.b16 %v3095
        %v3247 = vunpack.c.l.b16 %v3096
        %v3248 = vunpack.c.l.b16 %v3097
        %v3249 = vunpack.c.l.b16 %v3098
        %v3250 = vunpack.c.l.b16 %v3099
        %v3251 = vunpack.c.l.b16 %v3100
        %v3252 = vunpack.c.l.b16 %v3101
        %v3253 = vunpack.c.l.b16 %v3102
        %v3254 = vunpack.c.l.b16 %v3103
        %v3255 = vunpack.c.l.b16 %v3104
        %v3256 = vunpack.c.l.b16 %v3105
        %v3257 = vunpack.c.l.b16 %v3106
        %v3258 = vunpack.c.l.b16 %v3107
        %v3259 = vunpack.c.l.b16 %v3108
        %v3260 = vunpack.c.l.b16 %v3109
        %v3261 = vunpack.c.l.b16 %v3110
        %v3262 = vunpack.c.l.b16 %v3111
        %v3263 = vunpack.c.l.b16 %v3112
        %v3264 = vunpack.c.l.b16 %v3113
        %v3265 = vunpack.c.l.b16 %v3114
        %v3266 = vunpack.c.l.b16 %v3115
        %v3267 = vunpack.c.l.b16 %v3116
        %v3268 = vunpack.c.l.b16 %v3117
        %v3269 = vunpack.c.l.b16 %v3118
        %v3270 = vunpack.c.l.b16 %v3119
        %v3271 = vunpack.c.l.b16 %v3120
        %v3272 = vunpack.c.l.b16 %v3121
        %v3273 = vunpack.c.l.b16 %v3122
        %v3274 = vunpack.c.l.b16 %v3123
        %v3275 = vunpack.c.l.b16 %v3124
        %v3276 = vunpack.c.l.b16 %v3125
        %v3277 = vunpack.c.l.b16 %v3126
        %v3278 = vunpack.c.l.b16 %v3127
        %v3279 = vunpack.c.l.b16 %v3128
        %v3280 = vunpack.c.l.b16 %v3129
        %v3281 = vunpack.c.l.b16 %v3130
        %v3282 = vunpack.c.l.b16 %v3131
        %v3283 = vunpack.c.l.b16 %v3132
        %v3284 = vunpack.c.l.b16 %v3133
        %v3285 = vunpack.c.l.b16 %v3134
        %v3286 = vunpack.c.l.b16 %v3135
        %v3287 = vunpack.c.l.b16 %v3136
        %v3288 = vunpack.c.l.b16 %v3137
        %v3289 = vunpack.c.l.b16 %v3138
        %v3290 = vunpack.c.l.b16 %v3139
        %v3291 = vunpack.c.l.b16 %v3140
        %v3292 = vunpack.c.l.b16 %v3141
        %v3293 = vunpack.c.l.b16 %v3142
        %v3294 = vpack.c.b16 %v3223, %v3222
        %v3295 = vpack.c.b16 %v3225, %v3224
        %v3296 = vpack.c.b16 %v3227, %v3226
        %v3297 = vpack.c.b16 %v3229, %v3228
        %v3298 = vpack.c.b16 %v3231, %v3230
        %v3299 = vpack.c.b16 %v3233, %v3232
        %v3300 = vpack.c.b16 %v3235, %v3234
        %v3301 = vpack.c.b16 %v3237, %v3236
        %v3302 = vpack.c.b16 %v3239, %v3238
        %v3303 = vpack.c.b16 %v3241, %v3240
        %v3304 = vpack.c.b16 %v3243, %v3242
        %v3305 = vpack.c.b16 %v3245, %v3244
        %v3306 = vpack.c.b16 %v3247, %v3246
        %v3307 = vpack.c.b16 %v3249, %v3248
        %v3308 = vpack.c.b16 %v3251, %v3250
        %v3309 = vpack.c.b16 %v3253, %v3252
        %v3310 = vpack.c.b16 %v3255, %v3254
        %v3311 = vpack.c.b16 %v3257, %v3256
        %v3312 = vpack.c.b16 %v3259, %v3258
        %v3313 = vpack.c.b16 %v3261, %v3260
        %v3314 = vpack.c.b16 %v3263, %v3262
        %v3315 = vpack.c.b16 %v3265, %v3264
        %v3316 = vpack.c.b16 %v3267, %v3266
        %v3317 = vpack.c.b16 %v3269, %v3268
        %v3318 = vpack.c.b16 %v3271, %v3270
        %v3319 = vpack.c.b16 %v3273, %v3272
        %v3320 = vpack.c.b16 %v3275, %v3274
        %v3321 = vpack.c.b16 %v3277, %v3276
        %v3322 = vpack.c.b16 %v3279, %v3278
        %v3323 = vpack.c.b16 %v3281, %v3280
        %v3324 = vpack.c.b16 %v3283, %v3282
        %v3325 = vpack.c.b16 %v3285, %v3284
        %v3326 = vpack.c.b16 %v3287, %v3286
        %v3327 = vpack.c.b16 %v3289, %v3288
        %v3328 = vpack.c.b16 %v3291, %v3290
        %v3329 = vpack.c.b16 %v3293, %v3292
        %v3367 = vsel %vm244, %v2995, 0
        %v3370 = vsel %vm244, %v3000, 0
        %v3373 = vsel %vm244, %v3005, 0
        %v3376 = vsel %vm244, %v3010, 0
        %v3379 = vsel %vm244, %v3015, 0
        %v3382 = vsel %vm244, %v3020, 0
        %v3385 = vsel %vm244, %v3025, 0
        %v3388 = vsel %vm244, %v3030, 0
        %v3391 = vsel %vm244, %v3035, 0
        %v3394 = vsel %vm244, %v3040, 0
        %v3397 = vsel %vm244, %v3045, 0
        %v3400 = vsel %vm244, %v3050, 0
        %v3403 = vsel %vm244, %v3055, 0
        %v3406 = vsel %vm244, %v3060, 0
        %v3409 = vsel %vm244, %v3065, 0
        %v3412 = vsel %vm244, %v3070, 0
        %3414 = vmatprep.subr.bf16.mxu0 0
        %3415 = vmatpush1.bf16.msra.mxu0 %v3294
        %3416 = vmatprep.subr.bf16.mxu0 0
        %3417 = vmatpush1.bf16.msra.mxu0 %v3295
        %3418 = vmatprep.subr.bf16.mxu0 0
        %3419 = vmatpush1.bf16.msra.mxu0 %v3296
        %3420 = vmatprep.subr.bf16.mxu0 0
        %3421 = vmatpush1.bf16.msra.mxu0 %v3297
        %3422 = vmatprep.subr.bf16.mxu0 0
        %3423 = vmatpush1.bf16.msra.mxu0 %v3298
        %3424 = vmatprep.subr.bf16.mxu0 0
        %3425 = vmatpush1.bf16.msra.mxu0 %v3299
        %3426 = vmatprep.subr.bf16.mxu0 0
        %3427 = vmatpush1.bf16.msra.mxu0 %v3300
        %3428 = vmatprep.subr.bf16.mxu0 0
        %3429 = vmatpush1.bf16.msra.mxu0 %v3301
        %3430 = vmatprep.subr.bf16.mxu0 0
        %3431 = vmatpush1.bf16.msra.mxu0 %v3302
        %3432 = vmatprep.subr.bf16.mxu0 0
        %3433 = vmatpush1.bf16.msra.mxu0 %v3303
        %3434 = vmatprep.subr.bf16.mxu0 0
        %3435 = vmatpush1.bf16.msra.mxu0 %v3304
        %3436 = vmatprep.subr.bf16.mxu0 0
        %3437 = vmatpush1.bf16.msra.mxu0 %v3305
        %3438 = vmatprep.subr.bf16.mxu0 0
        %3439 = vmatpush1.bf16.msra.mxu0 %v3306
        %3440 = vmatprep.subr.bf16.mxu0 0
        %3441 = vmatpush1.bf16.msra.mxu0 %v3307
        %3442 = vmatprep.subr.bf16.mxu0 0
        %3443 = vmatpush1.bf16.msra.mxu0 %v3308
        %3444 = vmatprep.subr.bf16.mxu0 0
        %3445 = vmatpush1.bf16.msra.mxu0 %v3309
        %3446 = vmatprep.mubr.bf16.mxu0 %v2992
        %3447 = vmatmul.mubr.bf16.gmra.mrb[0].mxu0 %v2991
        %v3448 = vpop.f32.mrb[0].mxu0
        %v3449 = vadd.f32 %v3148, %v3448
        %v3450 = vpop.f32.mrb[0].mxu0
        %v3451 = vpop.f32.mrb[0].mxu0
        %v3452 = vadd.f32 %v3148, %v3451
        %v3453 = vpop.f32.mrb[0].mxu0
        %3454 = vmatprep.mubr.bf16.mxu0 %v2997
        %3455 = vmatmul.mubr.bf16.gmra.mrb[0].mxu0 %v2996
        %v3456 = vpop.f32.mrb[0].mxu0
        %v3457 = vadd.f32 %v3148, %v3456
        %v3458 = vpop.f32.mrb[0].mxu0
        %v3459 = vpop.f32.mrb[0].mxu0
        %v3460 = vadd.f32 %v3148, %v3459
        %v3461 = vpop.f32.mrb[0].mxu0
        %3462 = vmatprep.mubr.bf16.mxu0 %v3002
        %3463 = vmatmul.mubr.bf16.gmra.mrb[0].mxu0 %v3001
        %v3464 = vpop.f32.mrb[0].mxu0
        %v3465 = vadd.f32 %v3148, %v3464
        %v3466 = vpop.f32.mrb[0].mxu0
        %v3467 = vpop.f32.mrb[0].mxu0
        %v3468 = vadd.f32 %v3148, %v3467
        %v3469 = vpop.f32.mrb[0].mxu0
        %3470 = vmatprep.mubr.bf16.mxu0 %v3007
        %3471 = vmatmul.mubr.bf16.gmra.mrb[0].mxu0 %v3006
        %v3472 = vpop.f32.mrb[0].mxu0
        %v3473 = vadd.f32 %v3148, %v3472
        %v3474 = vpop.f32.mrb[0].mxu0
        %v3475 = vpop.f32.mrb[0].mxu0
        %v3476 = vadd.f32 %v3148, %v3475
        %v3477 = vpop.f32.mrb[0].mxu0
        %3478 = vmatprep.mubr.bf16.mxu0 %v3012
        %3479 = vmatmul.mubr.bf16.gmra.mrb[0].mxu0 %v3011
        %v3480 = vpop.f32.mrb[0].mxu0
        %v3481 = vadd.f32 %v3148, %v3480
        %v3482 = vpop.f32.mrb[0].mxu0
        %v3483 = vpop.f32.mrb[0].mxu0
        %v3484 = vadd.f32 %v3148, %v3483
        %v3485 = vpop.f32.mrb[0].mxu0
        %3486 = vmatprep.mubr.bf16.mxu0 %v3017
        %3487 = vmatmul.mubr.bf16.gmra.mrb[0].mxu0 %v3016
        %v3488 = vpop.f32.mrb[0].mxu0
        %v3489 = vadd.f32 %v3148, %v3488
        %v3490 = vpop.f32.mrb[0].mxu0
        %v3491 = vpop.f32.mrb[0].mxu0
        %v3492 = vadd.f32 %v3148, %v3491
        %v3493 = vpop.f32.mrb[0].mxu0
        %3494 = vmatprep.mubr.bf16.mxu0 %v3022
        %3495 = vmatmul.mubr.bf16.gmra.mrb[0].mxu0 %v3021
        %v3496 = vpop.f32.mrb[0].mxu0
        %v3497 = vadd.f32 %v3148, %v3496
        %v3498 = vpop.f32.mrb[0].mxu0
        %v3499 = vpop.f32.mrb[0].mxu0
        %v3500 = vadd.f32 %v3148, %v3499
        %v3501 = vpop.f32.mrb[0].mxu0
        %3502 = vmatprep.mubr.bf16.mxu0 %v3027
        %3503 = vmatmul.mubr.bf16.gmra.mrb[0].mxu0 %v3026
        %v3504 = vpop.f32.mrb[0].mxu0
        %v3505 = vadd.f32 %v3148, %v3504
        %v3506 = vpop.f32.mrb[0].mxu0
        %v3507 = vpop.f32.mrb[0].mxu0
        %v3508 = vadd.f32 %v3148, %v3507
        %v3509 = vpop.f32.mrb[0].mxu0
        %3510 = vmatprep.mubr.bf16.mxu0 %v3032
        %3511 = vmatmul.mubr.bf16.gmra.mrb[0].mxu0 %v3031
        %v3512 = vpop.f32.mrb[0].mxu0
        %v3513 = vadd.f32 %v3148, %v3512
        %v3514 = vpop.f32.mrb[0].mxu0
        %v3515 = vpop.f32.mrb[0].mxu0
        %v3516 = vadd.f32 %v3148, %v3515
        %v3517 = vpop.f32.mrb[0].mxu0
        %3518 = vmatprep.mubr.bf16.mxu0 %v3037
        %3519 = vmatmul.mubr.bf16.gmra.mrb[0].mxu0 %v3036
        %v3520 = vpop.f32.mrb[0].mxu0
        %v3521 = vadd.f32 %v3148, %v3520
        %v3522 = vpop.f32.mrb[0].mxu0
        %v3523 = vpop.f32.mrb[0].mxu0
        %v3524 = vadd.f32 %v3148, %v3523
        %v3525 = vpop.f32.mrb[0].mxu0
        %3526 = vmatprep.mubr.bf16.mxu0 %v3042
        %3527 = vmatmul.mubr.bf16.gmra.mrb[0].mxu0 %v3041
        %v3528 = vpop.f32.mrb[0].mxu0
        %v3529 = vadd.f32 %v3148, %v3528
        %v3530 = vpop.f32.mrb[0].mxu0
        %v3531 = vpop.f32.mrb[0].mxu0
        %v3532 = vadd.f32 %v3148, %v3531
        %v3533 = vpop.f32.mrb[0].mxu0
        %3534 = vmatprep.mubr.bf16.mxu0 %v3047
        %3535 = vmatmul.mubr.bf16.gmra.mrb[0].mxu0 %v3046
        %v3536 = vpop.f32.mrb[0].mxu0
        %v3537 = vadd.f32 %v3148, %v3536
        %v3538 = vpop.f32.mrb[0].mxu0
        %v3539 = vpop.f32.mrb[0].mxu0
        %v3540 = vadd.f32 %v3148, %v3539
        %v3541 = vpop.f32.mrb[0].mxu0
        %3542 = vmatprep.mubr.bf16.mxu0 %v3052
        %3543 = vmatmul.mubr.bf16.gmra.mrb[0].mxu0 %v3051
        %v3544 = vpop.f32.mrb[0].mxu0
        %v3545 = vadd.f32 %v3148, %v3544
        %v3546 = vpop.f32.mrb[0].mxu0
        %v3547 = vpop.f32.mrb[0].mxu0
        %v3548 = vadd.f32 %v3148, %v3547
        %v3549 = vpop.f32.mrb[0].mxu0
        %3550 = vmatprep.mubr.bf16.mxu0 %v3057
        %3551 = vmatmul.mubr.bf16.gmra.mrb[0].mxu0 %v3056
        %v3552 = vpop.f32.mrb[0].mxu0
        %v3553 = vadd.f32 %v3148, %v3552
        %v3554 = vpop.f32.mrb[0].mxu0
        %v3555 = vpop.f32.mrb[0].mxu0
        %v3556 = vadd.f32 %v3148, %v3555
        %v3557 = vpop.f32.mrb[0].mxu0
        %3558 = vmatprep.mubr.bf16.mxu0 %v3062
        %3559 = vmatmul.mubr.bf16.gmra.mrb[0].mxu0 %v3061
        %v3560 = vpop.f32.mrb[0].mxu0
        %v3561 = vadd.f32 %v3148, %v3560
        %v3562 = vpop.f32.mrb[0].mxu0
        %v3563 = vpop.f32.mrb[0].mxu0
        %v3564 = vadd.f32 %v3148, %v3563
        %v3565 = vpop.f32.mrb[0].mxu0
        %3566 = vmatprep.mubr.bf16.mxu0 %v3067
        %3567 = vmatmul.mubr.bf16.gmra.mrb[0].mxu0 %v3066
        %v3568 = vpop.f32.mrb[0].mxu0
        %v3569 = vadd.f32 %v3148, %v3568
        %v3570 = vpop.f32.mrb[0].mxu0
        %v3571 = vpop.f32.mrb[0].mxu0
        %v3572 = vadd.f32 %v3148, %v3571
        %v3573 = vpop.f32.mrb[0].mxu0
        %3574 = vdwg.mxu0
        %3575 = vmatprep.subr.bf16.mxu0 0
        %3576 = vmatpush1.bf16.msra.mxu0 %v3310
        %3577 = vmatprep.subr.bf16.mxu0 0
        %3578 = vmatpush1.bf16.msra.mxu0 %v3311
        %3579 = vmatprep.subr.bf16.mxu0 0
        %3580 = vmatpush1.bf16.msra.mxu0 %v3312
        %3581 = vmatprep.subr.bf16.mxu0 0
        %3582 = vmatpush1.bf16.msra.mxu0 %v3313
        %3583 = vmatprep.subr.bf16.mxu0 0
        %3584 = vmatpush1.bf16.msra.mxu0 %v3314
        %3585 = vmatprep.subr.bf16.mxu0 0
        %3586 = vmatpush1.bf16.msra.mxu0 %v3315
        %3587 = vmatprep.subr.bf16.mxu0 0
        %3588 = vmatpush1.bf16.msra.mxu0 %v3316
        %3589 = vmatprep.subr.bf16.mxu0 0
        %3590 = vmatpush1.bf16.msra.mxu0 %v3317
        %3591 = vmatprep.subr.bf16.mxu0 0
        %3592 = vmatpush1.bf16.msra.mxu0 %v3318
        %3593 = vmatprep.subr.bf16.mxu0 0
        %3594 = vmatpush1.bf16.msra.mxu0 %v3319
        %3595 = vmatprep.subr.bf16.mxu0 0
        %3596 = vmatpush1.bf16.msra.mxu0 %v3320
        %3597 = vmatprep.subr.bf16.mxu0 0
        %3598 = vmatpush1.bf16.msra.mxu0 %v3321
        %3599 = vmatprep.subr.bf16.mxu0 0
        %3600 = vmatpush1.bf16.msra.mxu0 %v3322
        %3601 = vmatprep.subr.bf16.mxu0 0
        %3602 = vmatpush1.bf16.msra.mxu0 %v3323
        %3603 = vmatprep.subr.bf16.mxu0 0
        %3604 = vmatpush1.bf16.msra.mxu0 %v3324
        %3605 = vmatprep.subr.bf16.mxu0 0
        %3606 = vmatpush1.bf16.msra.mxu0 %v3325
        %3607 = vmatprep.mubr.bf16.mxu0 %v2994
        %3608 = vmatmul.mubr.bf16.gmra.mrb[0].mxu0 %v2993
        %v3609 = vpop.f32.mrb[0].mxu0
        %v3610 = vadd.f32 %v3449, %v3609
        %v3611 = vpop.f32.mrb[0].mxu0
        %v3612 = vpop.f32.mrb[0].mxu0
        %v3613 = vadd.f32 %v3452, %v3612
        %v3614 = vpop.f32.mrb[0].mxu0
        %3615 = vmatprep.mubr.bf16.mxu0 %v2999
        %3616 = vmatmul.mubr.bf16.gmra.mrb[0].mxu0 %v2998
        %v3617 = vpop.f32.mrb[0].mxu0
        %v3618 = vadd.f32 %v3457, %v3617
        %v3619 = vpop.f32.mrb[0].mxu0
        %v3620 = vpop.f32.mrb[0].mxu0
        %v3621 = vadd.f32 %v3460, %v3620
        %v3622 = vpop.f32.mrb[0].mxu0
        %3623 = vmatprep.mubr.bf16.mxu0 %v3004
        %3624 = vmatmul.mubr.bf16.gmra.mrb[0].mxu0 %v3003
        %v3625 = vpop.f32.mrb[0].mxu0
        %v3626 = vadd.f32 %v3465, %v3625
        %v3627 = vpop.f32.mrb[0].mxu0
        %v3628 = vpop.f32.mrb[0].mxu0
        %v3629 = vadd.f32 %v3468, %v3628
        %v3630 = vpop.f32.mrb[0].mxu0
        %3631 = vmatprep.mubr.bf16.mxu0 %v3009
        %3632 = vmatmul.mubr.bf16.gmra.mrb[0].mxu0 %v3008
        %v3633 = vpop.f32.mrb[0].mxu0
        %v3634 = vadd.f32 %v3473, %v3633
        %v3635 = vpop.f32.mrb[0].mxu0
        %v3636 = vpop.f32.mrb[0].mxu0
        %v3637 = vadd.f32 %v3476, %v3636
        %v3638 = vpop.f32.mrb[0].mxu0
        %3639 = vmatprep.mubr.bf16.mxu0 %v3014
        %3640 = vmatmul.mubr.bf16.gmra.mrb[0].mxu0 %v3013
        %v3641 = vpop.f32.mrb[0].mxu0
        %v3642 = vadd.f32 %v3481, %v3641
        %v3643 = vpop.f32.mrb[0].mxu0
        %v3644 = vpop.f32.mrb[0].mxu0
        %v3645 = vadd.f32 %v3484, %v3644
        %v3646 = vpop.f32.mrb[0].mxu0
        %3647 = vmatprep.mubr.bf16.mxu0 %v3019
        %3648 = vmatmul.mubr.bf16.gmra.mrb[0].mxu0 %v3018
        %v3649 = vpop.f32.mrb[0].mxu0
        %v3650 = vadd.f32 %v3489, %v3649
        %v3651 = vpop.f32.mrb[0].mxu0
        %v3652 = vpop.f32.mrb[0].mxu0
        %v3653 = vadd.f32 %v3492, %v3652
        %v3654 = vpop.f32.mrb[0].mxu0
        %3655 = vmatprep.mubr.bf16.mxu0 %v3024
        %3656 = vmatmul.mubr.bf16.gmra.mrb[0].mxu0 %v3023
        %v3657 = vpop.f32.mrb[0].mxu0
        %v3658 = vadd.f32 %v3497, %v3657
        %v3659 = vpop.f32.mrb[0].mxu0
        %v3660 = vpop.f32.mrb[0].mxu0
        %v3661 = vadd.f32 %v3500, %v3660
        %v3662 = vpop.f32.mrb[0].mxu0
        %3663 = vmatprep.mubr.bf16.mxu0 %v3029
        %3664 = vmatmul.mubr.bf16.gmra.mrb[0].mxu0 %v3028
        %v3665 = vpop.f32.mrb[0].mxu0
        %v3666 = vadd.f32 %v3505, %v3665
        %v3667 = vpop.f32.mrb[0].mxu0
        %v3668 = vpop.f32.mrb[0].mxu0
        %v3669 = vadd.f32 %v3508, %v3668
        %v3670 = vpop.f32.mrb[0].mxu0
        %3671 = vmatprep.mubr.bf16.mxu0 %v3034
        %3672 = vmatmul.mubr.bf16.gmra.mrb[0].mxu0 %v3033
        %v3673 = vpop.f32.mrb[0].mxu0
        %v3674 = vadd.f32 %v3513, %v3673
        %v3675 = vpop.f32.mrb[0].mxu0
        %v3676 = vpop.f32.mrb[0].mxu0
        %v3677 = vadd.f32 %v3516, %v3676
        %v3678 = vpop.f32.mrb[0].mxu0
        %3679 = vmatprep.mubr.bf16.mxu0 %v3039
        %3680 = vmatmul.mubr.bf16.gmra.mrb[0].mxu0 %v3038
        %v3681 = vpop.f32.mrb[0].mxu0
        %v3682 = vadd.f32 %v3521, %v3681
        %v3683 = vpop.f32.mrb[0].mxu0
        %v3684 = vpop.f32.mrb[0].mxu0
        %v3685 = vadd.f32 %v3524, %v3684
        %v3686 = vpop.f32.mrb[0].mxu0
        %3687 = vmatprep.mubr.bf16.mxu0 %v3044
        %3688 = vmatmul.mubr.bf16.gmra.mrb[0].mxu0 %v3043
        %v3689 = vpop.f32.mrb[0].mxu0
        %v3690 = vadd.f32 %v3529, %v3689
        %v3691 = vpop.f32.mrb[0].mxu0
        %v3692 = vpop.f32.mrb[0].mxu0
        %v3693 = vadd.f32 %v3532, %v3692
        %v3694 = vpop.f32.mrb[0].mxu0
        %3695 = vmatprep.mubr.bf16.mxu0 %v3049
        %3696 = vmatmul.mubr.bf16.gmra.mrb[0].mxu0 %v3048
        %v3697 = vpop.f32.mrb[0].mxu0
        %v3698 = vadd.f32 %v3537, %v3697
        %v3699 = vpop.f32.mrb[0].mxu0
        %v3700 = vpop.f32.mrb[0].mxu0
        %v3701 = vadd.f32 %v3540, %v3700
        %v3702 = vpop.f32.mrb[0].mxu0
        %3703 = vmatprep.mubr.bf16.mxu0 %v3054
        %3704 = vmatmul.mubr.bf16.gmra.mrb[0].mxu0 %v3053
        %v3705 = vpop.f32.mrb[0].mxu0
        %v3706 = vadd.f32 %v3545, %v3705
        %v3707 = vpop.f32.mrb[0].mxu0
        %v3708 = vpop.f32.mrb[0].mxu0
        %v3709 = vadd.f32 %v3548, %v3708
        %v3710 = vpop.f32.mrb[0].mxu0
        %3711 = vmatprep.mubr.bf16.mxu0 %v3059
        %3712 = vmatmul.mubr.bf16.gmra.mrb[0].mxu0 %v3058
        %v3713 = vpop.f32.mrb[0].mxu0
        %v3714 = vadd.f32 %v3553, %v3713
        %v3715 = vpop.f32.mrb[0].mxu0
        %v3716 = vpop.f32.mrb[0].mxu0
        %v3717 = vadd.f32 %v3556, %v3716
        %v3718 = vpop.f32.mrb[0].mxu0
        %3719 = vmatprep.mubr.bf16.mxu0 %v3064
        %3720 = vmatmul.mubr.bf16.gmra.mrb[0].mxu0 %v3063
        %v3721 = vpop.f32.mrb[0].mxu0
        %v3722 = vadd.f32 %v3561, %v3721
        %v3723 = vpop.f32.mrb[0].mxu0
        %v3724 = vpop.f32.mrb[0].mxu0
        %v3725 = vadd.f32 %v3564, %v3724
        %v3726 = vpop.f32.mrb[0].mxu0
        %3727 = vmatprep.mubr.bf16.mxu0 %v3069
        %3728 = vmatmul.mubr.bf16.gmra.mrb[0].mxu0 %v3068
        %v3729 = vpop.f32.mrb[0].mxu0
        %v3730 = vadd.f32 %v3569, %v3729
        %v3731 = vpop.f32.mrb[0].mxu0
        %v3732 = vpop.f32.mrb[0].mxu0
        %v3733 = vadd.f32 %v3572, %v3732
        %v3734 = vpop.f32.mrb[0].mxu0
        %3735 = vdwg.mxu0
        %3736 = vmatprep.subr.bf16.mxu0 0
        %3737 = vmatpush1.bf16.msra.mxu0 %v3326
        %3738 = vmatprep.subr.bf16.mxu0 0
        %3739 = vmatpush1.bf16.msra.mxu0 %v3327
        %3740 = vmatprep.subr.bf16.mxu0 0
        %3741 = vmatpush1.bf16.msra.mxu0 %v3328
        %3742 = vmatprep.subr.bf16.mxu0 0
        %3743 = vmatpush1.bf16.msra.mxu0 %v3329
        %3744 = vmatprep.subr.bf16.mxu0 0
        %3745 = vmatpush1.bf16.msra.mxu0 0
        %3746 = vmatprep.subr.bf16.mxu0 0
        %3747 = vmatpush1.bf16.msra.mxu0 0
        %3748 = vmatprep.subr.bf16.mxu0 0
        %3749 = vmatpush1.bf16.msra.mxu0 0
        %3750 = vmatprep.subr.bf16.mxu0 0
        %3751 = vmatpush1.bf16.msra.mxu0 0
        %3752 = vmatprep.subr.bf16.mxu0 0
        %3753 = vmatpush1.bf16.msra.mxu0 0
        %3754 = vmatprep.subr.bf16.mxu0 0
        %3755 = vmatpush1.bf16.msra.mxu0 0
        %3756 = vmatprep.subr.bf16.mxu0 0
        %3757 = vmatpush1.bf16.msra.mxu0 0
        %3758 = vmatprep.subr.bf16.mxu0 0
        %3759 = vmatpush1.bf16.msra.mxu0 0
        %3760 = vmatprep.subr.bf16.mxu0 0
        %3761 = vmatpush1.bf16.msra.mxu0 0
        %3762 = vmatprep.subr.bf16.mxu0 0
        %3763 = vmatpush1.bf16.msra.mxu0 0
        %3764 = vmatprep.subr.bf16.mxu0 0
        %3765 = vmatpush1.bf16.msra.mxu0 0
        %3766 = vmatprep.subr.bf16.mxu0 0
        %3767 = vmatpush1.bf16.msra.mxu0 0
        %3768 = vmatprep.mubr.bf16.mxu0 0
        %3769 = vmatmul.mubr.bf16.gmra.mrb[0].mxu0 %v3367
        %v3770 = vpop.f32.mrb[0].mxu0
        %v3771 = vadd.f32 %v3610, %v3770
        %v3772 = vpop.f32.mrb[0].mxu0
        %v3773 = vpop.f32.mrb[0].mxu0
        %v3774 = vadd.f32 %v3613, %v3773
        %v3775 = vpop.f32.mrb[0].mxu0
        %3776 = vmatprep.mubr.bf16.mxu0 0
        %3777 = vmatmul.mubr.bf16.gmra.mrb[0].mxu0 %v3370
        %v3778 = vpop.f32.mrb[0].mxu0
        %v3779 = vadd.f32 %v3618, %v3778
        %v3780 = vpop.f32.mrb[0].mxu0
        %v3781 = vpop.f32.mrb[0].mxu0
        %v3782 = vadd.f32 %v3621, %v3781
        %v3783 = vpop.f32.mrb[0].mxu0
        %3784 = vmatprep.mubr.bf16.mxu0 0
        %3785 = vmatmul.mubr.bf16.gmra.mrb[0].mxu0 %v3373
        %v3786 = vpop.f32.mrb[0].mxu0
        %v3787 = vadd.f32 %v3626, %v3786
        %v3788 = vpop.f32.mrb[0].mxu0
        %v3789 = vpop.f32.mrb[0].mxu0
        %v3790 = vadd.f32 %v3629, %v3789
        %v3791 = vpop.f32.mrb[0].mxu0
        %3792 = vmatprep.mubr.bf16.mxu0 0
        %3793 = vmatmul.mubr.bf16.gmra.mrb[0].mxu0 %v3376
        %v3794 = vpop.f32.mrb[0].mxu0
        %v3795 = vadd.f32 %v3634, %v3794
        %v3796 = vpop.f32.mrb[0].mxu0
        %v3797 = vpop.f32.mrb[0].mxu0
        %v3798 = vadd.f32 %v3637, %v3797
        %v3799 = vpop.f32.mrb[0].mxu0
        %3800 = vmatprep.mubr.bf16.mxu0 0
        %3801 = vmatmul.mubr.bf16.gmra.mrb[0].mxu0 %v3379
        %v3802 = vpop.f32.mrb[0].mxu0
        %v3803 = vadd.f32 %v3642, %v3802
        %v3804 = vpop.f32.mrb[0].mxu0
        %v3805 = vpop.f32.mrb[0].mxu0
        %v3806 = vadd.f32 %v3645, %v3805
        %v3807 = vpop.f32.mrb[0].mxu0
        %3808 = vmatprep.mubr.bf16.mxu0 0
        %3809 = vmatmul.mubr.bf16.gmra.mrb[0].mxu0 %v3382
        %v3810 = vpop.f32.mrb[0].mxu0
        %v3811 = vadd.f32 %v3650, %v3810
        %v3812 = vpop.f32.mrb[0].mxu0
        %v3813 = vpop.f32.mrb[0].mxu0
        %v3814 = vadd.f32 %v3653, %v3813
        %v3815 = vpop.f32.mrb[0].mxu0
        %3816 = vmatprep.mubr.bf16.mxu0 0
        %3817 = vmatmul.mubr.bf16.gmra.mrb[0].mxu0 %v3385
        %v3818 = vpop.f32.mrb[0].mxu0
        %v3819 = vadd.f32 %v3658, %v3818
        %v3820 = vpop.f32.mrb[0].mxu0
        %v3821 = vpop.f32.mrb[0].mxu0
        %v3822 = vadd.f32 %v3661, %v3821
        %v3823 = vpop.f32.mrb[0].mxu0
        %3824 = vmatprep.mubr.bf16.mxu0 0
        %3825 = vmatmul.mubr.bf16.gmra.mrb[0].mxu0 %v3388
        %v3826 = vpop.f32.mrb[0].mxu0
        %v3827 = vadd.f32 %v3666, %v3826
        %v3828 = vpop.f32.mrb[0].mxu0
        %v3829 = vpop.f32.mrb[0].mxu0
        %v3830 = vadd.f32 %v3669, %v3829
        %v3831 = vpop.f32.mrb[0].mxu0
        %3832 = vmatprep.mubr.bf16.mxu0 0
        %3833 = vmatmul.mubr.bf16.gmra.mrb[0].mxu0 %v3391
        %v3834 = vpop.f32.mrb[0].mxu0
        %v3835 = vadd.f32 %v3674, %v3834
        %v3836 = vpop.f32.mrb[0].mxu0
        %v3837 = vpop.f32.mrb[0].mxu0
        %v3838 = vadd.f32 %v3677, %v3837
        %v3839 = vpop.f32.mrb[0].mxu0
        %3840 = vmatprep.mubr.bf16.mxu0 0
        %3841 = vmatmul.mubr.bf16.gmra.mrb[0].mxu0 %v3394
        %v3842 = vpop.f32.mrb[0].mxu0
        %v3843 = vadd.f32 %v3682, %v3842
        %v3844 = vpop.f32.mrb[0].mxu0
        %v3845 = vpop.f32.mrb[0].mxu0
        %v3846 = vadd.f32 %v3685, %v3845
        %v3847 = vpop.f32.mrb[0].mxu0
        %3848 = vmatprep.mubr.bf16.mxu0 0
        %3849 = vmatmul.mubr.bf16.gmra.mrb[0].mxu0 %v3397
        %v3850 = vpop.f32.mrb[0].mxu0
        %v3851 = vadd.f32 %v3690, %v3850
        %v3852 = vpop.f32.mrb[0].mxu0
        %v3853 = vpop.f32.mrb[0].mxu0
        %v3854 = vadd.f32 %v3693, %v3853
        %v3855 = vpop.f32.mrb[0].mxu0
        %3856 = vmatprep.mubr.bf16.mxu0 0
        %3857 = vmatmul.mubr.bf16.gmra.mrb[0].mxu0 %v3400
        %v3858 = vpop.f32.mrb[0].mxu0
        %v3859 = vadd.f32 %v3698, %v3858
        %v3860 = vpop.f32.mrb[0].mxu0
        %v3861 = vpop.f32.mrb[0].mxu0
        %v3862 = vadd.f32 %v3701, %v3861
        %v3863 = vpop.f32.mrb[0].mxu0
        %3864 = vmatprep.mubr.bf16.mxu0 0
        %3865 = vmatmul.mubr.bf16.gmra.mrb[0].mxu0 %v3403
        %v3866 = vpop.f32.mrb[0].mxu0
        %v3867 = vadd.f32 %v3706, %v3866
        %v3868 = vpop.f32.mrb[0].mxu0
        %v3869 = vpop.f32.mrb[0].mxu0
        %v3870 = vadd.f32 %v3709, %v3869
        %v3871 = vpop.f32.mrb[0].mxu0
        %3872 = vmatprep.mubr.bf16.mxu0 0
        %3873 = vmatmul.mubr.bf16.gmra.mrb[0].mxu0 %v3406
        %v3874 = vpop.f32.mrb[0].mxu0
        %v3875 = vadd.f32 %v3714, %v3874
        %v3876 = vpop.f32.mrb[0].mxu0
        %v3877 = vpop.f32.mrb[0].mxu0
        %v3878 = vadd.f32 %v3717, %v3877
        %v3879 = vpop.f32.mrb[0].mxu0
        %3880 = vmatprep.mubr.bf16.mxu0 0
        %3881 = vmatmul.mubr.bf16.gmra.mrb[0].mxu0 %v3409
        %v3882 = vpop.f32.mrb[0].mxu0
        %v3883 = vadd.f32 %v3722, %v3882
        %v3884 = vpop.f32.mrb[0].mxu0
        %v3885 = vpop.f32.mrb[0].mxu0
        %v3886 = vadd.f32 %v3725, %v3885
        %v3887 = vpop.f32.mrb[0].mxu0
        %3888 = vmatprep.mubr.bf16.mxu0 0
        %3889 = vmatmul.mubr.bf16.gmra.mrb[0].mxu0 %v3412
        %v3890 = vpop.f32.mrb[0].mxu0
        %v3891 = vadd.f32 %v3730, %v3890
        %v3892 = vpop.f32.mrb[0].mxu0
        %v3893 = vpop.f32.mrb[0].mxu0
        %v3894 = vadd.f32 %v3733, %v3893
        %v3895 = vpop.f32.mrb[0].mxu0
        %3896 = vdwg.mxu0
        %v3897 = vld [vmem:[%s216] sm:$0xff]
        %v3898 = vld [vmem:[%s216 + $0x8] sm:$0xff]
        %v3899 = vld [vmem:[%s216 + $0x10] sm:$0xff]
        %v3900 = vld [vmem:[%s216 + $0x18] sm:$0xff]
        %v3901 = vld [vmem:[%s216 + $0x20] sm:$0xff]
        %v3902 = vld [vmem:[%s216 + $0x28] sm:$0xff]
        %v3903 = vld [vmem:[%s216 + $0x30] sm:$0xff]
        %v3904 = vld [vmem:[%s216 + $0x38] sm:$0xff]
        %v3905 = vld [vmem:[%s216 + $0x40] sm:$0xff]
        %v3906 = vld [vmem:[%s216 + $0x48] sm:$0xff]
        %v3907 = vld [vmem:[%s216 + $0x50] sm:$0xff]
        %v3908 = vld [vmem:[%s216 + $0x58] sm:$0xff]
        %v3909 = vld [vmem:[%s216 + $0x60] sm:$0xff]
        %v3910 = vld [vmem:[%s216 + $0x68] sm:$0xff]
        %v3911 = vld [vmem:[%s216 + $0x70] sm:$0xff]
        %v3912 = vld [vmem:[%s216 + $0x78] sm:$0xff]
        %v3913 = vld [vmem:[%s216 + $0x80] sm:$0xff]
        %v3914 = vld [vmem:[%s216 + $0x88] sm:$0xff]
        %v3915 = vld [vmem:[%s216 + $0x90] sm:$0xff]
        %v3916 = vld [vmem:[%s216 + $0x98] sm:$0xff]
        %v3917 = vld [vmem:[%s216 + $0xa0] sm:$0xff]
        %v3918 = vld [vmem:[%s216 + $0xa8] sm:$0xff]
        %v3919 = vld [vmem:[%s216 + $0xb0] sm:$0xff]
        %v3920 = vld [vmem:[%s216 + $0xb8] sm:$0xff]
        %v3921 = vld [vmem:[%s216 + $0xc0] sm:$0xff]
        %v3922 = vld [vmem:[%s216 + $0xc8] sm:$0xff]
        %v3923 = vld [vmem:[%s216 + $0xd0] sm:$0xff]
        %v3924 = vld [vmem:[%s216 + $0xd8] sm:$0xff]
        %v3925 = vld [vmem:[%s216 + $0xe0] sm:$0xff]
        %v3926 = vld [vmem:[%s216 + $0xe8] sm:$0xff]
        %v3927 = vld [vmem:[%s216 + $0xf0] sm:$0xff]
        %v3928 = vld [vmem:[%s216 + $0xf8] sm:$0xff]
        %v3929 = vadd.f32 %v3771, %v3897
        %v3930 = vadd.f32 %v3774, %v3898
        %v3931 = vadd.f32 %v3779, %v3899
        %v3932 = vadd.f32 %v3782, %v3900
        %v3933 = vadd.f32 %v3787, %v3901
        %v3934 = vadd.f32 %v3790, %v3902
        %v3935 = vadd.f32 %v3795, %v3903
        %v3936 = vadd.f32 %v3798, %v3904
        %v3937 = vadd.f32 %v3803, %v3905
        %v3938 = vadd.f32 %v3806, %v3906
        %v3939 = vadd.f32 %v3811, %v3907
        %v3940 = vadd.f32 %v3814, %v3908
        %v3941 = vadd.f32 %v3819, %v3909
        %v3942 = vadd.f32 %v3822, %v3910
        %v3943 = vadd.f32 %v3827, %v3911
        %v3944 = vadd.f32 %v3830, %v3912
        %v3945 = vadd.f32 %v3835, %v3913
        %v3946 = vadd.f32 %v3838, %v3914
        %v3947 = vadd.f32 %v3843, %v3915
        %v3948 = vadd.f32 %v3846, %v3916
        %v3949 = vadd.f32 %v3851, %v3917
        %v3950 = vadd.f32 %v3854, %v3918
        %v3951 = vadd.f32 %v3859, %v3919
        %v3952 = vadd.f32 %v3862, %v3920
        %v3953 = vadd.f32 %v3867, %v3921
        %v3954 = vadd.f32 %v3870, %v3922
        %v3955 = vadd.f32 %v3875, %v3923
        %v3956 = vadd.f32 %v3878, %v3924
        %v3957 = vadd.f32 %v3883, %v3925
        %v3958 = vadd.f32 %v3886, %v3926
        %v3959 = vadd.f32 %v3891, %v3927
        %v3960 = vadd.f32 %v3894, %v3928
        %3961 = vst.msk [vmem:[%s242] sm:$0xff] %vm244, %v3929
        %3962 = vst.msk [vmem:[%s242 + $0x8] sm:$0xff] %vm244, %v3930
        %3963 = vst.msk [vmem:[%s242 + $0x10] sm:$0xff] %vm244, %v3931
        %3964 = vst.msk [vmem:[%s242 + $0x18] sm:$0xff] %vm244, %v3932
        %3965 = vst.msk [vmem:[%s242 + $0x20] sm:$0xff] %vm244, %v3933
        %3966 = vst.msk [vmem:[%s242 + $0x28] sm:$0xff] %vm244, %v3934
        %3967 = vst.msk [vmem:[%s242 + $0x30] sm:$0xff] %vm244, %v3935
        %3968 = vst.msk [vmem:[%s242 + $0x38] sm:$0xff] %vm244, %v3936
        %3969 = vst.msk [vmem:[%s242 + $0x40] sm:$0xff] %vm244, %v3937
        %3970 = vst.msk [vmem:[%s242 + $0x48] sm:$0xff] %vm244, %v3938
        %3971 = vst.msk [vmem:[%s242 + $0x50] sm:$0xff] %vm244, %v3939
        %3972 = vst.msk [vmem:[%s242 + $0x58] sm:$0xff] %vm244, %v3940
        %3973 = vst.msk [vmem:[%s242 + $0x60] sm:$0xff] %vm244, %v3941
        %3974 = vst.msk [vmem:[%s242 + $0x68] sm:$0xff] %vm244, %v3942
        %3975 = vst.msk [vmem:[%s242 + $0x70] sm:$0xff] %vm244, %v3943
        %3976 = vst.msk [vmem:[%s242 + $0x78] sm:$0xff] %vm244, %v3944
        %3977 = vst.msk [vmem:[%s242 + $0x80] sm:$0xff] %vm244, %v3945
        %3978 = vst.msk [vmem:[%s242 + $0x88] sm:$0xff] %vm244, %v3946
        %3979 = vst.msk [vmem:[%s242 + $0x90] sm:$0xff] %vm244, %v3947
        %3980 = vst.msk [vmem:[%s242 + $0x98] sm:$0xff] %vm244, %v3948
        %3981 = vst.msk [vmem:[%s242 + $0xa0] sm:$0xff] %vm244, %v3949
        %3982 = vst.msk [vmem:[%s242 + $0xa8] sm:$0xff] %vm244, %v3950
        %3983 = vst.msk [vmem:[%s242 + $0xb0] sm:$0xff] %vm244, %v3951
        %3984 = vst.msk [vmem:[%s242 + $0xb8] sm:$0xff] %vm244, %v3952
        %3985 = vst.msk [vmem:[%s242 + $0xc0] sm:$0xff] %vm244, %v3953
        %3986 = vst.msk [vmem:[%s242 + $0xc8] sm:$0xff] %vm244, %v3954
        %3987 = vst.msk [vmem:[%s242 + $0xd0] sm:$0xff] %vm244, %v3955
        %3988 = vst.msk [vmem:[%s242 + $0xd8] sm:$0xff] %vm244, %v3956
        %3989 = vst.msk [vmem:[%s242 + $0xe0] sm:$0xff] %vm244, %v3957
        %3990 = vst.msk [vmem:[%s242 + $0xe8] sm:$0xff] %vm244, %v3958
        %3991 = vst.msk [vmem:[%s242 + $0xf0] sm:$0xff] %vm244, %v3959
        %3992 = vst.msk [vmem:[%s242 + $0xf8] sm:$0xff] %vm244, %v3960
        %s3993 = sand.u32 %s140, 1
        %s3994 = scalar_lea.sflag [#allocation6], %s3993
        %s3995 = sand.u32 %s140, 1
        %s3996 = smul.addr %s3995, 256
        %s3997 = scalar_lea.vmem [#allocation7], %s3996
        // Predicated region
        $region45: #{tpu_custom_call.1} parent=39 // pred_check
          %p3998 = pneg %p150
        $region46: #{tpu_custom_call.1} parent=39 // pred_check_branch
          %4000 = sbr.rel (%p3998) target = $region48
        $region47: #{tpu_custom_call.1} parent=39 // pred_region
          %s4002 = ssub.s32 4096, 4096
          %4003 = vsyncadd %s3994, %s4002
          %s4004 = smul.addr %s22, 32
          %s4005 = smul.addr %s4004, 128
          %s4006 = scalar_lea.hbm %s5, %s4005
          %s4007 = sshll.u32 %s3997, 4
          %s4008 = int_to_ptr.vmem [resolvable:$true] %s4007
          %4013 = dma.vmem_to_hbm [thread:$0]  %s4008, 4096, %s4006, %s3994, 128, 128, 8
        $region48: #{tpu_custom_call.1} parent=39 // pred_fallthru
          _
      $region40: #{tpu_custom_call.1} parent=5 // pred_fallthru
        _
      %p4014 = scmp.le.s32.totalorder 2, %s17
      // Predicated region
      $region49: #{tpu_custom_call.1} parent=5 // pred_check
        %p4015 = pneg %p4014
      $region50: #{tpu_custom_call.1} parent=5 // pred_check_branch
        %4017 = sbr.rel (%p4015) target = $region52
      $region51: #{tpu_custom_call.1} parent=5 // pred_region
        %s4018 = ssub.s32 %s17, 2
        // Predicated region
        $region53: #{tpu_custom_call.1} parent=51 // pred_check
          %p4019 = pneg %p156
        $region54: #{tpu_custom_call.1} parent=51 // pred_check_branch
          %4021 = sbr.rel (%p4019) target = $region56
        $region55: #{tpu_custom_call.1} parent=51 // pred_region
          %s4022 = sand.u32 %s141, 1
          %s4023 = scalar_lea.sflag [#allocation6], %s4022
          %s4024 = sand.u32 %s141, 1
          %s4025 = smul.addr %s4024, 256
          %s4026 = scalar_lea.vmem [#allocation7], %s4025
          %4027 = dma.done %s4023, 4096
        $region56: #{tpu_custom_call.1} parent=51 // pred_fallthru
          _
      $region52: #{tpu_custom_call.1} parent=5 // pred_fallthru
        _
    $region6: #{tpu_custom_call.1} parent=1 // loop_footer
      %s21 = sadd.s32 1, %s17
    $region7: #{tpu_custom_call.1} parent=1 // loop_footer_branch
      %16 = sbr.rel target = $region3
    $region8: #{tpu_custom_call.1} parent=1 // loop_exit
      _
    %4028 = vsyncpa [#allocation5], 1
    %s4029 = scalar_lea.sflag [#allocation5], 1
    %4030 = vsyncpa %s4029, 1
    %4031 = vsyncpa [#allocation6], 1
    %s4032 = scalar_lea.sflag [#allocation6], 1
    %4033 = vsyncpa %s4032, 1

</llo_original>
